<compile_context>
chip_gen: v7x
topology: tpu7x:2x2x1
jax: 0.10.0
libtpu: 0.0.40
codegen_flags: <defaults>
</compile_context>

<pallas_src>
import jax
import jax.numpy as jnp
from jax.experimental import pallas as pl
from jax.experimental.pallas import tpu as pltpu

BN_EPS = 0.2
FEAT_CORE = 512
FEAT = 256
HEAD_DIMS = (3, 3, 6, 4)
HEAD_OFFS = (0, 3, 6, 12)
N_OUT = sum(HEAD_DIMS)          # 16
WIDE = 4 * FEAT                 # 1024


def _combine_kernel(feats_ref, wc_ref, w1_ref, w2_ref,
                    wb_ref, wcmb_ref, wy_ref, vec_ref, out_ref):
    relu = lambda v: jnp.maximum(v, 0.0)

    def mm(a, w_bf16):
        # weights travel HBM->VMEM as bf16 (halves DMA bytes); upcast is a cheap
        # VPU op and the matmul accumulates in f32 on the MXU.
        return jnp.dot(a, w_bf16.astype(jnp.float32),
                       preferred_element_type=jnp.float32)

    feats = feats_ref[...]                                       # (2B, C)
    two_b = feats.shape[0]
    b = two_b // 2

    # ---- shared trunk, both branches stacked along rows (run once) ----
    h = relu(mm(feats, wc_ref[...]) + vec_ref[0:1, :FEAT_CORE])  # (2B, 512) core Linear
    h = relu(mm(h, w1_ref[...]) + vec_ref[1:2, :FEAT])           # (2B, 256) ; bn1 folded into w2
    h = relu(mm(h, w2_ref[...]) + vec_ref[2:3, :FEAT])           # (2B, 256) ; bn2 folded into wb

    x1_out = h[:b]                                               # (B, 256)
    x2_out = h[b:]                                               # (B, 256)

    # ---- branch stage: 4 heads fused along the output dim (N = 1024) ----
    u1 = relu(mm(x1_out, wb_ref[0]) + vec_ref[3:4, :])           # (B, 1024)
    u2 = relu(mm(x2_out, wb_ref[1]) + vec_ref[4:5, :])           # (B, 1024)
    # bn1 of each branch, averaged -> bn1 of the average (exact), then ReLU.
    xi = relu((u1 + u2) * 0.5 * vec_ref[5:6, :] + vec_ref[6:7, :])
    # Dropout(0.5) is identity at inference time.

    # ---- per-head combiner linears (different 256x256 weight per segment) ----
    seg = [mm(xi[:, j * FEAT:(j + 1) * FEAT], wcmb_ref[j]) for j in range(4)]
    xc = relu(jnp.concatenate(seg, axis=1) + vec_ref[7:8, :])    # (B, 1024)

    # ---- all 4 classification heads as one block-diagonal matmul (bn1 folded) ----
    logits = mm(xc, wy_ref[...]) + vec_ref[8:9, :N_OUT]          # (B, 16)

    # ---- segment-wise softmax, written as one lane-packed (B, 16) store ----
    outs = []
    for off, d in zip(HEAD_OFFS, HEAD_DIMS):
        z = logits[:, off:off + d]
        z = z - jnp.max(z, axis=1, keepdims=True)
        e = jnp.exp(z)
        outs.append(e * pl.reciprocal(jnp.sum(e, axis=1, keepdims=True),
                                      approx=False))
    out_ref[...] = jnp.concatenate(outs, axis=1)


@jax.jit
def combine_forward(x1_img, x2_img, params):
    (w_core, b_core, w1, b1, w2, b2,
     g1, bt1, m1, v1, g2, bt2, m2, v2,
     w256, b256, wy1, by1, wy2, by2, wy3, by3, wy4, by4) = params

    B, C = x1_img.shape[0], x1_img.shape[1]

    # GAP in the wrapper: kernel only sees (2B, C) pooled features (tiny DMA).
    f1 = jnp.mean(x1_img.reshape(B, C, -1), axis=-1)
    f2 = jnp.mean(x2_img.reshape(B, C, -1), axis=-1)
    feats = jnp.concatenate([f1, f2], axis=0)                    # (2B, C)

    # eval-mode BN as affine scale/shift
    s1 = (g1 / jnp.sqrt(v1 + BN_EPS)).reshape(-1)                # (256,)
    sh1 = bt1.reshape(-1) - m1.reshape(-1) * s1
    s2 = (g2 / jnp.sqrt(v2 + BN_EPS)).reshape(-1)
    sh2 = bt2.reshape(-1) - m2.reshape(-1) * s2

    # fold bn1 into W2, bn2 into the 8 branch linears, bn1 into the 4 heads
    w2f = s1[:, None] * w2
    b2f = b2.reshape(-1) + sh1 @ w2

    def cat_out(ws):                                             # (4,256,256) -> (256,1024)
        return jnp.concatenate([ws[j] for j in range(4)], axis=1)

    wb1 = s2[:, None] * cat_out(w256[0:4])
    wb2 = s2[:, None] * cat_out(w256[4:8])
    bb1 = jnp.concatenate([b256[j, 0] + sh2 @ w256[j] for j in range(4)])
    bb2 = jnp.concatenate([b256[4 + j, 0] + sh2 @ w256[4 + j] for j in range(4)])

    wcmb = w256[8:12]                                            # (4,256,256)
    bcmb = b256[8:12, 0, :].reshape(-1)                          # (1024,)

    head_ws = (wy1, wy2, wy3, wy4)
    head_bs = (by1, by2, by3, by4)
    wy_blk = jnp.zeros((WIDE, N_OUT), jnp.float32)
    by_parts = []
    for j, (wy, by) in enumerate(zip(head_ws, head_bs)):
        d, off = HEAD_DIMS[j], HEAD_OFFS[j]
        wy_blk = wy_blk.at[j * FEAT:(j + 1) * FEAT, off:off + d].set(s1[:, None] * wy)
        by_parts.append(by.reshape(-1) + sh1 @ wy)
    by_cat = jnp.concatenate(by_parts)                           # (16,)

    def pad_to(v, n=WIDE):
        return jnp.zeros((n,), jnp.float32).at[:v.shape[0]].set(v)

    # one packed operand for all tiny vectors (removes ~15 small DMAs)
    vecs = jnp.stack([
        pad_to(b_core.reshape(-1)),   # 0: core bias (512)
        pad_to(b1.reshape(-1)),       # 1: L1 bias (256)
        pad_to(b2f),                  # 2: L2 bias, bn1 folded (256)
        bb1,                          # 3: branch-1 biases, bn2 folded (1024)
        bb2,                          # 4: branch-2 biases, bn2 folded (1024)
        jnp.tile(s1, 4),              # 5: bn1 scale for post-average (1024)
        jnp.tile(sh1, 4),             # 6: bn1 shift for post-average (1024)
        bcmb,                         # 7: combiner biases (1024)
        pad_to(by_cat),               # 8: head biases, bn1 folded (16)
    ])

    bf16 = jnp.bfloat16
    args = (feats,
            w_core.astype(bf16), w1.astype(bf16), w2f.astype(bf16),
            jnp.stack([wb1, wb2]).astype(bf16),
            wcmb.astype(bf16),
            wy_blk.astype(bf16),
            vecs)

    vmem_spec = pl.BlockSpec(memory_space=pltpu.MemorySpace.VMEM)
    # Gridless single invocation: ~2 MB of bf16 weights, well under VMEM on
    # v5e/v6e/v7x.  (At much larger batch, add a grid over B with
    # dimension_semantics=("parallel",) to use both v7x TensorCores.)
    out16 = pl.pallas_call(
        _combine_kernel,
        out_shape=jax.ShapeDtypeStruct((B, N_OUT), jnp.float32),
        in_specs=[vmem_spec] * len(args),
        out_specs=vmem_spec,
    )(*args)

    return tuple(out16[:, o:o + d] for o, d in zip(HEAD_OFFS, HEAD_DIMS))


def make_params(key, c_in):
    """Deterministic xavier-normal weights, small random biases and BN stats
    (non-trivial so the BN folding is actually exercised)."""
    keys = jax.random.split(key, 64)
    ki = iter(range(64))
    nxt = lambda: keys[next(ki)]

    def xavier(fan_in, fan_out):
        std = (2.0 / (fan_in + fan_out)) ** 0.5
        return std * jax.random.normal(nxt(), (fan_in, fan_out), jnp.float32)

    def smallvec(n, scale):
        return scale * jax.random.normal(nxt(), (1, n), jnp.float32)

    w_core = xavier(c_in, FEAT_CORE)
    b_core = smallvec(FEAT_CORE, 0.01)
    w1 = xavier(FEAT_CORE, FEAT)
    b1 = smallvec(FEAT, 0.01)
    w2 = xavier(FEAT, FEAT)
    b2 = smallvec(FEAT, 0.01)

    g1 = 1.0 + smallvec(FEAT, 0.05)
    bt1 = smallvec(FEAT, 0.05)
    m1 = smallvec(FEAT, 0.05)
    v1 = 1.0 + jnp.abs(smallvec(FEAT, 0.1))
    g2 = 1.0 + smallvec(FEAT, 0.05)
    bt2 = smallvec(FEAT, 0.05)
    m2 = smallvec(FEAT, 0.05)
    v2 = 1.0 + jnp.abs(smallvec(FEAT, 0.1))

    # 12 stacked 256x256 layers: x11..x14, x21..x24, x1c..x4c
    w256 = jnp.stack([xavier(FEAT, FEAT) for _ in range(12)])
    b256 = 0.01 * jax.random.normal(nxt(), (12, 1, FEAT), jnp.float32)

    heads = []
    for d in HEAD_DIMS:
        heads.append(xavier(FEAT, d))
        heads.append(smallvec(d, 0.01))

    return (w_core, b_core, w1, b1, w2, b2,
            g1, bt1, m1, v1, g2, bt2, m2, v2,
            w256, b256, *heads)


def reference_forward(x1_img, x2_img, params):
    """Pure-JAX f32 reference of the original module math (no folding)."""
    (w_core, b_core, w1, b1, w2, b2,
     g1, bt1, m1, v1, g2, bt2, m2, v2,
     w256, b256, wy1, by1, wy2, by2, wy3, by3, wy4, by4) = params

    dot = lambda a, w: jnp.dot(a, w, precision=jax.lax.Precision.HIGHEST)
    relu = lambda v: jnp.maximum(v, 0.0)
    bn1 = lambda v: (v - m1) * (g1 / jnp.sqrt(v1 + BN_EPS)) + bt1
    bn2 = lambda v: (v - m2) * (g2 / jnp.sqrt(v2 + BN_EPS)) + bt2

    def trunk(x):
        f = jnp.mean(x.reshape(x.shape[0], x.shape[1], -1), axis=-1)
        f = dot(f, w_core) + b_core
        h = bn1(relu(dot(f, w1) + b1))
        return bn2(relu(dot(h, w2) + b2))

    x1_out, x2_out = trunk(x1_img), trunk(x2_img)
    head_w = (wy1, wy2, wy3, wy4)
    head_b = (by1, by2, by3, by4)
    outs = []
    for i in range(4):
        a = bn1(relu(dot(x1_out, w256[i]) + b256[i]))
        b = bn1(relu(dot(x2_out, w256[4 + i]) + b256[4 + i]))
        x = relu((a + b) / 2.0)
        xc = bn1(relu(dot(x, w256[8 + i]) + b256[8 + i]))   # Dropout identity at eval
        outs.append(jax.nn.softmax(dot(xc, head_w[i]) + head_b[i], axis=1))
    return tuple(outs)


if __name__ == "__main__":
    key = jax.random.PRNGKey(0)
    k_p, k_x1, k_x2 = jax.random.split(key, 3)

    B, C, H, W = 2, 4, 16, 16
    x1_img = jax.random.normal(k_x1, (B, C, H, W), jnp.float32)
    x2_img = jax.random.normal(k_x2, (B, C, H, W), jnp.float32)
    params = make_params(k_p, C)

    outs = combine_forward(x1_img, x2_img, params)
    outs = jax.block_until_ready(outs)

    refs = reference_forward(x1_img, x2_img, params)
    for o, r, d in zip(outs, refs, HEAD_DIMS):
        assert o.shape == (B, d), (o.shape, d)
        assert float(jnp.max(jnp.abs(jnp.sum(o, axis=1) - 1.0))) < 1e-4
        # bf16 weight transport (f32 accumulation) -> re-baselined tolerance
        assert float(jnp.max(jnp.abs(o - r))) < 5e-3, float(jnp.max(jnp.abs(o - r)))

    print("KERNEL_OK")
</pallas_src>

<mosaic_0001>
module attributes {stable_mosaic.version = 11 : i64} {
  func.func @_combine_kernel(%arg0: memref<4x4xf32, #tpu.memory_space<vmem>>, %arg1: memref<4x512xbf16, #tpu.memory_space<vmem>>, %arg2: memref<512x256xbf16, #tpu.memory_space<vmem>>, %arg3: memref<256x256xbf16, #tpu.memory_space<vmem>>, %arg4: memref<2x256x1024xbf16, #tpu.memory_space<vmem>>, %arg5: memref<4x256x256xbf16, #tpu.memory_space<vmem>>, %arg6: memref<1024x16xbf16, #tpu.memory_space<vmem>>, %arg7: memref<9x1024xf32, #tpu.memory_space<vmem>>, %arg8: memref<2x16xf32, #tpu.memory_space<vmem>>) attributes {dimension_semantics = [], scalar_prefetch = 0 : i64, scratch_operands = 0 : i64, tpu.core_type = #tpu.core_type<tc>} {
    %c0 = arith.constant 0 : index
    %c0_0 = arith.constant 0 : index
    %0 = vector.load %arg0[%c0, %c0_0] : memref<4x4xf32, #tpu.memory_space<vmem>>, vector<4x4xf32>
    %c0_1 = arith.constant 0 : index
    %c0_2 = arith.constant 0 : index
    %1 = vector.load %arg1[%c0_1, %c0_2] : memref<4x512xbf16, #tpu.memory_space<vmem>>, vector<4x512xbf16>
    %2 = arith.extf %1 : vector<4x512xbf16> to vector<4x512xf32>
    %cst = arith.constant dense<0.000000e+00> : vector<4x512xf32>
    %3 = tpu.matmul %0, %2, %cst {dimension_numbers = #tpu.dot_dimension_numbers<[1], [0], [0], [1], [0, 0, 1, 1], [], []>} : vector<4x4xf32>, vector<4x512xf32>, vector<4x512xf32> -> vector<4x512xf32>
    %c0_3 = arith.constant 0 : index
    %c0_4 = arith.constant 0 : index
    %4 = vector.load %arg7[%c0_3, %c0_4] : memref<9x1024xf32, #tpu.memory_space<vmem>>, vector<1x512xf32>
    %5 = vector.broadcast %4 : vector<1x512xf32> to vector<4x512xf32>
    %6 = arith.addf %3, %5 : vector<4x512xf32>
    %cst_5 = arith.constant 0.000000e+00 : f32
    %7 = vector.broadcast %cst_5 : f32 to vector<4x512xf32>
    %8 = arith.maximumf %6, %7 : vector<4x512xf32>
    %c0_6 = arith.constant 0 : index
    %c0_7 = arith.constant 0 : index
    %9 = vector.load %arg2[%c0_6, %c0_7] : memref<512x256xbf16, #tpu.memory_space<vmem>>, vector<512x256xbf16>
    %10 = arith.extf %9 : vector<512x256xbf16> to vector<512x256xf32>
    %cst_8 = arith.constant dense<0.000000e+00> : vector<4x256xf32>
    %11 = tpu.matmul %8, %10, %cst_8 {dimension_numbers = #tpu.dot_dimension_numbers<[1], [0], [0], [1], [0, 0, 1, 1], [], []>} : vector<4x512xf32>, vector<512x256xf32>, vector<4x256xf32> -> vector<4x256xf32>
    %c1 = arith.constant 1 : index
    %c0_9 = arith.constant 0 : index
    %12 = vector.load %arg7[%c1, %c0_9] : memref<9x1024xf32, #tpu.memory_space<vmem>>, vector<1x256xf32>
    %13 = vector.broadcast %12 : vector<1x256xf32> to vector<4x256xf32>
    %14 = arith.addf %11, %13 : vector<4x256xf32>
    %cst_10 = arith.constant 0.000000e+00 : f32
    %15 = vector.broadcast %cst_10 : f32 to vector<4x256xf32>
    %16 = arith.maximumf %14, %15 : vector<4x256xf32>
    %c0_11 = arith.constant 0 : index
    %c0_12 = arith.constant 0 : index
    %17 = vector.load %arg3[%c0_11, %c0_12] : memref<256x256xbf16, #tpu.memory_space<vmem>>, vector<256x256xbf16>
    %18 = arith.extf %17 : vector<256x256xbf16> to vector<256x256xf32>
    %cst_13 = arith.constant dense<0.000000e+00> : vector<4x256xf32>
    %19 = tpu.matmul %16, %18, %cst_13 {dimension_numbers = #tpu.dot_dimension_numbers<[1], [0], [0], [1], [0, 0, 1, 1], [], []>} : vector<4x256xf32>, vector<256x256xf32>, vector<4x256xf32> -> vector<4x256xf32>
    %c2 = arith.constant 2 : index
    %c0_14 = arith.constant 0 : index
    %20 = vector.load %arg7[%c2, %c0_14] : memref<9x1024xf32, #tpu.memory_space<vmem>>, vector<1x256xf32>
    %21 = vector.broadcast %20 : vector<1x256xf32> to vector<4x256xf32>
    %22 = arith.addf %19, %21 : vector<4x256xf32>
    %cst_15 = arith.constant 0.000000e+00 : f32
    %23 = vector.broadcast %cst_15 : f32 to vector<4x256xf32>
    %24 = arith.maximumf %22, %23 : vector<4x256xf32>
    %25 = vector.extract_strided_slice %24 {offsets = [0, 0], sizes = [2, 256], strides = [1, 1]} : vector<4x256xf32> to vector<2x256xf32>
    %26 = vector.extract_strided_slice %24 {offsets = [2, 0], sizes = [2, 256], strides = [1, 1]} : vector<4x256xf32> to vector<2x256xf32>
    %c0_16 = arith.constant 0 : index
    %c0_17 = arith.constant 0 : index
    %c0_18 = arith.constant 0 : index
    %27 = vector.load %arg4[%c0_16, %c0_17, %c0_18] : memref<2x256x1024xbf16, #tpu.memory_space<vmem>>, vector<1x256x1024xbf16>
    %28 = vector.shape_cast %27 : vector<1x256x1024xbf16> to vector<256x1024xbf16>
    %29 = arith.extf %28 : vector<256x1024xbf16> to vector<256x1024xf32>
    %cst_19 = arith.constant dense<0.000000e+00> : vector<2x1024xf32>
    %30 = tpu.matmul %25, %29, %cst_19 {dimension_numbers = #tpu.dot_dimension_numbers<[1], [0], [0], [1], [0, 0, 1, 1], [], []>} : vector<2x256xf32>, vector<256x1024xf32>, vector<2x1024xf32> -> vector<2x1024xf32>
    %c3 = arith.constant 3 : index
    %c0_20 = arith.constant 0 : index
    %31 = vector.load %arg7[%c3, %c0_20] : memref<9x1024xf32, #tpu.memory_space<vmem>>, vector<1x1024xf32>
    %32 = vector.broadcast %31 : vector<1x1024xf32> to vector<2x1024xf32>
    %33 = arith.addf %30, %32 : vector<2x1024xf32>
    %cst_21 = arith.constant 0.000000e+00 : f32
    %34 = vector.broadcast %cst_21 : f32 to vector<2x1024xf32>
    %35 = arith.maximumf %33, %34 : vector<2x1024xf32>
    %c1_22 = arith.constant 1 : index
    %c0_23 = arith.constant 0 : index
    %c0_24 = arith.constant 0 : index
    %36 = vector.load %arg4[%c1_22, %c0_23, %c0_24] : memref<2x256x1024xbf16, #tpu.memory_space<vmem>>, vector<1x256x1024xbf16>
    %37 = vector.shape_cast %36 : vector<1x256x1024xbf16> to vector<256x1024xbf16>
    %38 = arith.extf %37 : vector<256x1024xbf16> to vector<256x1024xf32>
    %cst_25 = arith.constant dense<0.000000e+00> : vector<2x1024xf32>
    %39 = tpu.matmul %26, %38, %cst_25 {dimension_numbers = #tpu.dot_dimension_numbers<[1], [0], [0], [1], [0, 0, 1, 1], [], []>} : vector<2x256xf32>, vector<256x1024xf32>, vector<2x1024xf32> -> vector<2x1024xf32>
    %c4 = arith.constant 4 : index
    %c0_26 = arith.constant 0 : index
    %40 = vector.load %arg7[%c4, %c0_26] : memref<9x1024xf32, #tpu.memory_space<vmem>>, vector<1x1024xf32>
    %41 = vector.broadcast %40 : vector<1x1024xf32> to vector<2x1024xf32>
    %42 = arith.addf %39, %41 : vector<2x1024xf32>
    %cst_27 = arith.constant 0.000000e+00 : f32
    %43 = vector.broadcast %cst_27 : f32 to vector<2x1024xf32>
    %44 = arith.maximumf %42, %43 : vector<2x1024xf32>
    %45 = arith.addf %35, %44 : vector<2x1024xf32>
    %cst_28 = arith.constant 5.000000e-01 : f32
    %46 = vector.broadcast %cst_28 : f32 to vector<2x1024xf32>
    %47 = arith.mulf %45, %46 : vector<2x1024xf32>
    %c5 = arith.constant 5 : index
    %c0_29 = arith.constant 0 : index
    %48 = vector.load %arg7[%c5, %c0_29] : memref<9x1024xf32, #tpu.memory_space<vmem>>, vector<1x1024xf32>
    %49 = vector.broadcast %48 : vector<1x1024xf32> to vector<2x1024xf32>
    %50 = arith.mulf %47, %49 : vector<2x1024xf32>
    %c6 = arith.constant 6 : index
    %c0_30 = arith.constant 0 : index
    %51 = vector.load %arg7[%c6, %c0_30] : memref<9x1024xf32, #tpu.memory_space<vmem>>, vector<1x1024xf32>
    %52 = vector.broadcast %51 : vector<1x1024xf32> to vector<2x1024xf32>
    %53 = arith.addf %50, %52 : vector<2x1024xf32>
    %cst_31 = arith.constant 0.000000e+00 : f32
    %54 = vector.broadcast %cst_31 : f32 to vector<2x1024xf32>
    %55 = arith.maximumf %53, %54 : vector<2x1024xf32>
    %56 = vector.extract_strided_slice %55 {offsets = [0, 0], sizes = [2, 256], strides = [1, 1]} : vector<2x1024xf32> to vector<2x256xf32>
    %c0_32 = arith.constant 0 : index
    %c0_33 = arith.constant 0 : index
    %c0_34 = arith.constant 0 : index
    %57 = vector.load %arg5[%c0_32, %c0_33, %c0_34] : memref<4x256x256xbf16, #tpu.memory_space<vmem>>, vector<1x256x256xbf16>
    %58 = vector.shape_cast %57 : vector<1x256x256xbf16> to vector<256x256xbf16>
    %59 = arith.extf %58 : vector<256x256xbf16> to vector<256x256xf32>
    %cst_35 = arith.constant dense<0.000000e+00> : vector<2x256xf32>
    %60 = tpu.matmul %56, %59, %cst_35 {dimension_numbers = #tpu.dot_dimension_numbers<[1], [0], [0], [1], [0, 0, 1, 1], [], []>} : vector<2x256xf32>, vector<256x256xf32>, vector<2x256xf32> -> vector<2x256xf32>
    %61 = vector.extract_strided_slice %55 {offsets = [0, 256], sizes = [2, 256], strides = [1, 1]} : vector<2x1024xf32> to vector<2x256xf32>
    %c1_36 = arith.constant 1 : index
    %c0_37 = arith.constant 0 : index
    %c0_38 = arith.constant 0 : index
    %62 = vector.load %arg5[%c1_36, %c0_37, %c0_38] : memref<4x256x256xbf16, #tpu.memory_space<vmem>>, vector<1x256x256xbf16>
    %63 = vector.shape_cast %62 : vector<1x256x256xbf16> to vector<256x256xbf16>
    %64 = arith.extf %63 : vector<256x256xbf16> to vector<256x256xf32>
    %cst_39 = arith.constant dense<0.000000e+00> : vector<2x256xf32>
    %65 = tpu.matmul %61, %64, %cst_39 {dimension_numbers = #tpu.dot_dimension_numbers<[1], [0], [0], [1], [0, 0, 1, 1], [], []>} : vector<2x256xf32>, vector<256x256xf32>, vector<2x256xf32> -> vector<2x256xf32>
    %66 = vector.extract_strided_slice %55 {offsets = [0, 512], sizes = [2, 256], strides = [1, 1]} : vector<2x1024xf32> to vector<2x256xf32>
    %c2_40 = arith.constant 2 : index
    %c0_41 = arith.constant 0 : index
    %c0_42 = arith.constant 0 : index
    %67 = vector.load %arg5[%c2_40, %c0_41, %c0_42] : memref<4x256x256xbf16, #tpu.memory_space<vmem>>, vector<1x256x256xbf16>
    %68 = vector.shape_cast %67 : vector<1x256x256xbf16> to vector<256x256xbf16>
    %69 = arith.extf %68 : vector<256x256xbf16> to vector<256x256xf32>
    %cst_43 = arith.constant dense<0.000000e+00> : vector<2x256xf32>
    %70 = tpu.matmul %66, %69, %cst_43 {dimension_numbers = #tpu.dot_dimension_numbers<[1], [0], [0], [1], [0, 0, 1, 1], [], []>} : vector<2x256xf32>, vector<256x256xf32>, vector<2x256xf32> -> vector<2x256xf32>
    %71 = vector.extract_strided_slice %55 {offsets = [0, 768], sizes = [2, 256], strides = [1, 1]} : vector<2x1024xf32> to vector<2x256xf32>
    %c3_44 = arith.constant 3 : index
    %c0_45 = arith.constant 0 : index
    %c0_46 = arith.constant 0 : index
    %72 = vector.load %arg5[%c3_44, %c0_45, %c0_46] : memref<4x256x256xbf16, #tpu.memory_space<vmem>>, vector<1x256x256xbf16>
    %73 = vector.shape_cast %72 : vector<1x256x256xbf16> to vector<256x256xbf16>
    %74 = arith.extf %73 : vector<256x256xbf16> to vector<256x256xf32>
    %cst_47 = arith.constant dense<0.000000e+00> : vector<2x256xf32>
    %75 = tpu.matmul %71, %74, %cst_47 {dimension_numbers = #tpu.dot_dimension_numbers<[1], [0], [0], [1], [0, 0, 1, 1], [], []>} : vector<2x256xf32>, vector<256x256xf32>, vector<2x256xf32> -> vector<2x256xf32>
    %76 = tpu.concatenate %60, %65, %70, %75 in 1 : vector<2x256xf32>, vector<2x256xf32>, vector<2x256xf32>, vector<2x256xf32> -> vector<2x1024xf32>
    %c7 = arith.constant 7 : index
    %c0_48 = arith.constant 0 : index
    %77 = vector.load %arg7[%c7, %c0_48] : memref<9x1024xf32, #tpu.memory_space<vmem>>, vector<1x1024xf32>
    %78 = vector.broadcast %77 : vector<1x1024xf32> to vector<2x1024xf32>
    %79 = arith.addf %76, %78 : vector<2x1024xf32>
    %cst_49 = arith.constant 0.000000e+00 : f32
    %80 = vector.broadcast %cst_49 : f32 to vector<2x1024xf32>
    %81 = arith.maximumf %79, %80 : vector<2x1024xf32>
    %c0_50 = arith.constant 0 : index
    %c0_51 = arith.constant 0 : index
    %82 = vector.load %arg6[%c0_50, %c0_51] : memref<1024x16xbf16, #tpu.memory_space<vmem>>, vector<1024x16xbf16>
    %83 = arith.extf %82 : vector<1024x16xbf16> to vector<1024x16xf32>
    %cst_52 = arith.constant dense<0.000000e+00> : vector<2x16xf32>
    %84 = tpu.matmul %81, %83, %cst_52 {dimension_numbers = #tpu.dot_dimension_numbers<[1], [0], [0], [1], [0, 0, 1, 1], [], []>} : vector<2x1024xf32>, vector<1024x16xf32>, vector<2x16xf32> -> vector<2x16xf32>
    %c8 = arith.constant 8 : index
    %c0_53 = arith.constant 0 : index
    %85 = vector.load %arg7[%c8, %c0_53] : memref<9x1024xf32, #tpu.memory_space<vmem>>, vector<1x16xf32>
    %86 = vector.broadcast %85 : vector<1x16xf32> to vector<2x16xf32>
    %87 = arith.addf %84, %86 : vector<2x16xf32>
    %88 = vector.extract_strided_slice %87 {offsets = [0, 0], sizes = [2, 3], strides = [1, 1]} : vector<2x16xf32> to vector<2x3xf32>
    %cst_54 = arith.constant dense<0xFF800000> : vector<2xf32>
    %89 = vector.multi_reduction <maximumf>, %88, %cst_54 [1] : vector<2x3xf32> to vector<2xf32>
    %90 = vector.shape_cast %89 : vector<2xf32> to vector<2x1xf32>
    %91 = vector.broadcast %90 : vector<2x1xf32> to vector<2x3xf32>
    %92 = arith.subf %88, %91 : vector<2x3xf32>
    %93 = math.exp %92 : vector<2x3xf32>
    %cst_55 = arith.constant dense<0.000000e+00> : vector<2xf32>
    %94 = vector.multi_reduction <add>, %93, %cst_55 [1] : vector<2x3xf32> to vector<2xf32>
    %95 = vector.shape_cast %94 : vector<2xf32> to vector<2x1xf32>
    %96 = tpu.reciprocal %95 : vector<2x1xf32> -> vector<2x1xf32>
    %97 = vector.broadcast %96 : vector<2x1xf32> to vector<2x3xf32>
    %98 = arith.mulf %93, %97 : vector<2x3xf32>
    %99 = vector.extract_strided_slice %87 {offsets = [0, 3], sizes = [2, 3], strides = [1, 1]} : vector<2x16xf32> to vector<2x3xf32>
    %cst_56 = arith.constant dense<0xFF800000> : vector<2xf32>
    %100 = vector.multi_reduction <maximumf>, %99, %cst_56 [1] : vector<2x3xf32> to vector<2xf32>
    %101 = vector.shape_cast %100 : vector<2xf32> to vector<2x1xf32>
    %102 = vector.broadcast %101 : vector<2x1xf32> to vector<2x3xf32>
    %103 = arith.subf %99, %102 : vector<2x3xf32>
    %104 = math.exp %103 : vector<2x3xf32>
    %cst_57 = arith.constant dense<0.000000e+00> : vector<2xf32>
    %105 = vector.multi_reduction <add>, %104, %cst_57 [1] : vector<2x3xf32> to vector<2xf32>
    %106 = vector.shape_cast %105 : vector<2xf32> to vector<2x1xf32>
    %107 = tpu.reciprocal %106 : vector<2x1xf32> -> vector<2x1xf32>
    %108 = vector.broadcast %107 : vector<2x1xf32> to vector<2x3xf32>
    %109 = arith.mulf %104, %108 : vector<2x3xf32>
    %110 = vector.extract_strided_slice %87 {offsets = [0, 6], sizes = [2, 6], strides = [1, 1]} : vector<2x16xf32> to vector<2x6xf32>
    %cst_58 = arith.constant dense<0xFF800000> : vector<2xf32>
    %111 = vector.multi_reduction <maximumf>, %110, %cst_58 [1] : vector<2x6xf32> to vector<2xf32>
    %112 = vector.shape_cast %111 : vector<2xf32> to vector<2x1xf32>
    %113 = vector.broadcast %112 : vector<2x1xf32> to vector<2x6xf32>
    %114 = arith.subf %110, %113 : vector<2x6xf32>
    %115 = math.exp %114 : vector<2x6xf32>
    %cst_59 = arith.constant dense<0.000000e+00> : vector<2xf32>
    %116 = vector.multi_reduction <add>, %115, %cst_59 [1] : vector<2x6xf32> to vector<2xf32>
    %117 = vector.shape_cast %116 : vector<2xf32> to vector<2x1xf32>
    %118 = tpu.reciprocal %117 : vector<2x1xf32> -> vector<2x1xf32>
    %119 = vector.broadcast %118 : vector<2x1xf32> to vector<2x6xf32>
    %120 = arith.mulf %115, %119 : vector<2x6xf32>
    %121 = vector.extract_strided_slice %87 {offsets = [0, 12], sizes = [2, 4], strides = [1, 1]} : vector<2x16xf32> to vector<2x4xf32>
    %cst_60 = arith.constant dense<0xFF800000> : vector<2xf32>
    %122 = vector.multi_reduction <maximumf>, %121, %cst_60 [1] : vector<2x4xf32> to vector<2xf32>
    %123 = vector.shape_cast %122 : vector<2xf32> to vector<2x1xf32>
    %124 = vector.broadcast %123 : vector<2x1xf32> to vector<2x4xf32>
    %125 = arith.subf %121, %124 : vector<2x4xf32>
    %126 = math.exp %125 : vector<2x4xf32>
    %cst_61 = arith.constant dense<0.000000e+00> : vector<2xf32>
    %127 = vector.multi_reduction <add>, %126, %cst_61 [1] : vector<2x4xf32> to vector<2xf32>
    %128 = vector.shape_cast %127 : vector<2xf32> to vector<2x1xf32>
    %129 = tpu.reciprocal %128 : vector<2x1xf32> -> vector<2x1xf32>
    %130 = vector.broadcast %129 : vector<2x1xf32> to vector<2x4xf32>
    %131 = arith.mulf %126, %130 : vector<2x4xf32>
    %132 = tpu.concatenate %98, %109, %120, %131 in 1 : vector<2x3xf32>, vector<2x3xf32>, vector<2x6xf32>, vector<2x4xf32> -> vector<2x16xf32>
    %c0_62 = arith.constant 0 : index
    %c0_63 = arith.constant 0 : index
    %133 = vector.load %arg8[%c0_62, %c0_63] : memref<2x16xf32, #tpu.memory_space<vmem>>, vector<2x16xf32>
    tpu.vector_store %arg8[%c0_62, %c0_63], %132 {strides = array<i32>} : memref<2x16xf32, #tpu.memory_space<vmem>>, vector<2x16xf32>,
    return
  }
}

</mosaic_0001>

<llo_original>
// kernel: combine_forward.1
$region0: #{combine_forward.1}
  #allocation0 [shape = 'u32[]', space=smem, size = 0x4, offset = 0x4, fixed_abs, tag = 'smem constant byte address 0x4 - core index']
  #allocation1 [shape = 'u32[144,128]{1,0:T(1,128)}', space=vmem, size = 0x12000, scoped, tag = 'internal scratch']
  %s0 = inlined_call_operand.vmem [shape: f32[4,4], index: 0, kind: input, shape index: {}]
  %s1 = inlined_call_operand.vmem [shape: bf16[4,512], index: 1, kind: input, shape index: {}]
  %s2 = inlined_call_operand.vmem [shape: bf16[512,256], index: 2, kind: input, shape index: {}]
  %s3 = inlined_call_operand.vmem [shape: bf16[256,256], index: 3, kind: input, shape index: {}]
  %s4 = inlined_call_operand.vmem [shape: bf16[2,256,1024], index: 4, kind: input, shape index: {}]
  %s5 = inlined_call_operand.vmem [shape: bf16[4,256,256], index: 5, kind: input, shape index: {}]
  %s6 = inlined_call_operand.vmem [shape: bf16[1024,16], index: 6, kind: input, shape index: {}]
  %s7 = inlined_call_operand.vmem [shape: f32[9,1024], index: 7, kind: input, shape index: {}]
  %s8 = inlined_call_operand.vmem [shape: f32[2,16], index: 8, kind: output, shape index: {}]
  %s9 = sld [smem:[#allocation0]]
  $region42: #{combine_forward.1} parent=0
    _
  %s11 = ssub.s32 1, %s9
  %s12 = scalar_select 0, %s11, %s9
  // Predicated region
  $region2: #{combine_forward.1} parent=0 // pred_check
    _
  $region3: #{combine_forward.1} parent=0 // pred_check_branch
    %14 = sbr.rel (0) target = $region5
  $region4: #{combine_forward.1} parent=0 // pred_region
    _
  $region5: #{combine_forward.1} parent=0 // pred_fallthru
    _
  // Predicated region
  $region6: #{combine_forward.1} parent=0 // pred_check
    _
  $region7: #{combine_forward.1} parent=0 // pred_check_branch
    %16 = sbr.rel (0) target = $region9
  $region8: #{combine_forward.1} parent=0 // pred_region
    _
  $region9: #{combine_forward.1} parent=0 // pred_fallthru
    _
  // Predicated region
  $region10: #{combine_forward.1} parent=0 // pred_check
    _
  $region11: #{combine_forward.1} parent=0 // pred_check_branch
    %18 = sbr.rel (0) target = $region13
  $region12: #{combine_forward.1} parent=0 // pred_region
    _
  $region13: #{combine_forward.1} parent=0 // pred_fallthru
    _
  // Predicated region
  $region14: #{combine_forward.1} parent=0 // pred_check
    _
  $region15: #{combine_forward.1} parent=0 // pred_check_branch
    %20 = sbr.rel (0) target = $region17
  $region16: #{combine_forward.1} parent=0 // pred_region
    _
  $region17: #{combine_forward.1} parent=0 // pred_fallthru
    _
  // Predicated region
  $region18: #{combine_forward.1} parent=0 // pred_check
    _
  $region19: #{combine_forward.1} parent=0 // pred_check_branch
    %22 = sbr.rel (0) target = $region21
  $region20: #{combine_forward.1} parent=0 // pred_region
    _
  $region21: #{combine_forward.1} parent=0 // pred_fallthru
    _
  // Predicated region
  $region22: #{combine_forward.1} parent=0 // pred_check
    _
  $region23: #{combine_forward.1} parent=0 // pred_check_branch
    %24 = sbr.rel (0) target = $region25
  $region24: #{combine_forward.1} parent=0 // pred_region
    _
  $region25: #{combine_forward.1} parent=0 // pred_fallthru
    _
  // Predicated region
  $region26: #{combine_forward.1} parent=0 // pred_check
    _
  $region27: #{combine_forward.1} parent=0 // pred_check_branch
    %26 = sbr.rel (0) target = $region29
  $region28: #{combine_forward.1} parent=0 // pred_region
    _
  $region29: #{combine_forward.1} parent=0 // pred_fallthru
    _
  // Predicated region
  $region30: #{combine_forward.1} parent=0 // pred_check
    _
  $region31: #{combine_forward.1} parent=0 // pred_check_branch
    %28 = sbr.rel (0) target = $region33
  $region32: #{combine_forward.1} parent=0 // pred_region
    _
  $region33: #{combine_forward.1} parent=0 // pred_fallthru
    _
  %v29 = vld [vmem:[%s0] sm:$0xf]
  %v30 = vld [vmem:[%s1] sm:$0xff]
  %v31 = vunpack.c.l.bf16 %v30
  %v32 = vunpack.c.h.bf16 %v30
  %v33 = vld [vmem:[%s7] ss:$8 sm:$0xf]
  %v35 = vlaneseq
  %v36 = vshrl.u32 %v35, 7
  %v37 = vsub.s32 0, %v36
  %v38 = vrot.slane %v33, %v37
  %v39 = vlaneseq
  %v40 = vshrl.u32 %v39, 7
  %v41 = vsub.s32 1, %v40
  %v42 = vrot.slane %v33, %v41
  %v43 = vlaneseq
  %v44 = vshrl.u32 %v43, 7
  %v45 = vsub.s32 2, %v44
  %v46 = vrot.slane %v33, %v45
  %v47 = vlaneseq
  %v48 = vshrl.u32 %v47, 7
  %v49 = vsub.s32 3, %v48
  %v50 = vrot.slane %v33, %v49
  %v57 = vcombine.high %v31, %v31
  %v58 = vcombine.high %v32, %v32
  %vm59 = vcmask 31744
  %v61 = vsel %vm59, %v29, 0
  %vm63 = vcmask 1043456
  %v64 = vsel %vm63, %v31, 0
  %v66 = vsel %vm63, %v57, 0
  %v68 = vsel %vm63, %v32, 0
  %v70 = vsel %vm63, %v58, 0
  %72 = vmatprep.subr.mxu0 %v66
  %73 = vmatpush1.msra.mxu0 %v64
  %74 = vmatprep.subr.mxu0 0.0
  %75 = vmatpush1.msra.mxu0 0.0
  %76 = vmatprep.subr.mxu0 0.0
  %77 = vmatpush1.msra.mxu0 0.0
  %78 = vmatprep.subr.mxu0 0.0
  %79 = vmatpush1.msra.mxu0 0.0
  %80 = vmatprep.subr.mxu0 0.0
  %81 = vmatpush1.msra.mxu0 0.0
  %82 = vmatprep.subr.mxu0 0.0
  %83 = vmatpush1.msra.mxu0 0.0
  %84 = vmatprep.subr.mxu0 0.0
  %85 = vmatpush1.msra.mxu0 0.0
  %86 = vmatprep.subr.mxu0 0.0
  %87 = vmatpush1.msra.mxu0 0.0
  %88 = vmatprep.subr.mxu0 0.0
  %89 = vmatpush1.msra.mxu0 0.0
  %90 = vmatprep.subr.mxu0 0.0
  %91 = vmatpush1.msra.mxu0 0.0
  %92 = vmatprep.subr.mxu0 0.0
  %93 = vmatpush1.msra.mxu0 0.0
  %94 = vmatprep.subr.mxu0 0.0
  %95 = vmatpush1.msra.mxu0 0.0
  %96 = vmatprep.subr.mxu0 0.0
  %97 = vmatpush1.msra.mxu0 0.0
  %98 = vmatprep.subr.mxu0 0.0
  %99 = vmatpush1.msra.mxu0 0.0
  %100 = vmatprep.subr.mxu0 0.0
  %101 = vmatpush1.msra.mxu0 0.0
  %102 = vmatprep.subr.mxu0 0.0
  %103 = vmatpush1.msra.mxu0 0.0
  %104 = vmatprep.subr.mxu0 0.0
  %105 = vmatpush1.msra.mxu0 0.0
  %106 = vmatprep.subr.mxu0 0.0
  %107 = vmatpush1.msra.mxu0 0.0
  %108 = vmatprep.subr.mxu0 0.0
  %109 = vmatpush1.msra.mxu0 0.0
  %110 = vmatprep.subr.mxu0 0.0
  %111 = vmatpush1.msra.mxu0 0.0
  %112 = vmatprep.subr.mxu0 0.0
  %113 = vmatpush1.msra.mxu0 0.0
  %114 = vmatprep.subr.mxu0 0.0
  %115 = vmatpush1.msra.mxu0 0.0
  %116 = vmatprep.subr.mxu0 0.0
  %117 = vmatpush1.msra.mxu0 0.0
  %118 = vmatprep.subr.mxu0 0.0
  %119 = vmatpush1.msra.mxu0 0.0
  %120 = vmatprep.subr.mxu0 0.0
  %121 = vmatpush1.msra.mxu0 0.0
  %122 = vmatprep.subr.mxu0 0.0
  %123 = vmatpush1.msra.mxu0 0.0
  %124 = vmatprep.subr.mxu0 0.0
  %125 = vmatpush1.msra.mxu0 0.0
  %126 = vmatprep.subr.mxu0 0.0
  %127 = vmatpush1.msra.mxu0 0.0
  %128 = vmatprep.subr.mxu0 0.0
  %129 = vmatpush1.msra.mxu0 0.0
  %130 = vmatprep.subr.mxu0 0.0
  %131 = vmatpush1.msra.mxu0 0.0
  %132 = vmatprep.subr.mxu0 0.0
  %133 = vmatpush1.msra.mxu0 0.0
  %134 = vmatprep.subr.mxu0 0.0
  %135 = vmatpush1.msra.mxu0 0.0
  %136 = vmatprep.mubr.f32.mxu0 0.0
  %137 = vmatmul.mubr.f32.gmra.mrb[0].mxu0 %v61
  %v138 = vpop.f32.mrb[0].mxu0
  %v139 = vadd.f32 %v38, %v138
  %v140 = vpop.f32.mrb[0].mxu0
  %v141 = vadd.f32 %v42, %v140
  %142 = vdwg.mxu0
  %143 = vmatprep.subr.mxu0 %v70
  %144 = vmatpush1.msra.mxu0 %v68
  %145 = vmatprep.subr.mxu0 0.0
  %146 = vmatpush1.msra.mxu0 0.0
  %147 = vmatprep.subr.mxu0 0.0
  %148 = vmatpush1.msra.mxu0 0.0
  %149 = vmatprep.subr.mxu0 0.0
  %150 = vmatpush1.msra.mxu0 0.0
  %151 = vmatprep.subr.mxu0 0.0
  %152 = vmatpush1.msra.mxu0 0.0
  %153 = vmatprep.subr.mxu0 0.0
  %154 = vmatpush1.msra.mxu0 0.0
  %155 = vmatprep.subr.mxu0 0.0
  %156 = vmatpush1.msra.mxu0 0.0
  %157 = vmatprep.subr.mxu0 0.0
  %158 = vmatpush1.msra.mxu0 0.0
  %159 = vmatprep.subr.mxu0 0.0
  %160 = vmatpush1.msra.mxu0 0.0
  %161 = vmatprep.subr.mxu0 0.0
  %162 = vmatpush1.msra.mxu0 0.0
  %163 = vmatprep.subr.mxu0 0.0
  %164 = vmatpush1.msra.mxu0 0.0
  %165 = vmatprep.subr.mxu0 0.0
  %166 = vmatpush1.msra.mxu0 0.0
  %167 = vmatprep.subr.mxu0 0.0
  %168 = vmatpush1.msra.mxu0 0.0
  %169 = vmatprep.subr.mxu0 0.0
  %170 = vmatpush1.msra.mxu0 0.0
  %171 = vmatprep.subr.mxu0 0.0
  %172 = vmatpush1.msra.mxu0 0.0
  %173 = vmatprep.subr.mxu0 0.0
  %174 = vmatpush1.msra.mxu0 0.0
  %175 = vmatprep.subr.mxu0 0.0
  %176 = vmatpush1.msra.mxu0 0.0
  %177 = vmatprep.subr.mxu0 0.0
  %178 = vmatpush1.msra.mxu0 0.0
  %179 = vmatprep.subr.mxu0 0.0
  %180 = vmatpush1.msra.mxu0 0.0
  %181 = vmatprep.subr.mxu0 0.0
  %182 = vmatpush1.msra.mxu0 0.0
  %183 = vmatprep.subr.mxu0 0.0
  %184 = vmatpush1.msra.mxu0 0.0
  %185 = vmatprep.subr.mxu0 0.0
  %186 = vmatpush1.msra.mxu0 0.0
  %187 = vmatprep.subr.mxu0 0.0
  %188 = vmatpush1.msra.mxu0 0.0
  %189 = vmatprep.subr.mxu0 0.0
  %190 = vmatpush1.msra.mxu0 0.0
  %191 = vmatprep.subr.mxu0 0.0
  %192 = vmatpush1.msra.mxu0 0.0
  %193 = vmatprep.subr.mxu0 0.0
  %194 = vmatpush1.msra.mxu0 0.0
  %195 = vmatprep.subr.mxu0 0.0
  %196 = vmatpush1.msra.mxu0 0.0
  %197 = vmatprep.subr.mxu0 0.0
  %198 = vmatpush1.msra.mxu0 0.0
  %199 = vmatprep.subr.mxu0 0.0
  %200 = vmatpush1.msra.mxu0 0.0
  %201 = vmatprep.subr.mxu0 0.0
  %202 = vmatpush1.msra.mxu0 0.0
  %203 = vmatprep.subr.mxu0 0.0
  %204 = vmatpush1.msra.mxu0 0.0
  %205 = vmatprep.subr.mxu0 0.0
  %206 = vmatpush1.msra.mxu0 0.0
  %207 = vmatprep.mubr.f32.mxu0 0.0
  %208 = vmatmul.mubr.f32.gmra.mrb[0].mxu0 %v61
  %v209 = vpop.f32.mrb[0].mxu0
  %v210 = vadd.f32 %v46, %v209
  %v211 = vpop.f32.mrb[0].mxu0
  %v212 = vadd.f32 %v50, %v211
  %213 = vdwg.mxu0
  %v214 = vmax.f32 %v139, 0.0
  %v215 = vmax.f32 %v141, 0.0
  %v216 = vmax.f32 %v210, 0.0
  %v217 = vmax.f32 %v212, 0.0
  %v218 = vld [vmem:[%s2] sm:$0xff]
  %v219 = vld [vmem:[%s2 + $0x8] sm:$0xff]
  %v220 = vld [vmem:[%s2 + $0x10] sm:$0xff]
  %v221 = vld [vmem:[%s2 + $0x18] sm:$0xff]
  %v222 = vld [vmem:[%s2 + $0x20] sm:$0xff]
  %v223 = vld [vmem:[%s2 + $0x28] sm:$0xff]
  %v224 = vld [vmem:[%s2 + $0x30] sm:$0xff]
  %v225 = vld [vmem:[%s2 + $0x38] sm:$0xff]
  %v226 = vld [vmem:[%s2 + $0x40] sm:$0xff]
  %v227 = vld [vmem:[%s2 + $0x48] sm:$0xff]
  %v228 = vld [vmem:[%s2 + $0x50] sm:$0xff]
  %v229 = vld [vmem:[%s2 + $0x58] sm:$0xff]
  %v230 = vld [vmem:[%s2 + $0x60] sm:$0xff]
  %v231 = vld [vmem:[%s2 + $0x68] sm:$0xff]
  %v232 = vld [vmem:[%s2 + $0x70] sm:$0xff]
  %v233 = vld [vmem:[%s2 + $0x78] sm:$0xff]
  %v234 = vld [vmem:[%s2 + $0x80] sm:$0xff]
  %v235 = vld [vmem:[%s2 + $0x88] sm:$0xff]
  %v236 = vld [vmem:[%s2 + $0x90] sm:$0xff]
  %v237 = vld [vmem:[%s2 + $0x98] sm:$0xff]
  %v238 = vld [vmem:[%s2 + $0xa0] sm:$0xff]
  %v239 = vld [vmem:[%s2 + $0xa8] sm:$0xff]
  %v240 = vld [vmem:[%s2 + $0xb0] sm:$0xff]
  %v241 = vld [vmem:[%s2 + $0xb8] sm:$0xff]
  %v242 = vld [vmem:[%s2 + $0xc0] sm:$0xff]
  %v243 = vld [vmem:[%s2 + $0xc8] sm:$0xff]
  %v244 = vld [vmem:[%s2 + $0xd0] sm:$0xff]
  %v245 = vld [vmem:[%s2 + $0xd8] sm:$0xff]
  %v246 = vld [vmem:[%s2 + $0xe0] sm:$0xff]
  %v247 = vld [vmem:[%s2 + $0xe8] sm:$0xff]
  %v248 = vld [vmem:[%s2 + $0xf0] sm:$0xff]
  %v249 = vld [vmem:[%s2 + $0xf8] sm:$0xff]
  %v250 = vld [vmem:[%s2 + $0x100] sm:$0xff]
  %v251 = vld [vmem:[%s2 + $0x108] sm:$0xff]
  %v252 = vld [vmem:[%s2 + $0x110] sm:$0xff]
  %v253 = vld [vmem:[%s2 + $0x118] sm:$0xff]
  %v254 = vld [vmem:[%s2 + $0x120] sm:$0xff]
  %v255 = vld [vmem:[%s2 + $0x128] sm:$0xff]
  %v256 = vld [vmem:[%s2 + $0x130] sm:$0xff]
  %v257 = vld [vmem:[%s2 + $0x138] sm:$0xff]
  %v258 = vld [vmem:[%s2 + $0x140] sm:$0xff]
  %v259 = vld [vmem:[%s2 + $0x148] sm:$0xff]
  %v260 = vld [vmem:[%s2 + $0x150] sm:$0xff]
  %v261 = vld [vmem:[%s2 + $0x158] sm:$0xff]
  %v262 = vld [vmem:[%s2 + $0x160] sm:$0xff]
  %v263 = vld [vmem:[%s2 + $0x168] sm:$0xff]
  %v264 = vld [vmem:[%s2 + $0x170] sm:$0xff]
  %v265 = vld [vmem:[%s2 + $0x178] sm:$0xff]
  %v266 = vld [vmem:[%s2 + $0x180] sm:$0xff]
  %v267 = vld [vmem:[%s2 + $0x188] sm:$0xff]
  %v268 = vld [vmem:[%s2 + $0x190] sm:$0xff]
  %v269 = vld [vmem:[%s2 + $0x198] sm:$0xff]
  %v270 = vld [vmem:[%s2 + $0x1a0] sm:$0xff]
  %v271 = vld [vmem:[%s2 + $0x1a8] sm:$0xff]
  %v272 = vld [vmem:[%s2 + $0x1b0] sm:$0xff]
  %v273 = vld [vmem:[%s2 + $0x1b8] sm:$0xff]
  %v274 = vld [vmem:[%s2 + $0x1c0] sm:$0xff]
  %v275 = vld [vmem:[%s2 + $0x1c8] sm:$0xff]
  %v276 = vld [vmem:[%s2 + $0x1d0] sm:$0xff]
  %v277 = vld [vmem:[%s2 + $0x1d8] sm:$0xff]
  %v278 = vld [vmem:[%s2 + $0x1e0] sm:$0xff]
  %v279 = vld [vmem:[%s2 + $0x1e8] sm:$0xff]
  %v280 = vld [vmem:[%s2 + $0x1f0] sm:$0xff]
  %v281 = vld [vmem:[%s2 + $0x1f8] sm:$0xff]
  %v282 = vunpack.c.l.bf16 %v218
  %v283 = vunpack.c.h.bf16 %v218
  %v284 = vunpack.c.l.bf16 %v219
  %v285 = vunpack.c.h.bf16 %v219
  %v286 = vunpack.c.l.bf16 %v220
  %v287 = vunpack.c.h.bf16 %v220
  %v288 = vunpack.c.l.bf16 %v221
  %v289 = vunpack.c.h.bf16 %v221
  %v290 = vunpack.c.l.bf16 %v222
  %v291 = vunpack.c.h.bf16 %v222
  %v292 = vunpack.c.l.bf16 %v223
  %v293 = vunpack.c.h.bf16 %v223
  %v294 = vunpack.c.l.bf16 %v224
  %v295 = vunpack.c.h.bf16 %v224
  %v296 = vunpack.c.l.bf16 %v225
  %v297 = vunpack.c.h.bf16 %v225
  %v298 = vunpack.c.l.bf16 %v226
  %v299 = vunpack.c.h.bf16 %v226
  %v300 = vunpack.c.l.bf16 %v227
  %v301 = vunpack.c.h.bf16 %v227
  %v302 = vunpack.c.l.bf16 %v228
  %v303 = vunpack.c.h.bf16 %v228
  %v304 = vunpack.c.l.bf16 %v229
  %v305 = vunpack.c.h.bf16 %v229
  %v306 = vunpack.c.l.bf16 %v230
  %v307 = vunpack.c.h.bf16 %v230
  %v308 = vunpack.c.l.bf16 %v231
  %v309 = vunpack.c.h.bf16 %v231
  %v310 = vunpack.c.l.bf16 %v232
  %v311 = vunpack.c.h.bf16 %v232
  %v312 = vunpack.c.l.bf16 %v233
  %v313 = vunpack.c.h.bf16 %v233
  %v314 = vunpack.c.l.bf16 %v234
  %v315 = vunpack.c.h.bf16 %v234
  %v316 = vunpack.c.l.bf16 %v235
  %v317 = vunpack.c.h.bf16 %v235
  %v318 = vunpack.c.l.bf16 %v236
  %v319 = vunpack.c.h.bf16 %v236
  %v320 = vunpack.c.l.bf16 %v237
  %v321 = vunpack.c.h.bf16 %v237
  %v322 = vunpack.c.l.bf16 %v238
  %v323 = vunpack.c.h.bf16 %v238
  %v324 = vunpack.c.l.bf16 %v239
  %v325 = vunpack.c.h.bf16 %v239
  %v326 = vunpack.c.l.bf16 %v240
  %v327 = vunpack.c.h.bf16 %v240
  %v328 = vunpack.c.l.bf16 %v241
  %v329 = vunpack.c.h.bf16 %v241
  %v330 = vunpack.c.l.bf16 %v242
  %v331 = vunpack.c.h.bf16 %v242
  %v332 = vunpack.c.l.bf16 %v243
  %v333 = vunpack.c.h.bf16 %v243
  %v334 = vunpack.c.l.bf16 %v244
  %v335 = vunpack.c.h.bf16 %v244
  %v336 = vunpack.c.l.bf16 %v245
  %v337 = vunpack.c.h.bf16 %v245
  %v338 = vunpack.c.l.bf16 %v246
  %v339 = vunpack.c.h.bf16 %v246
  %v340 = vunpack.c.l.bf16 %v247
  %v341 = vunpack.c.h.bf16 %v247
  %v342 = vunpack.c.l.bf16 %v248
  %v343 = vunpack.c.h.bf16 %v248
  %v344 = vunpack.c.l.bf16 %v249
  %v345 = vunpack.c.h.bf16 %v249
  %v346 = vunpack.c.l.bf16 %v250
  %v347 = vunpack.c.h.bf16 %v250
  %v348 = vunpack.c.l.bf16 %v251
  %v349 = vunpack.c.h.bf16 %v251
  %v350 = vunpack.c.l.bf16 %v252
  %v351 = vunpack.c.h.bf16 %v252
  %v352 = vunpack.c.l.bf16 %v253
  %v353 = vunpack.c.h.bf16 %v253
  %v354 = vunpack.c.l.bf16 %v254
  %v355 = vunpack.c.h.bf16 %v254
  %v356 = vunpack.c.l.bf16 %v255
  %v357 = vunpack.c.h.bf16 %v255
  %v358 = vunpack.c.l.bf16 %v256
  %v359 = vunpack.c.h.bf16 %v256
  %v360 = vunpack.c.l.bf16 %v257
  %v361 = vunpack.c.h.bf16 %v257
  %v362 = vunpack.c.l.bf16 %v258
  %v363 = vunpack.c.h.bf16 %v258
  %v364 = vunpack.c.l.bf16 %v259
  %v365 = vunpack.c.h.bf16 %v259
  %v366 = vunpack.c.l.bf16 %v260
  %v367 = vunpack.c.h.bf16 %v260
  %v368 = vunpack.c.l.bf16 %v261
  %v369 = vunpack.c.h.bf16 %v261
  %v370 = vunpack.c.l.bf16 %v262
  %v371 = vunpack.c.h.bf16 %v262
  %v372 = vunpack.c.l.bf16 %v263
  %v373 = vunpack.c.h.bf16 %v263
  %v374 = vunpack.c.l.bf16 %v264
  %v375 = vunpack.c.h.bf16 %v264
  %v376 = vunpack.c.l.bf16 %v265
  %v377 = vunpack.c.h.bf16 %v265
  %v378 = vunpack.c.l.bf16 %v266
  %v379 = vunpack.c.h.bf16 %v266
  %v380 = vunpack.c.l.bf16 %v267
  %v381 = vunpack.c.h.bf16 %v267
  %v382 = vunpack.c.l.bf16 %v268
  %v383 = vunpack.c.h.bf16 %v268
  %v384 = vunpack.c.l.bf16 %v269
  %v385 = vunpack.c.h.bf16 %v269
  %v386 = vunpack.c.l.bf16 %v270
  %v387 = vunpack.c.h.bf16 %v270
  %v388 = vunpack.c.l.bf16 %v271
  %v389 = vunpack.c.h.bf16 %v271
  %v390 = vunpack.c.l.bf16 %v272
  %v391 = vunpack.c.h.bf16 %v272
  %v392 = vunpack.c.l.bf16 %v273
  %v393 = vunpack.c.h.bf16 %v273
  %v394 = vunpack.c.l.bf16 %v274
  %v395 = vunpack.c.h.bf16 %v274
  %v396 = vunpack.c.l.bf16 %v275
  %v397 = vunpack.c.h.bf16 %v275
  %v398 = vunpack.c.l.bf16 %v276
  %v399 = vunpack.c.h.bf16 %v276
  %v400 = vunpack.c.l.bf16 %v277
  %v401 = vunpack.c.h.bf16 %v277
  %v402 = vunpack.c.l.bf16 %v278
  %v403 = vunpack.c.h.bf16 %v278
  %v404 = vunpack.c.l.bf16 %v279
  %v405 = vunpack.c.h.bf16 %v279
  %v406 = vunpack.c.l.bf16 %v280
  %v407 = vunpack.c.h.bf16 %v280
  %v408 = vunpack.c.l.bf16 %v281
  %v409 = vunpack.c.h.bf16 %v281
  %s410 = scalar_lea.vmem %s7, 1
  %v411 = vld [vmem:[%s410] ss:$8 sm:$0x3]
  %v413 = vlaneseq
  %v414 = vshrl.u32 %v413, 7
  %v415 = vsub.s32 0, %v414
  %v416 = vrot.slane %v411, %v415
  %v417 = vlaneseq
  %v418 = vshrl.u32 %v417, 7
  %v419 = vsub.s32 1, %v418
  %v420 = vrot.slane %v411, %v419
  %423 = vmatprep.subr.mxu0 %v283
  %424 = vmatpush1.msra.mxu0 %v282
  %425 = vmatprep.subr.mxu0 %v285
  %426 = vmatpush1.msra.mxu0 %v284
  %427 = vmatprep.subr.mxu0 %v287
  %428 = vmatpush1.msra.mxu0 %v286
  %429 = vmatprep.subr.mxu0 %v289
  %430 = vmatpush1.msra.mxu0 %v288
  %431 = vmatprep.subr.mxu0 %v291
  %432 = vmatpush1.msra.mxu0 %v290
  %433 = vmatprep.subr.mxu0 %v293
  %434 = vmatpush1.msra.mxu0 %v292
  %435 = vmatprep.subr.mxu0 %v295
  %436 = vmatpush1.msra.mxu0 %v294
  %437 = vmatprep.subr.mxu0 %v297
  %438 = vmatpush1.msra.mxu0 %v296
  %439 = vmatprep.subr.mxu0 %v299
  %440 = vmatpush1.msra.mxu0 %v298
  %441 = vmatprep.subr.mxu0 %v301
  %442 = vmatpush1.msra.mxu0 %v300
  %443 = vmatprep.subr.mxu0 %v303
  %444 = vmatpush1.msra.mxu0 %v302
  %445 = vmatprep.subr.mxu0 %v305
  %446 = vmatpush1.msra.mxu0 %v304
  %447 = vmatprep.subr.mxu0 %v307
  %448 = vmatpush1.msra.mxu0 %v306
  %449 = vmatprep.subr.mxu0 %v309
  %450 = vmatpush1.msra.mxu0 %v308
  %451 = vmatprep.subr.mxu0 %v311
  %452 = vmatpush1.msra.mxu0 %v310
  %453 = vmatprep.subr.mxu0 %v313
  %454 = vmatpush1.msra.mxu0 %v312
  %455 = vmatprep.subr.mxu0 %v315
  %456 = vmatpush1.msra.mxu0 %v314
  %457 = vmatprep.subr.mxu0 %v317
  %458 = vmatpush1.msra.mxu0 %v316
  %459 = vmatprep.subr.mxu0 %v319
  %460 = vmatpush1.msra.mxu0 %v318
  %461 = vmatprep.subr.mxu0 %v321
  %462 = vmatpush1.msra.mxu0 %v320
  %463 = vmatprep.subr.mxu0 %v323
  %464 = vmatpush1.msra.mxu0 %v322
  %465 = vmatprep.subr.mxu0 %v325
  %466 = vmatpush1.msra.mxu0 %v324
  %467 = vmatprep.subr.mxu0 %v327
  %468 = vmatpush1.msra.mxu0 %v326
  %469 = vmatprep.subr.mxu0 %v329
  %470 = vmatpush1.msra.mxu0 %v328
  %471 = vmatprep.subr.mxu0 %v331
  %472 = vmatpush1.msra.mxu0 %v330
  %473 = vmatprep.subr.mxu0 %v333
  %474 = vmatpush1.msra.mxu0 %v332
  %475 = vmatprep.subr.mxu0 %v335
  %476 = vmatpush1.msra.mxu0 %v334
  %477 = vmatprep.subr.mxu0 %v337
  %478 = vmatpush1.msra.mxu0 %v336
  %479 = vmatprep.subr.mxu0 %v339
  %480 = vmatpush1.msra.mxu0 %v338
  %481 = vmatprep.subr.mxu0 %v341
  %482 = vmatpush1.msra.mxu0 %v340
  %483 = vmatprep.subr.mxu0 %v343
  %484 = vmatpush1.msra.mxu0 %v342
  %485 = vmatprep.subr.mxu0 %v345
  %486 = vmatpush1.msra.mxu0 %v344
  %487 = vmatprep.mubr.f32.mxu0 %v215
  %488 = vmatmul.mubr.f32.gmra.mrb[0].mxu0 %v214
  %v489 = vpop.f32.mrb[0].mxu0
  %v490 = vadd.f32 %v416, %v489
  %v491 = vpop.f32.mrb[0].mxu0
  %v492 = vadd.f32 %v420, %v491
  %493 = vdwg.mxu0
  %494 = vmatprep.subr.mxu0 %v347
  %495 = vmatpush1.msra.mxu0 %v346
  %496 = vmatprep.subr.mxu0 %v349
  %497 = vmatpush1.msra.mxu0 %v348
  %498 = vmatprep.subr.mxu0 %v351
  %499 = vmatpush1.msra.mxu0 %v350
  %500 = vmatprep.subr.mxu0 %v353
  %501 = vmatpush1.msra.mxu0 %v352
  %502 = vmatprep.subr.mxu0 %v355
  %503 = vmatpush1.msra.mxu0 %v354
  %504 = vmatprep.subr.mxu0 %v357
  %505 = vmatpush1.msra.mxu0 %v356
  %506 = vmatprep.subr.mxu0 %v359
  %507 = vmatpush1.msra.mxu0 %v358
  %508 = vmatprep.subr.mxu0 %v361
  %509 = vmatpush1.msra.mxu0 %v360
  %510 = vmatprep.subr.mxu0 %v363
  %511 = vmatpush1.msra.mxu0 %v362
  %512 = vmatprep.subr.mxu0 %v365
  %513 = vmatpush1.msra.mxu0 %v364
  %514 = vmatprep.subr.mxu0 %v367
  %515 = vmatpush1.msra.mxu0 %v366
  %516 = vmatprep.subr.mxu0 %v369
  %517 = vmatpush1.msra.mxu0 %v368
  %518 = vmatprep.subr.mxu0 %v371
  %519 = vmatpush1.msra.mxu0 %v370
  %520 = vmatprep.subr.mxu0 %v373
  %521 = vmatpush1.msra.mxu0 %v372
  %522 = vmatprep.subr.mxu0 %v375
  %523 = vmatpush1.msra.mxu0 %v374
  %524 = vmatprep.subr.mxu0 %v377
  %525 = vmatpush1.msra.mxu0 %v376
  %526 = vmatprep.subr.mxu0 %v379
  %527 = vmatpush1.msra.mxu0 %v378
  %528 = vmatprep.subr.mxu0 %v381
  %529 = vmatpush1.msra.mxu0 %v380
  %530 = vmatprep.subr.mxu0 %v383
  %531 = vmatpush1.msra.mxu0 %v382
  %532 = vmatprep.subr.mxu0 %v385
  %533 = vmatpush1.msra.mxu0 %v384
  %534 = vmatprep.subr.mxu0 %v387
  %535 = vmatpush1.msra.mxu0 %v386
  %536 = vmatprep.subr.mxu0 %v389
  %537 = vmatpush1.msra.mxu0 %v388
  %538 = vmatprep.subr.mxu0 %v391
  %539 = vmatpush1.msra.mxu0 %v390
  %540 = vmatprep.subr.mxu0 %v393
  %541 = vmatpush1.msra.mxu0 %v392
  %542 = vmatprep.subr.mxu0 %v395
  %543 = vmatpush1.msra.mxu0 %v394
  %544 = vmatprep.subr.mxu0 %v397
  %545 = vmatpush1.msra.mxu0 %v396
  %546 = vmatprep.subr.mxu0 %v399
  %547 = vmatpush1.msra.mxu0 %v398
  %548 = vmatprep.subr.mxu0 %v401
  %549 = vmatpush1.msra.mxu0 %v400
  %550 = vmatprep.subr.mxu0 %v403
  %551 = vmatpush1.msra.mxu0 %v402
  %552 = vmatprep.subr.mxu0 %v405
  %553 = vmatpush1.msra.mxu0 %v404
  %554 = vmatprep.subr.mxu0 %v407
  %555 = vmatpush1.msra.mxu0 %v406
  %556 = vmatprep.subr.mxu0 %v409
  %557 = vmatpush1.msra.mxu0 %v408
  %558 = vmatprep.mubr.f32.mxu0 %v217
  %559 = vmatmul.mubr.f32.gmra.mrb[0].mxu0 %v216
  %v560 = vpop.f32.mrb[0].mxu0
  %v561 = vadd.f32 %v490, %v560
  %v562 = vpop.f32.mrb[0].mxu0
  %v563 = vadd.f32 %v492, %v562
  %564 = vdwg.mxu0
  %v565 = vmax.f32 %v561, 0.0
  %v566 = vmax.f32 %v563, 0.0
  %v567 = vld [vmem:[%s3] sm:$0xff]
  %v568 = vld [vmem:[%s3 + $0x8] sm:$0xff]
  %v569 = vld [vmem:[%s3 + $0x10] sm:$0xff]
  %v570 = vld [vmem:[%s3 + $0x18] sm:$0xff]
  %v571 = vld [vmem:[%s3 + $0x20] sm:$0xff]
  %v572 = vld [vmem:[%s3 + $0x28] sm:$0xff]
  %v573 = vld [vmem:[%s3 + $0x30] sm:$0xff]
  %v574 = vld [vmem:[%s3 + $0x38] sm:$0xff]
  %v575 = vld [vmem:[%s3 + $0x40] sm:$0xff]
  %v576 = vld [vmem:[%s3 + $0x48] sm:$0xff]
  %v577 = vld [vmem:[%s3 + $0x50] sm:$0xff]
  %v578 = vld [vmem:[%s3 + $0x58] sm:$0xff]
  %v579 = vld [vmem:[%s3 + $0x60] sm:$0xff]
  %v580 = vld [vmem:[%s3 + $0x68] sm:$0xff]
  %v581 = vld [vmem:[%s3 + $0x70] sm:$0xff]
  %v582 = vld [vmem:[%s3 + $0x78] sm:$0xff]
  %v583 = vld [vmem:[%s3 + $0x80] sm:$0xff]
  %v584 = vld [vmem:[%s3 + $0x88] sm:$0xff]
  %v585 = vld [vmem:[%s3 + $0x90] sm:$0xff]
  %v586 = vld [vmem:[%s3 + $0x98] sm:$0xff]
  %v587 = vld [vmem:[%s3 + $0xa0] sm:$0xff]
  %v588 = vld [vmem:[%s3 + $0xa8] sm:$0xff]
  %v589 = vld [vmem:[%s3 + $0xb0] sm:$0xff]
  %v590 = vld [vmem:[%s3 + $0xb8] sm:$0xff]
  %v591 = vld [vmem:[%s3 + $0xc0] sm:$0xff]
  %v592 = vld [vmem:[%s3 + $0xc8] sm:$0xff]
  %v593 = vld [vmem:[%s3 + $0xd0] sm:$0xff]
  %v594 = vld [vmem:[%s3 + $0xd8] sm:$0xff]
  %v595 = vld [vmem:[%s3 + $0xe0] sm:$0xff]
  %v596 = vld [vmem:[%s3 + $0xe8] sm:$0xff]
  %v597 = vld [vmem:[%s3 + $0xf0] sm:$0xff]
  %v598 = vld [vmem:[%s3 + $0xf8] sm:$0xff]
  %v599 = vunpack.c.l.bf16 %v567
  %v600 = vunpack.c.h.bf16 %v567
  %v601 = vunpack.c.l.bf16 %v568
  %v602 = vunpack.c.h.bf16 %v568
  %v603 = vunpack.c.l.bf16 %v569
  %v604 = vunpack.c.h.bf16 %v569
  %v605 = vunpack.c.l.bf16 %v570
  %v606 = vunpack.c.h.bf16 %v570
  %v607 = vunpack.c.l.bf16 %v571
  %v608 = vunpack.c.h.bf16 %v571
  %v609 = vunpack.c.l.bf16 %v572
  %v610 = vunpack.c.h.bf16 %v572
  %v611 = vunpack.c.l.bf16 %v573
  %v612 = vunpack.c.h.bf16 %v573
  %v613 = vunpack.c.l.bf16 %v574
  %v614 = vunpack.c.h.bf16 %v574
  %v615 = vunpack.c.l.bf16 %v575
  %v616 = vunpack.c.h.bf16 %v575
  %v617 = vunpack.c.l.bf16 %v576
  %v618 = vunpack.c.h.bf16 %v576
  %v619 = vunpack.c.l.bf16 %v577
  %v620 = vunpack.c.h.bf16 %v577
  %v621 = vunpack.c.l.bf16 %v578
  %v622 = vunpack.c.h.bf16 %v578
  %v623 = vunpack.c.l.bf16 %v579
  %v624 = vunpack.c.h.bf16 %v579
  %v625 = vunpack.c.l.bf16 %v580
  %v626 = vunpack.c.h.bf16 %v580
  %v627 = vunpack.c.l.bf16 %v581
  %v628 = vunpack.c.h.bf16 %v581
  %v629 = vunpack.c.l.bf16 %v582
  %v630 = vunpack.c.h.bf16 %v582
  %v631 = vunpack.c.l.bf16 %v583
  %v632 = vunpack.c.h.bf16 %v583
  %v633 = vunpack.c.l.bf16 %v584
  %v634 = vunpack.c.h.bf16 %v584
  %v635 = vunpack.c.l.bf16 %v585
  %v636 = vunpack.c.h.bf16 %v585
  %v637 = vunpack.c.l.bf16 %v586
  %v638 = vunpack.c.h.bf16 %v586
  %v639 = vunpack.c.l.bf16 %v587
  %v640 = vunpack.c.h.bf16 %v587
  %v641 = vunpack.c.l.bf16 %v588
  %v642 = vunpack.c.h.bf16 %v588
  %v643 = vunpack.c.l.bf16 %v589
  %v644 = vunpack.c.h.bf16 %v589
  %v645 = vunpack.c.l.bf16 %v590
  %v646 = vunpack.c.h.bf16 %v590
  %v647 = vunpack.c.l.bf16 %v591
  %v648 = vunpack.c.h.bf16 %v591
  %v649 = vunpack.c.l.bf16 %v592
  %v650 = vunpack.c.h.bf16 %v592
  %v651 = vunpack.c.l.bf16 %v593
  %v652 = vunpack.c.h.bf16 %v593
  %v653 = vunpack.c.l.bf16 %v594
  %v654 = vunpack.c.h.bf16 %v594
  %v655 = vunpack.c.l.bf16 %v595
  %v656 = vunpack.c.h.bf16 %v595
  %v657 = vunpack.c.l.bf16 %v596
  %v658 = vunpack.c.h.bf16 %v596
  %v659 = vunpack.c.l.bf16 %v597
  %v660 = vunpack.c.h.bf16 %v597
  %v661 = vunpack.c.l.bf16 %v598
  %v662 = vunpack.c.h.bf16 %v598
  %s663 = scalar_lea.vmem %s7, 2
  %v664 = vld [vmem:[%s663] ss:$8 sm:$0x3]
  %v666 = vlaneseq
  %v667 = vshrl.u32 %v666, 7
  %v668 = vsub.s32 0, %v667
  %v669 = vrot.slane %v664, %v668
  %v670 = vlaneseq
  %v671 = vshrl.u32 %v670, 7
  %v672 = vsub.s32 1, %v671
  %v673 = vrot.slane %v664, %v672
  %676 = vmatprep.subr.mxu0 %v600
  %677 = vmatpush1.msra.mxu0 %v599
  %678 = vmatprep.subr.mxu0 %v602
  %679 = vmatpush1.msra.mxu0 %v601
  %680 = vmatprep.subr.mxu0 %v604
  %681 = vmatpush1.msra.mxu0 %v603
  %682 = vmatprep.subr.mxu0 %v606
  %683 = vmatpush1.msra.mxu0 %v605
  %684 = vmatprep.subr.mxu0 %v608
  %685 = vmatpush1.msra.mxu0 %v607
  %686 = vmatprep.subr.mxu0 %v610
  %687 = vmatpush1.msra.mxu0 %v609
  %688 = vmatprep.subr.mxu0 %v612
  %689 = vmatpush1.msra.mxu0 %v611
  %690 = vmatprep.subr.mxu0 %v614
  %691 = vmatpush1.msra.mxu0 %v613
  %692 = vmatprep.subr.mxu0 %v616
  %693 = vmatpush1.msra.mxu0 %v615
  %694 = vmatprep.subr.mxu0 %v618
  %695 = vmatpush1.msra.mxu0 %v617
  %696 = vmatprep.subr.mxu0 %v620
  %697 = vmatpush1.msra.mxu0 %v619
  %698 = vmatprep.subr.mxu0 %v622
  %699 = vmatpush1.msra.mxu0 %v621
  %700 = vmatprep.subr.mxu0 %v624
  %701 = vmatpush1.msra.mxu0 %v623
  %702 = vmatprep.subr.mxu0 %v626
  %703 = vmatpush1.msra.mxu0 %v625
  %704 = vmatprep.subr.mxu0 %v628
  %705 = vmatpush1.msra.mxu0 %v627
  %706 = vmatprep.subr.mxu0 %v630
  %707 = vmatpush1.msra.mxu0 %v629
  %708 = vmatprep.subr.mxu0 %v632
  %709 = vmatpush1.msra.mxu0 %v631
  %710 = vmatprep.subr.mxu0 %v634
  %711 = vmatpush1.msra.mxu0 %v633
  %712 = vmatprep.subr.mxu0 %v636
  %713 = vmatpush1.msra.mxu0 %v635
  %714 = vmatprep.subr.mxu0 %v638
  %715 = vmatpush1.msra.mxu0 %v637
  %716 = vmatprep.subr.mxu0 %v640
  %717 = vmatpush1.msra.mxu0 %v639
  %718 = vmatprep.subr.mxu0 %v642
  %719 = vmatpush1.msra.mxu0 %v641
  %720 = vmatprep.subr.mxu0 %v644
  %721 = vmatpush1.msra.mxu0 %v643
  %722 = vmatprep.subr.mxu0 %v646
  %723 = vmatpush1.msra.mxu0 %v645
  %724 = vmatprep.subr.mxu0 %v648
  %725 = vmatpush1.msra.mxu0 %v647
  %726 = vmatprep.subr.mxu0 %v650
  %727 = vmatpush1.msra.mxu0 %v649
  %728 = vmatprep.subr.mxu0 %v652
  %729 = vmatpush1.msra.mxu0 %v651
  %730 = vmatprep.subr.mxu0 %v654
  %731 = vmatpush1.msra.mxu0 %v653
  %732 = vmatprep.subr.mxu0 %v656
  %733 = vmatpush1.msra.mxu0 %v655
  %734 = vmatprep.subr.mxu0 %v658
  %735 = vmatpush1.msra.mxu0 %v657
  %736 = vmatprep.subr.mxu0 %v660
  %737 = vmatpush1.msra.mxu0 %v659
  %738 = vmatprep.subr.mxu0 %v662
  %739 = vmatpush1.msra.mxu0 %v661
  %740 = vmatprep.mubr.f32.mxu0 %v566
  %741 = vmatmul.mubr.f32.gmra.mrb[0].mxu0 %v565
  %v742 = vpop.f32.mrb[0].mxu0
  %v743 = vadd.f32 %v669, %v742
  %v744 = vpop.f32.mrb[0].mxu0
  %v745 = vadd.f32 %v673, %v744
  %746 = vdwg.mxu0
  %v747 = vmax.f32 %v743, 0.0
  %v748 = vmax.f32 %v745, 0.0
  %v749 = vld [vmem:[%s4] sm:$0xff]
  %v750 = vld [vmem:[%s4 + $0x8] sm:$0xff]
  %v751 = vld [vmem:[%s4 + $0x10] sm:$0xff]
  %v752 = vld [vmem:[%s4 + $0x18] sm:$0xff]
  %v753 = vld [vmem:[%s4 + $0x20] sm:$0xff]
  %v754 = vld [vmem:[%s4 + $0x28] sm:$0xff]
  %v755 = vld [vmem:[%s4 + $0x30] sm:$0xff]
  %v756 = vld [vmem:[%s4 + $0x38] sm:$0xff]
  %v757 = vld [vmem:[%s4 + $0x40] sm:$0xff]
  %v758 = vld [vmem:[%s4 + $0x48] sm:$0xff]
  %v759 = vld [vmem:[%s4 + $0x50] sm:$0xff]
  %v760 = vld [vmem:[%s4 + $0x58] sm:$0xff]
  %v761 = vld [vmem:[%s4 + $0x60] sm:$0xff]
  %v762 = vld [vmem:[%s4 + $0x68] sm:$0xff]
  %v763 = vld [vmem:[%s4 + $0x70] sm:$0xff]
  %v764 = vld [vmem:[%s4 + $0x78] sm:$0xff]
  %v765 = vld [vmem:[%s4 + $0x80] sm:$0xff]
  %v766 = vld [vmem:[%s4 + $0x88] sm:$0xff]
  %v767 = vld [vmem:[%s4 + $0x90] sm:$0xff]
  %v768 = vld [vmem:[%s4 + $0x98] sm:$0xff]
  %v769 = vld [vmem:[%s4 + $0xa0] sm:$0xff]
  %v770 = vld [vmem:[%s4 + $0xa8] sm:$0xff]
  %v771 = vld [vmem:[%s4 + $0xb0] sm:$0xff]
  %v772 = vld [vmem:[%s4 + $0xb8] sm:$0xff]
  %v773 = vld [vmem:[%s4 + $0xc0] sm:$0xff]
  %v774 = vld [vmem:[%s4 + $0xc8] sm:$0xff]
  %v775 = vld [vmem:[%s4 + $0xd0] sm:$0xff]
  %v776 = vld [vmem:[%s4 + $0xd8] sm:$0xff]
  %v777 = vld [vmem:[%s4 + $0xe0] sm:$0xff]
  %v778 = vld [vmem:[%s4 + $0xe8] sm:$0xff]
  %v779 = vld [vmem:[%s4 + $0xf0] sm:$0xff]
  %v780 = vld [vmem:[%s4 + $0xf8] sm:$0xff]
  %v781 = vld [vmem:[%s4 + $0x100] sm:$0xff]
  %v782 = vld [vmem:[%s4 + $0x108] sm:$0xff]
  %v783 = vld [vmem:[%s4 + $0x110] sm:$0xff]
  %v784 = vld [vmem:[%s4 + $0x118] sm:$0xff]
  %v785 = vld [vmem:[%s4 + $0x120] sm:$0xff]
  %v786 = vld [vmem:[%s4 + $0x128] sm:$0xff]
  %v787 = vld [vmem:[%s4 + $0x130] sm:$0xff]
  %v788 = vld [vmem:[%s4 + $0x138] sm:$0xff]
  %v789 = vld [vmem:[%s4 + $0x140] sm:$0xff]
  %v790 = vld [vmem:[%s4 + $0x148] sm:$0xff]
  %v791 = vld [vmem:[%s4 + $0x150] sm:$0xff]
  %v792 = vld [vmem:[%s4 + $0x158] sm:$0xff]
  %v793 = vld [vmem:[%s4 + $0x160] sm:$0xff]
  %v794 = vld [vmem:[%s4 + $0x168] sm:$0xff]
  %v795 = vld [vmem:[%s4 + $0x170] sm:$0xff]
  %v796 = vld [vmem:[%s4 + $0x178] sm:$0xff]
  %v797 = vld [vmem:[%s4 + $0x180] sm:$0xff]
  %v798 = vld [vmem:[%s4 + $0x188] sm:$0xff]
  %v799 = vld [vmem:[%s4 + $0x190] sm:$0xff]
  %v800 = vld [vmem:[%s4 + $0x198] sm:$0xff]
  %v801 = vld [vmem:[%s4 + $0x1a0] sm:$0xff]
  %v802 = vld [vmem:[%s4 + $0x1a8] sm:$0xff]
  %v803 = vld [vmem:[%s4 + $0x1b0] sm:$0xff]
  %v804 = vld [vmem:[%s4 + $0x1b8] sm:$0xff]
  %v805 = vld [vmem:[%s4 + $0x1c0] sm:$0xff]
  %v806 = vld [vmem:[%s4 + $0x1c8] sm:$0xff]
  %v807 = vld [vmem:[%s4 + $0x1d0] sm:$0xff]
  %v808 = vld [vmem:[%s4 + $0x1d8] sm:$0xff]
  %v809 = vld [vmem:[%s4 + $0x1e0] sm:$0xff]
  %v810 = vld [vmem:[%s4 + $0x1e8] sm:$0xff]
  %v811 = vld [vmem:[%s4 + $0x1f0] sm:$0xff]
  %v812 = vld [vmem:[%s4 + $0x1f8] sm:$0xff]
  %v813 = vld [vmem:[%s4 + $0x200] sm:$0xff]
  %v814 = vld [vmem:[%s4 + $0x208] sm:$0xff]
  %v815 = vld [vmem:[%s4 + $0x210] sm:$0xff]
  %v816 = vld [vmem:[%s4 + $0x218] sm:$0xff]
  %v817 = vld [vmem:[%s4 + $0x220] sm:$0xff]
  %v818 = vld [vmem:[%s4 + $0x228] sm:$0xff]
  %v819 = vld [vmem:[%s4 + $0x230] sm:$0xff]
  %v820 = vld [vmem:[%s4 + $0x238] sm:$0xff]
  %v821 = vld [vmem:[%s4 + $0x240] sm:$0xff]
  %v822 = vld [vmem:[%s4 + $0x248] sm:$0xff]
  %v823 = vld [vmem:[%s4 + $0x250] sm:$0xff]
  %v824 = vld [vmem:[%s4 + $0x258] sm:$0xff]
  %v825 = vld [vmem:[%s4 + $0x260] sm:$0xff]
  %v826 = vld [vmem:[%s4 + $0x268] sm:$0xff]
  %v827 = vld [vmem:[%s4 + $0x270] sm:$0xff]
  %v828 = vld [vmem:[%s4 + $0x278] sm:$0xff]
  %v829 = vld [vmem:[%s4 + $0x280] sm:$0xff]
  %v830 = vld [vmem:[%s4 + $0x288] sm:$0xff]
  %v831 = vld [vmem:[%s4 + $0x290] sm:$0xff]
  %v832 = vld [vmem:[%s4 + $0x298] sm:$0xff]
  %v833 = vld [vmem:[%s4 + $0x2a0] sm:$0xff]
  %v834 = vld [vmem:[%s4 + $0x2a8] sm:$0xff]
  %v835 = vld [vmem:[%s4 + $0x2b0] sm:$0xff]
  %v836 = vld [vmem:[%s4 + $0x2b8] sm:$0xff]
  %v837 = vld [vmem:[%s4 + $0x2c0] sm:$0xff]
  %v838 = vld [vmem:[%s4 + $0x2c8] sm:$0xff]
  %v839 = vld [vmem:[%s4 + $0x2d0] sm:$0xff]
  %v840 = vld [vmem:[%s4 + $0x2d8] sm:$0xff]
  %v841 = vld [vmem:[%s4 + $0x2e0] sm:$0xff]
  %v842 = vld [vmem:[%s4 + $0x2e8] sm:$0xff]
  %v843 = vld [vmem:[%s4 + $0x2f0] sm:$0xff]
  %v844 = vld [vmem:[%s4 + $0x2f8] sm:$0xff]
  %v845 = vld [vmem:[%s4 + $0x300] sm:$0xff]
  %v846 = vld [vmem:[%s4 + $0x308] sm:$0xff]
  %v847 = vld [vmem:[%s4 + $0x310] sm:$0xff]
  %v848 = vld [vmem:[%s4 + $0x318] sm:$0xff]
  %v849 = vld [vmem:[%s4 + $0x320] sm:$0xff]
  %v850 = vld [vmem:[%s4 + $0x328] sm:$0xff]
  %v851 = vld [vmem:[%s4 + $0x330] sm:$0xff]
  %v852 = vld [vmem:[%s4 + $0x338] sm:$0xff]
  %v853 = vld [vmem:[%s4 + $0x340] sm:$0xff]
  %v854 = vld [vmem:[%s4 + $0x348] sm:$0xff]
  %v855 = vld [vmem:[%s4 + $0x350] sm:$0xff]
  %v856 = vld [vmem:[%s4 + $0x358] sm:$0xff]
  %v857 = vld [vmem:[%s4 + $0x360] sm:$0xff]
  %v858 = vld [vmem:[%s4 + $0x368] sm:$0xff]
  %v859 = vld [vmem:[%s4 + $0x370] sm:$0xff]
  %v860 = vld [vmem:[%s4 + $0x378] sm:$0xff]
  %v861 = vld [vmem:[%s4 + $0x380] sm:$0xff]
  %v862 = vld [vmem:[%s4 + $0x388] sm:$0xff]
  %v863 = vld [vmem:[%s4 + $0x390] sm:$0xff]
  %v864 = vld [vmem:[%s4 + $0x398] sm:$0xff]
  %v865 = vld [vmem:[%s4 + $0x3a0] sm:$0xff]
  %v866 = vld [vmem:[%s4 + $0x3a8] sm:$0xff]
  %v867 = vld [vmem:[%s4 + $0x3b0] sm:$0xff]
  %v868 = vld [vmem:[%s4 + $0x3b8] sm:$0xff]
  %v869 = vld [vmem:[%s4 + $0x3c0] sm:$0xff]
  %v870 = vld [vmem:[%s4 + $0x3c8] sm:$0xff]
  %v871 = vld [vmem:[%s4 + $0x3d0] sm:$0xff]
  %v872 = vld [vmem:[%s4 + $0x3d8] sm:$0xff]
  %v873 = vld [vmem:[%s4 + $0x3e0] sm:$0xff]
  %v874 = vld [vmem:[%s4 + $0x3e8] sm:$0xff]
  %v875 = vld [vmem:[%s4 + $0x3f0] sm:$0xff]
  %v876 = vld [vmem:[%s4 + $0x3f8] sm:$0xff]
  %v877 = vunpack.c.l.bf16 %v749
  %v878 = vunpack.c.h.bf16 %v749
  %v879 = vunpack.c.l.bf16 %v750
  %v880 = vunpack.c.h.bf16 %v750
  %v881 = vunpack.c.l.bf16 %v751
  %v882 = vunpack.c.h.bf16 %v751
  %v883 = vunpack.c.l.bf16 %v752
  %v884 = vunpack.c.h.bf16 %v752
  %v885 = vunpack.c.l.bf16 %v753
  %v886 = vunpack.c.h.bf16 %v753
  %v887 = vunpack.c.l.bf16 %v754
  %v888 = vunpack.c.h.bf16 %v754
  %v889 = vunpack.c.l.bf16 %v755
  %v890 = vunpack.c.h.bf16 %v755
  %v891 = vunpack.c.l.bf16 %v756
  %v892 = vunpack.c.h.bf16 %v756
  %v893 = vunpack.c.l.bf16 %v757
  %v894 = vunpack.c.h.bf16 %v757
  %v895 = vunpack.c.l.bf16 %v758
  %v896 = vunpack.c.h.bf16 %v758
  %v897 = vunpack.c.l.bf16 %v759
  %v898 = vunpack.c.h.bf16 %v759
  %v899 = vunpack.c.l.bf16 %v760
  %v900 = vunpack.c.h.bf16 %v760
  %v901 = vunpack.c.l.bf16 %v761
  %v902 = vunpack.c.h.bf16 %v761
  %v903 = vunpack.c.l.bf16 %v762
  %v904 = vunpack.c.h.bf16 %v762
  %v905 = vunpack.c.l.bf16 %v763
  %v906 = vunpack.c.h.bf16 %v763
  %v907 = vunpack.c.l.bf16 %v764
  %v908 = vunpack.c.h.bf16 %v764
  %v909 = vunpack.c.l.bf16 %v765
  %v910 = vunpack.c.h.bf16 %v765
  %v911 = vunpack.c.l.bf16 %v766
  %v912 = vunpack.c.h.bf16 %v766
  %v913 = vunpack.c.l.bf16 %v767
  %v914 = vunpack.c.h.bf16 %v767
  %v915 = vunpack.c.l.bf16 %v768
  %v916 = vunpack.c.h.bf16 %v768
  %v917 = vunpack.c.l.bf16 %v769
  %v918 = vunpack.c.h.bf16 %v769
  %v919 = vunpack.c.l.bf16 %v770
  %v920 = vunpack.c.h.bf16 %v770
  %v921 = vunpack.c.l.bf16 %v771
  %v922 = vunpack.c.h.bf16 %v771
  %v923 = vunpack.c.l.bf16 %v772
  %v924 = vunpack.c.h.bf16 %v772
  %v925 = vunpack.c.l.bf16 %v773
  %v926 = vunpack.c.h.bf16 %v773
  %v927 = vunpack.c.l.bf16 %v774
  %v928 = vunpack.c.h.bf16 %v774
  %v929 = vunpack.c.l.bf16 %v775
  %v930 = vunpack.c.h.bf16 %v775
  %v931 = vunpack.c.l.bf16 %v776
  %v932 = vunpack.c.h.bf16 %v776
  %v933 = vunpack.c.l.bf16 %v777
  %v934 = vunpack.c.h.bf16 %v777
  %v935 = vunpack.c.l.bf16 %v778
  %v936 = vunpack.c.h.bf16 %v778
  %v937 = vunpack.c.l.bf16 %v779
  %v938 = vunpack.c.h.bf16 %v779
  %v939 = vunpack.c.l.bf16 %v780
  %v940 = vunpack.c.h.bf16 %v780
  %v941 = vunpack.c.l.bf16 %v781
  %v942 = vunpack.c.h.bf16 %v781
  %v943 = vunpack.c.l.bf16 %v782
  %v944 = vunpack.c.h.bf16 %v782
  %v945 = vunpack.c.l.bf16 %v783
  %v946 = vunpack.c.h.bf16 %v783
  %v947 = vunpack.c.l.bf16 %v784
  %v948 = vunpack.c.h.bf16 %v784
  %v949 = vunpack.c.l.bf16 %v785
  %v950 = vunpack.c.h.bf16 %v785
  %v951 = vunpack.c.l.bf16 %v786
  %v952 = vunpack.c.h.bf16 %v786
  %v953 = vunpack.c.l.bf16 %v787
  %v954 = vunpack.c.h.bf16 %v787
  %v955 = vunpack.c.l.bf16 %v788
  %v956 = vunpack.c.h.bf16 %v788
  %v957 = vunpack.c.l.bf16 %v789
  %v958 = vunpack.c.h.bf16 %v789
  %v959 = vunpack.c.l.bf16 %v790
  %v960 = vunpack.c.h.bf16 %v790
  %v961 = vunpack.c.l.bf16 %v791
  %v962 = vunpack.c.h.bf16 %v791
  %v963 = vunpack.c.l.bf16 %v792
  %v964 = vunpack.c.h.bf16 %v792
  %v965 = vunpack.c.l.bf16 %v793
  %v966 = vunpack.c.h.bf16 %v793
  %v967 = vunpack.c.l.bf16 %v794
  %v968 = vunpack.c.h.bf16 %v794
  %v969 = vunpack.c.l.bf16 %v795
  %v970 = vunpack.c.h.bf16 %v795
  %v971 = vunpack.c.l.bf16 %v796
  %v972 = vunpack.c.h.bf16 %v796
  %v973 = vunpack.c.l.bf16 %v797
  %v974 = vunpack.c.h.bf16 %v797
  %v975 = vunpack.c.l.bf16 %v798
  %v976 = vunpack.c.h.bf16 %v798
  %v977 = vunpack.c.l.bf16 %v799
  %v978 = vunpack.c.h.bf16 %v799
  %v979 = vunpack.c.l.bf16 %v800
  %v980 = vunpack.c.h.bf16 %v800
  %v981 = vunpack.c.l.bf16 %v801
  %v982 = vunpack.c.h.bf16 %v801
  %v983 = vunpack.c.l.bf16 %v802
  %v984 = vunpack.c.h.bf16 %v802
  %v985 = vunpack.c.l.bf16 %v803
  %v986 = vunpack.c.h.bf16 %v803
  %v987 = vunpack.c.l.bf16 %v804
  %v988 = vunpack.c.h.bf16 %v804
  %v989 = vunpack.c.l.bf16 %v805
  %v990 = vunpack.c.h.bf16 %v805
  %v991 = vunpack.c.l.bf16 %v806
  %v992 = vunpack.c.h.bf16 %v806
  %v993 = vunpack.c.l.bf16 %v807
  %v994 = vunpack.c.h.bf16 %v807
  %v995 = vunpack.c.l.bf16 %v808
  %v996 = vunpack.c.h.bf16 %v808
  %v997 = vunpack.c.l.bf16 %v809
  %v998 = vunpack.c.h.bf16 %v809
  %v999 = vunpack.c.l.bf16 %v810
  %v1000 = vunpack.c.h.bf16 %v810
  %v1001 = vunpack.c.l.bf16 %v811
  %v1002 = vunpack.c.h.bf16 %v811
  %v1003 = vunpack.c.l.bf16 %v812
  %v1004 = vunpack.c.h.bf16 %v812
  %v1005 = vunpack.c.l.bf16 %v813
  %v1006 = vunpack.c.h.bf16 %v813
  %v1007 = vunpack.c.l.bf16 %v814
  %v1008 = vunpack.c.h.bf16 %v814
  %v1009 = vunpack.c.l.bf16 %v815
  %v1010 = vunpack.c.h.bf16 %v815
  %v1011 = vunpack.c.l.bf16 %v816
  %v1012 = vunpack.c.h.bf16 %v816
  %v1013 = vunpack.c.l.bf16 %v817
  %v1014 = vunpack.c.h.bf16 %v817
  %v1015 = vunpack.c.l.bf16 %v818
  %v1016 = vunpack.c.h.bf16 %v818
  %v1017 = vunpack.c.l.bf16 %v819
  %v1018 = vunpack.c.h.bf16 %v819
  %v1019 = vunpack.c.l.bf16 %v820
  %v1020 = vunpack.c.h.bf16 %v820
  %v1021 = vunpack.c.l.bf16 %v821
  %v1022 = vunpack.c.h.bf16 %v821
  %v1023 = vunpack.c.l.bf16 %v822
  %v1024 = vunpack.c.h.bf16 %v822
  %v1025 = vunpack.c.l.bf16 %v823
  %v1026 = vunpack.c.h.bf16 %v823
  %v1027 = vunpack.c.l.bf16 %v824
  %v1028 = vunpack.c.h.bf16 %v824
  %v1029 = vunpack.c.l.bf16 %v825
  %v1030 = vunpack.c.h.bf16 %v825
  %v1031 = vunpack.c.l.bf16 %v826
  %v1032 = vunpack.c.h.bf16 %v826
  %v1033 = vunpack.c.l.bf16 %v827
  %v1034 = vunpack.c.h.bf16 %v827
  %v1035 = vunpack.c.l.bf16 %v828
  %v1036 = vunpack.c.h.bf16 %v828
  %v1037 = vunpack.c.l.bf16 %v829
  %v1038 = vunpack.c.h.bf16 %v829
  %v1039 = vunpack.c.l.bf16 %v830
  %v1040 = vunpack.c.h.bf16 %v830
  %v1041 = vunpack.c.l.bf16 %v831
  %v1042 = vunpack.c.h.bf16 %v831
  %v1043 = vunpack.c.l.bf16 %v832
  %v1044 = vunpack.c.h.bf16 %v832
  %v1045 = vunpack.c.l.bf16 %v833
  %v1046 = vunpack.c.h.bf16 %v833
  %v1047 = vunpack.c.l.bf16 %v834
  %v1048 = vunpack.c.h.bf16 %v834
  %v1049 = vunpack.c.l.bf16 %v835
  %v1050 = vunpack.c.h.bf16 %v835
  %v1051 = vunpack.c.l.bf16 %v836
  %v1052 = vunpack.c.h.bf16 %v836
  %v1053 = vunpack.c.l.bf16 %v837
  %v1054 = vunpack.c.h.bf16 %v837
  %v1055 = vunpack.c.l.bf16 %v838
  %v1056 = vunpack.c.h.bf16 %v838
  %v1057 = vunpack.c.l.bf16 %v839
  %v1058 = vunpack.c.h.bf16 %v839
  %v1059 = vunpack.c.l.bf16 %v840
  %v1060 = vunpack.c.h.bf16 %v840
  %v1061 = vunpack.c.l.bf16 %v841
  %v1062 = vunpack.c.h.bf16 %v841
  %v1063 = vunpack.c.l.bf16 %v842
  %v1064 = vunpack.c.h.bf16 %v842
  %v1065 = vunpack.c.l.bf16 %v843
  %v1066 = vunpack.c.h.bf16 %v843
  %v1067 = vunpack.c.l.bf16 %v844
  %v1068 = vunpack.c.h.bf16 %v844
  %v1069 = vunpack.c.l.bf16 %v845
  %v1070 = vunpack.c.h.bf16 %v845
  %v1071 = vunpack.c.l.bf16 %v846
  %v1072 = vunpack.c.h.bf16 %v846
  %v1073 = vunpack.c.l.bf16 %v847
  %v1074 = vunpack.c.h.bf16 %v847
  %v1075 = vunpack.c.l.bf16 %v848
  %v1076 = vunpack.c.h.bf16 %v848
  %v1077 = vunpack.c.l.bf16 %v849
  %v1078 = vunpack.c.h.bf16 %v849
  %v1079 = vunpack.c.l.bf16 %v850
  %v1080 = vunpack.c.h.bf16 %v850
  %v1081 = vunpack.c.l.bf16 %v851
  %v1082 = vunpack.c.h.bf16 %v851
  %v1083 = vunpack.c.l.bf16 %v852
  %v1084 = vunpack.c.h.bf16 %v852
  %v1085 = vunpack.c.l.bf16 %v853
  %v1086 = vunpack.c.h.bf16 %v853
  %v1087 = vunpack.c.l.bf16 %v854
  %v1088 = vunpack.c.h.bf16 %v854
  %v1089 = vunpack.c.l.bf16 %v855
  %v1090 = vunpack.c.h.bf16 %v855
  %v1091 = vunpack.c.l.bf16 %v856
  %v1092 = vunpack.c.h.bf16 %v856
  %v1093 = vunpack.c.l.bf16 %v857
  %v1094 = vunpack.c.h.bf16 %v857
  %v1095 = vunpack.c.l.bf16 %v858
  %v1096 = vunpack.c.h.bf16 %v858
  %v1097 = vunpack.c.l.bf16 %v859
  %v1098 = vunpack.c.h.bf16 %v859
  %v1099 = vunpack.c.l.bf16 %v860
  %v1100 = vunpack.c.h.bf16 %v860
  %v1101 = vunpack.c.l.bf16 %v861
  %v1102 = vunpack.c.h.bf16 %v861
  %v1103 = vunpack.c.l.bf16 %v862
  %v1104 = vunpack.c.h.bf16 %v862
  %v1105 = vunpack.c.l.bf16 %v863
  %v1106 = vunpack.c.h.bf16 %v863
  %v1107 = vunpack.c.l.bf16 %v864
  %v1108 = vunpack.c.h.bf16 %v864
  %v1109 = vunpack.c.l.bf16 %v865
  %v1110 = vunpack.c.h.bf16 %v865
  %v1111 = vunpack.c.l.bf16 %v866
  %v1112 = vunpack.c.h.bf16 %v866
  %v1113 = vunpack.c.l.bf16 %v867
  %v1114 = vunpack.c.h.bf16 %v867
  %v1115 = vunpack.c.l.bf16 %v868
  %v1116 = vunpack.c.h.bf16 %v868
  %v1117 = vunpack.c.l.bf16 %v869
  %v1118 = vunpack.c.h.bf16 %v869
  %v1119 = vunpack.c.l.bf16 %v870
  %v1120 = vunpack.c.h.bf16 %v870
  %v1121 = vunpack.c.l.bf16 %v871
  %v1122 = vunpack.c.h.bf16 %v871
  %v1123 = vunpack.c.l.bf16 %v872
  %v1124 = vunpack.c.h.bf16 %v872
  %v1125 = vunpack.c.l.bf16 %v873
  %v1126 = vunpack.c.h.bf16 %v873
  %v1127 = vunpack.c.l.bf16 %v874
  %v1128 = vunpack.c.h.bf16 %v874
  %v1129 = vunpack.c.l.bf16 %v875
  %v1130 = vunpack.c.h.bf16 %v875
  %v1131 = vunpack.c.l.bf16 %v876
  %v1132 = vunpack.c.h.bf16 %v876
  %s1133 = scalar_lea.vmem %s7, 3
  %v1134 = vld [vmem:[%s1133] ss:$8 sm:$0xf]
  %v1135 = vld [vmem:[%s1133] ss:$8 sm:$0xf0]
  %v1136 = vor.u32 %v1134, %v1135
  %v1138 = vlaneseq
  %v1139 = vshrl.u32 %v1138, 7
  %v1140 = vsub.s32 0, %v1139
  %v1141 = vrot.slane %v1136, %v1140
  %v1142 = vlaneseq
  %v1143 = vshrl.u32 %v1142, 7
  %v1144 = vsub.s32 1, %v1143
  %v1145 = vrot.slane %v1136, %v1144
  %v1146 = vlaneseq
  %v1147 = vshrl.u32 %v1146, 7
  %v1148 = vsub.s32 2, %v1147
  %v1149 = vrot.slane %v1136, %v1148
  %v1150 = vlaneseq
  %v1151 = vshrl.u32 %v1150, 7
  %v1152 = vsub.s32 3, %v1151
  %v1153 = vrot.slane %v1136, %v1152
  %v1154 = vlaneseq
  %v1155 = vshrl.u32 %v1154, 7
  %v1156 = vsub.s32 4, %v1155
  %v1157 = vrot.slane %v1136, %v1156
  %v1158 = vlaneseq
  %v1159 = vshrl.u32 %v1158, 7
  %v1160 = vsub.s32 5, %v1159
  %v1161 = vrot.slane %v1136, %v1160
  %v1162 = vlaneseq
  %v1163 = vshrl.u32 %v1162, 7
  %v1164 = vsub.s32 6, %v1163
  %v1165 = vrot.slane %v1136, %v1164
  %v1166 = vlaneseq
  %v1167 = vshrl.u32 %v1166, 7
  %v1168 = vsub.s32 7, %v1167
  %v1169 = vrot.slane %v1136, %v1168
  %1178 = vmatprep.subr.mxu0 %v878
  %1179 = vmatpush1.msra.mxu0 %v877
  %1180 = vmatprep.subr.mxu0 %v886
  %1181 = vmatpush1.msra.mxu0 %v885
  %1182 = vmatprep.subr.mxu0 %v894
  %1183 = vmatpush1.msra.mxu0 %v893
  %1184 = vmatprep.subr.mxu0 %v902
  %1185 = vmatpush1.msra.mxu0 %v901
  %1186 = vmatprep.subr.mxu0 %v910
  %1187 = vmatpush1.msra.mxu0 %v909
  %1188 = vmatprep.subr.mxu0 %v918
  %1189 = vmatpush1.msra.mxu0 %v917
  %1190 = vmatprep.subr.mxu0 %v926
  %1191 = vmatpush1.msra.mxu0 %v925
  %1192 = vmatprep.subr.mxu0 %v934
  %1193 = vmatpush1.msra.mxu0 %v933
  %1194 = vmatprep.subr.mxu0 %v942
  %1195 = vmatpush1.msra.mxu0 %v941
  %1196 = vmatprep.subr.mxu0 %v950
  %1197 = vmatpush1.msra.mxu0 %v949
  %1198 = vmatprep.subr.mxu0 %v958
  %1199 = vmatpush1.msra.mxu0 %v957
  %1200 = vmatprep.subr.mxu0 %v966
  %1201 = vmatpush1.msra.mxu0 %v965
  %1202 = vmatprep.subr.mxu0 %v974
  %1203 = vmatpush1.msra.mxu0 %v973
  %1204 = vmatprep.subr.mxu0 %v982
  %1205 = vmatpush1.msra.mxu0 %v981
  %1206 = vmatprep.subr.mxu0 %v990
  %1207 = vmatpush1.msra.mxu0 %v989
  %1208 = vmatprep.subr.mxu0 %v998
  %1209 = vmatpush1.msra.mxu0 %v997
  %1210 = vmatprep.subr.mxu0 %v1006
  %1211 = vmatpush1.msra.mxu0 %v1005
  %1212 = vmatprep.subr.mxu0 %v1014
  %1213 = vmatpush1.msra.mxu0 %v1013
  %1214 = vmatprep.subr.mxu0 %v1022
  %1215 = vmatpush1.msra.mxu0 %v1021
  %1216 = vmatprep.subr.mxu0 %v1030
  %1217 = vmatpush1.msra.mxu0 %v1029
  %1218 = vmatprep.subr.mxu0 %v1038
  %1219 = vmatpush1.msra.mxu0 %v1037
  %1220 = vmatprep.subr.mxu0 %v1046
  %1221 = vmatpush1.msra.mxu0 %v1045
  %1222 = vmatprep.subr.mxu0 %v1054
  %1223 = vmatpush1.msra.mxu0 %v1053
  %1224 = vmatprep.subr.mxu0 %v1062
  %1225 = vmatpush1.msra.mxu0 %v1061
  %1226 = vmatprep.subr.mxu0 %v1070
  %1227 = vmatpush1.msra.mxu0 %v1069
  %1228 = vmatprep.subr.mxu0 %v1078
  %1229 = vmatpush1.msra.mxu0 %v1077
  %1230 = vmatprep.subr.mxu0 %v1086
  %1231 = vmatpush1.msra.mxu0 %v1085
  %1232 = vmatprep.subr.mxu0 %v1094
  %1233 = vmatpush1.msra.mxu0 %v1093
  %1234 = vmatprep.subr.mxu0 %v1102
  %1235 = vmatpush1.msra.mxu0 %v1101
  %1236 = vmatprep.subr.mxu0 %v1110
  %1237 = vmatpush1.msra.mxu0 %v1109
  %1238 = vmatprep.subr.mxu0 %v1118
  %1239 = vmatpush1.msra.mxu0 %v1117
  %1240 = vmatprep.subr.mxu0 %v1126
  %1241 = vmatpush1.msra.mxu0 %v1125
  %1242 = vmatprep.mubr.f32.mxu0 %v748
  %1243 = vmatmul.mubr.f32.gmra.mrb[0].mxu0 %v747
  %v1244 = vpop.f32.mrb[0].mxu0
  %v1245 = vadd.f32 %v1141, %v1244
  %v1246 = vpop.f32.mrb[0].mxu0
  %v1247 = vadd.f32 %v1145, %v1246
  %1248 = vdwg.mxu0
  %1249 = vmatprep.subr.mxu0 %v880
  %1250 = vmatpush1.msra.mxu0 %v879
  %1251 = vmatprep.subr.mxu0 %v888
  %1252 = vmatpush1.msra.mxu0 %v887
  %1253 = vmatprep.subr.mxu0 %v896
  %1254 = vmatpush1.msra.mxu0 %v895
  %1255 = vmatprep.subr.mxu0 %v904
  %1256 = vmatpush1.msra.mxu0 %v903
  %1257 = vmatprep.subr.mxu0 %v912
  %1258 = vmatpush1.msra.mxu0 %v911
  %1259 = vmatprep.subr.mxu0 %v920
  %1260 = vmatpush1.msra.mxu0 %v919
  %1261 = vmatprep.subr.mxu0 %v928
  %1262 = vmatpush1.msra.mxu0 %v927
  %1263 = vmatprep.subr.mxu0 %v936
  %1264 = vmatpush1.msra.mxu0 %v935
  %1265 = vmatprep.subr.mxu0 %v944
  %1266 = vmatpush1.msra.mxu0 %v943
  %1267 = vmatprep.subr.mxu0 %v952
  %1268 = vmatpush1.msra.mxu0 %v951
  %1269 = vmatprep.subr.mxu0 %v960
  %1270 = vmatpush1.msra.mxu0 %v959
  %1271 = vmatprep.subr.mxu0 %v968
  %1272 = vmatpush1.msra.mxu0 %v967
  %1273 = vmatprep.subr.mxu0 %v976
  %1274 = vmatpush1.msra.mxu0 %v975
  %1275 = vmatprep.subr.mxu0 %v984
  %1276 = vmatpush1.msra.mxu0 %v983
  %1277 = vmatprep.subr.mxu0 %v992
  %1278 = vmatpush1.msra.mxu0 %v991
  %1279 = vmatprep.subr.mxu0 %v1000
  %1280 = vmatpush1.msra.mxu0 %v999
  %1281 = vmatprep.subr.mxu0 %v1008
  %1282 = vmatpush1.msra.mxu0 %v1007
  %1283 = vmatprep.subr.mxu0 %v1016
  %1284 = vmatpush1.msra.mxu0 %v1015
  %1285 = vmatprep.subr.mxu0 %v1024
  %1286 = vmatpush1.msra.mxu0 %v1023
  %1287 = vmatprep.subr.mxu0 %v1032
  %1288 = vmatpush1.msra.mxu0 %v1031
  %1289 = vmatprep.subr.mxu0 %v1040
  %1290 = vmatpush1.msra.mxu0 %v1039
  %1291 = vmatprep.subr.mxu0 %v1048
  %1292 = vmatpush1.msra.mxu0 %v1047
  %1293 = vmatprep.subr.mxu0 %v1056
  %1294 = vmatpush1.msra.mxu0 %v1055
  %1295 = vmatprep.subr.mxu0 %v1064
  %1296 = vmatpush1.msra.mxu0 %v1063
  %1297 = vmatprep.subr.mxu0 %v1072
  %1298 = vmatpush1.msra.mxu0 %v1071
  %1299 = vmatprep.subr.mxu0 %v1080
  %1300 = vmatpush1.msra.mxu0 %v1079
  %1301 = vmatprep.subr.mxu0 %v1088
  %1302 = vmatpush1.msra.mxu0 %v1087
  %1303 = vmatprep.subr.mxu0 %v1096
  %1304 = vmatpush1.msra.mxu0 %v1095
  %1305 = vmatprep.subr.mxu0 %v1104
  %1306 = vmatpush1.msra.mxu0 %v1103
  %1307 = vmatprep.subr.mxu0 %v1112
  %1308 = vmatpush1.msra.mxu0 %v1111
  %1309 = vmatprep.subr.mxu0 %v1120
  %1310 = vmatpush1.msra.mxu0 %v1119
  %1311 = vmatprep.subr.mxu0 %v1128
  %1312 = vmatpush1.msra.mxu0 %v1127
  %1313 = vmatprep.mubr.f32.mxu0 %v748
  %1314 = vmatmul.mubr.f32.gmra.mrb[0].mxu0 %v747
  %v1315 = vpop.f32.mrb[0].mxu0
  %v1316 = vadd.f32 %v1149, %v1315
  %v1317 = vpop.f32.mrb[0].mxu0
  %v1318 = vadd.f32 %v1153, %v1317
  %1319 = vdwg.mxu0
  %1320 = vmatprep.subr.mxu0 %v882
  %1321 = vmatpush1.msra.mxu0 %v881
  %1322 = vmatprep.subr.mxu0 %v890
  %1323 = vmatpush1.msra.mxu0 %v889
  %1324 = vmatprep.subr.mxu0 %v898
  %1325 = vmatpush1.msra.mxu0 %v897
  %1326 = vmatprep.subr.mxu0 %v906
  %1327 = vmatpush1.msra.mxu0 %v905
  %1328 = vmatprep.subr.mxu0 %v914
  %1329 = vmatpush1.msra.mxu0 %v913
  %1330 = vmatprep.subr.mxu0 %v922
  %1331 = vmatpush1.msra.mxu0 %v921
  %1332 = vmatprep.subr.mxu0 %v930
  %1333 = vmatpush1.msra.mxu0 %v929
  %1334 = vmatprep.subr.mxu0 %v938
  %1335 = vmatpush1.msra.mxu0 %v937
  %1336 = vmatprep.subr.mxu0 %v946
  %1337 = vmatpush1.msra.mxu0 %v945
  %1338 = vmatprep.subr.mxu0 %v954
  %1339 = vmatpush1.msra.mxu0 %v953
  %1340 = vmatprep.subr.mxu0 %v962
  %1341 = vmatpush1.msra.mxu0 %v961
  %1342 = vmatprep.subr.mxu0 %v970
  %1343 = vmatpush1.msra.mxu0 %v969
  %1344 = vmatprep.subr.mxu0 %v978
  %1345 = vmatpush1.msra.mxu0 %v977
  %1346 = vmatprep.subr.mxu0 %v986
  %1347 = vmatpush1.msra.mxu0 %v985
  %1348 = vmatprep.subr.mxu0 %v994
  %1349 = vmatpush1.msra.mxu0 %v993
  %1350 = vmatprep.subr.mxu0 %v1002
  %1351 = vmatpush1.msra.mxu0 %v1001
  %1352 = vmatprep.subr.mxu0 %v1010
  %1353 = vmatpush1.msra.mxu0 %v1009
  %1354 = vmatprep.subr.mxu0 %v1018
  %1355 = vmatpush1.msra.mxu0 %v1017
  %1356 = vmatprep.subr.mxu0 %v1026
  %1357 = vmatpush1.msra.mxu0 %v1025
  %1358 = vmatprep.subr.mxu0 %v1034
  %1359 = vmatpush1.msra.mxu0 %v1033
  %1360 = vmatprep.subr.mxu0 %v1042
  %1361 = vmatpush1.msra.mxu0 %v1041
  %1362 = vmatprep.subr.mxu0 %v1050
  %1363 = vmatpush1.msra.mxu0 %v1049
  %1364 = vmatprep.subr.mxu0 %v1058
  %1365 = vmatpush1.msra.mxu0 %v1057
  %1366 = vmatprep.subr.mxu0 %v1066
  %1367 = vmatpush1.msra.mxu0 %v1065
  %1368 = vmatprep.subr.mxu0 %v1074
  %1369 = vmatpush1.msra.mxu0 %v1073
  %1370 = vmatprep.subr.mxu0 %v1082
  %1371 = vmatpush1.msra.mxu0 %v1081
  %1372 = vmatprep.subr.mxu0 %v1090
  %1373 = vmatpush1.msra.mxu0 %v1089
  %1374 = vmatprep.subr.mxu0 %v1098
  %1375 = vmatpush1.msra.mxu0 %v1097
  %1376 = vmatprep.subr.mxu0 %v1106
  %1377 = vmatpush1.msra.mxu0 %v1105
  %1378 = vmatprep.subr.mxu0 %v1114
  %1379 = vmatpush1.msra.mxu0 %v1113
  %1380 = vmatprep.subr.mxu0 %v1122
  %1381 = vmatpush1.msra.mxu0 %v1121
  %1382 = vmatprep.subr.mxu0 %v1130
  %1383 = vmatpush1.msra.mxu0 %v1129
  %1384 = vmatprep.mubr.f32.mxu0 %v748
  %1385 = vmatmul.mubr.f32.gmra.mrb[0].mxu0 %v747
  %v1386 = vpop.f32.mrb[0].mxu0
  %v1387 = vadd.f32 %v1157, %v1386
  %v1388 = vpop.f32.mrb[0].mxu0
  %v1389 = vadd.f32 %v1161, %v1388
  %1390 = vdwg.mxu0
  %1391 = vmatprep.subr.mxu0 %v884
  %1392 = vmatpush1.msra.mxu0 %v883
  %1393 = vmatprep.subr.mxu0 %v892
  %1394 = vmatpush1.msra.mxu0 %v891
  %1395 = vmatprep.subr.mxu0 %v900
  %1396 = vmatpush1.msra.mxu0 %v899
  %1397 = vmatprep.subr.mxu0 %v908
  %1398 = vmatpush1.msra.mxu0 %v907
  %1399 = vmatprep.subr.mxu0 %v916
  %1400 = vmatpush1.msra.mxu0 %v915
  %1401 = vmatprep.subr.mxu0 %v924
  %1402 = vmatpush1.msra.mxu0 %v923
  %1403 = vmatprep.subr.mxu0 %v932
  %1404 = vmatpush1.msra.mxu0 %v931
  %1405 = vmatprep.subr.mxu0 %v940
  %1406 = vmatpush1.msra.mxu0 %v939
  %1407 = vmatprep.subr.mxu0 %v948
  %1408 = vmatpush1.msra.mxu0 %v947
  %1409 = vmatprep.subr.mxu0 %v956
  %1410 = vmatpush1.msra.mxu0 %v955
  %1411 = vmatprep.subr.mxu0 %v964
  %1412 = vmatpush1.msra.mxu0 %v963
  %1413 = vmatprep.subr.mxu0 %v972
  %1414 = vmatpush1.msra.mxu0 %v971
  %1415 = vmatprep.subr.mxu0 %v980
  %1416 = vmatpush1.msra.mxu0 %v979
  %1417 = vmatprep.subr.mxu0 %v988
  %1418 = vmatpush1.msra.mxu0 %v987
  %1419 = vmatprep.subr.mxu0 %v996
  %1420 = vmatpush1.msra.mxu0 %v995
  %1421 = vmatprep.subr.mxu0 %v1004
  %1422 = vmatpush1.msra.mxu0 %v1003
  %1423 = vmatprep.subr.mxu0 %v1012
  %1424 = vmatpush1.msra.mxu0 %v1011
  %1425 = vmatprep.subr.mxu0 %v1020
  %1426 = vmatpush1.msra.mxu0 %v1019
  %1427 = vmatprep.subr.mxu0 %v1028
  %1428 = vmatpush1.msra.mxu0 %v1027
  %1429 = vmatprep.subr.mxu0 %v1036
  %1430 = vmatpush1.msra.mxu0 %v1035
  %1431 = vmatprep.subr.mxu0 %v1044
  %1432 = vmatpush1.msra.mxu0 %v1043
  %1433 = vmatprep.subr.mxu0 %v1052
  %1434 = vmatpush1.msra.mxu0 %v1051
  %1435 = vmatprep.subr.mxu0 %v1060
  %1436 = vmatpush1.msra.mxu0 %v1059
  %1437 = vmatprep.subr.mxu0 %v1068
  %1438 = vmatpush1.msra.mxu0 %v1067
  %1439 = vmatprep.subr.mxu0 %v1076
  %1440 = vmatpush1.msra.mxu0 %v1075
  %1441 = vmatprep.subr.mxu0 %v1084
  %1442 = vmatpush1.msra.mxu0 %v1083
  %1443 = vmatprep.subr.mxu0 %v1092
  %1444 = vmatpush1.msra.mxu0 %v1091
  %1445 = vmatprep.subr.mxu0 %v1100
  %1446 = vmatpush1.msra.mxu0 %v1099
  %1447 = vmatprep.subr.mxu0 %v1108
  %1448 = vmatpush1.msra.mxu0 %v1107
  %1449 = vmatprep.subr.mxu0 %v1116
  %1450 = vmatpush1.msra.mxu0 %v1115
  %1451 = vmatprep.subr.mxu0 %v1124
  %1452 = vmatpush1.msra.mxu0 %v1123
  %1453 = vmatprep.subr.mxu0 %v1132
  %1454 = vmatpush1.msra.mxu0 %v1131
  %1455 = vmatprep.mubr.f32.mxu0 %v748
  %1456 = vmatmul.mubr.f32.gmra.mrb[0].mxu0 %v747
  %v1457 = vpop.f32.mrb[0].mxu0
  %v1458 = vadd.f32 %v1165, %v1457
  %v1459 = vpop.f32.mrb[0].mxu0
  %v1460 = vadd.f32 %v1169, %v1459
  %1461 = vdwg.mxu0
  %v1462 = vmax.f32 %v1245, 0.0
  %v1463 = vmax.f32 %v1247, 0.0
  %v1464 = vmax.f32 %v1316, 0.0
  %v1465 = vmax.f32 %v1318, 0.0
  %v1466 = vmax.f32 %v1387, 0.0
  %v1467 = vmax.f32 %v1389, 0.0
  %v1468 = vmax.f32 %v1458, 0.0
  %v1469 = vmax.f32 %v1460, 0.0
  %s1470 = scalar_lea.vmem %s4, 1024
  %v1471 = vld [vmem:[%s1470] sm:$0xff]
  %v1472 = vld [vmem:[%s1470 + $0x8] sm:$0xff]
  %v1473 = vld [vmem:[%s1470 + $0x10] sm:$0xff]
  %v1474 = vld [vmem:[%s1470 + $0x18] sm:$0xff]
  %v1475 = vld [vmem:[%s1470 + $0x20] sm:$0xff]
  %v1476 = vld [vmem:[%s1470 + $0x28] sm:$0xff]
  %v1477 = vld [vmem:[%s1470 + $0x30] sm:$0xff]
  %v1478 = vld [vmem:[%s1470 + $0x38] sm:$0xff]
  %v1479 = vld [vmem:[%s1470 + $0x40] sm:$0xff]
  %v1480 = vld [vmem:[%s1470 + $0x48] sm:$0xff]
  %v1481 = vld [vmem:[%s1470 + $0x50] sm:$0xff]
  %v1482 = vld [vmem:[%s1470 + $0x58] sm:$0xff]
  %v1483 = vld [vmem:[%s1470 + $0x60] sm:$0xff]
  %v1484 = vld [vmem:[%s1470 + $0x68] sm:$0xff]
  %v1485 = vld [vmem:[%s1470 + $0x70] sm:$0xff]
  %v1486 = vld [vmem:[%s1470 + $0x78] sm:$0xff]
  %v1487 = vld [vmem:[%s1470 + $0x80] sm:$0xff]
  %v1488 = vld [vmem:[%s1470 + $0x88] sm:$0xff]
  %v1489 = vld [vmem:[%s1470 + $0x90] sm:$0xff]
  %v1490 = vld [vmem:[%s1470 + $0x98] sm:$0xff]
  %v1491 = vld [vmem:[%s1470 + $0xa0] sm:$0xff]
  %v1492 = vld [vmem:[%s1470 + $0xa8] sm:$0xff]
  %v1493 = vld [vmem:[%s1470 + $0xb0] sm:$0xff]
  %v1494 = vld [vmem:[%s1470 + $0xb8] sm:$0xff]
  %v1495 = vld [vmem:[%s1470 + $0xc0] sm:$0xff]
  %v1496 = vld [vmem:[%s1470 + $0xc8] sm:$0xff]
  %v1497 = vld [vmem:[%s1470 + $0xd0] sm:$0xff]
  %v1498 = vld [vmem:[%s1470 + $0xd8] sm:$0xff]
  %v1499 = vld [vmem:[%s1470 + $0xe0] sm:$0xff]
  %v1500 = vld [vmem:[%s1470 + $0xe8] sm:$0xff]
  %v1501 = vld [vmem:[%s1470 + $0xf0] sm:$0xff]
  %v1502 = vld [vmem:[%s1470 + $0xf8] sm:$0xff]
  %v1503 = vld [vmem:[%s1470 + $0x100] sm:$0xff]
  %v1504 = vld [vmem:[%s1470 + $0x108] sm:$0xff]
  %v1505 = vld [vmem:[%s1470 + $0x110] sm:$0xff]
  %v1506 = vld [vmem:[%s1470 + $0x118] sm:$0xff]
  %v1507 = vld [vmem:[%s1470 + $0x120] sm:$0xff]
  %v1508 = vld [vmem:[%s1470 + $0x128] sm:$0xff]
  %v1509 = vld [vmem:[%s1470 + $0x130] sm:$0xff]
  %v1510 = vld [vmem:[%s1470 + $0x138] sm:$0xff]
  %v1511 = vld [vmem:[%s1470 + $0x140] sm:$0xff]
  %v1512 = vld [vmem:[%s1470 + $0x148] sm:$0xff]
  %v1513 = vld [vmem:[%s1470 + $0x150] sm:$0xff]
  %v1514 = vld [vmem:[%s1470 + $0x158] sm:$0xff]
  %v1515 = vld [vmem:[%s1470 + $0x160] sm:$0xff]
  %v1516 = vld [vmem:[%s1470 + $0x168] sm:$0xff]
  %v1517 = vld [vmem:[%s1470 + $0x170] sm:$0xff]
  %v1518 = vld [vmem:[%s1470 + $0x178] sm:$0xff]
  %v1519 = vld [vmem:[%s1470 + $0x180] sm:$0xff]
  %v1520 = vld [vmem:[%s1470 + $0x188] sm:$0xff]
  %v1521 = vld [vmem:[%s1470 + $0x190] sm:$0xff]
  %v1522 = vld [vmem:[%s1470 + $0x198] sm:$0xff]
  %v1523 = vld [vmem:[%s1470 + $0x1a0] sm:$0xff]
  %v1524 = vld [vmem:[%s1470 + $0x1a8] sm:$0xff]
  %v1525 = vld [vmem:[%s1470 + $0x1b0] sm:$0xff]
  %v1526 = vld [vmem:[%s1470 + $0x1b8] sm:$0xff]
  %v1527 = vld [vmem:[%s1470 + $0x1c0] sm:$0xff]
  %v1528 = vld [vmem:[%s1470 + $0x1c8] sm:$0xff]
  %v1529 = vld [vmem:[%s1470 + $0x1d0] sm:$0xff]
  %v1530 = vld [vmem:[%s1470 + $0x1d8] sm:$0xff]
  %v1531 = vld [vmem:[%s1470 + $0x1e0] sm:$0xff]
  %v1532 = vld [vmem:[%s1470 + $0x1e8] sm:$0xff]
  %v1533 = vld [vmem:[%s1470 + $0x1f0] sm:$0xff]
  %v1534 = vld [vmem:[%s1470 + $0x1f8] sm:$0xff]
  %v1535 = vld [vmem:[%s1470 + $0x200] sm:$0xff]
  %v1536 = vld [vmem:[%s1470 + $0x208] sm:$0xff]
  %v1537 = vld [vmem:[%s1470 + $0x210] sm:$0xff]
  %v1538 = vld [vmem:[%s1470 + $0x218] sm:$0xff]
  %v1539 = vld [vmem:[%s1470 + $0x220] sm:$0xff]
  %v1540 = vld [vmem:[%s1470 + $0x228] sm:$0xff]
  %v1541 = vld [vmem:[%s1470 + $0x230] sm:$0xff]
  %v1542 = vld [vmem:[%s1470 + $0x238] sm:$0xff]
  %v1543 = vld [vmem:[%s1470 + $0x240] sm:$0xff]
  %v1544 = vld [vmem:[%s1470 + $0x248] sm:$0xff]
  %v1545 = vld [vmem:[%s1470 + $0x250] sm:$0xff]
  %v1546 = vld [vmem:[%s1470 + $0x258] sm:$0xff]
  %v1547 = vld [vmem:[%s1470 + $0x260] sm:$0xff]
  %v1548 = vld [vmem:[%s1470 + $0x268] sm:$0xff]
  %v1549 = vld [vmem:[%s1470 + $0x270] sm:$0xff]
  %v1550 = vld [vmem:[%s1470 + $0x278] sm:$0xff]
  %v1551 = vld [vmem:[%s1470 + $0x280] sm:$0xff]
  %v1552 = vld [vmem:[%s1470 + $0x288] sm:$0xff]
  %v1553 = vld [vmem:[%s1470 + $0x290] sm:$0xff]
  %v1554 = vld [vmem:[%s1470 + $0x298] sm:$0xff]
  %v1555 = vld [vmem:[%s1470 + $0x2a0] sm:$0xff]
  %v1556 = vld [vmem:[%s1470 + $0x2a8] sm:$0xff]
  %v1557 = vld [vmem:[%s1470 + $0x2b0] sm:$0xff]
  %v1558 = vld [vmem:[%s1470 + $0x2b8] sm:$0xff]
  %v1559 = vld [vmem:[%s1470 + $0x2c0] sm:$0xff]
  %v1560 = vld [vmem:[%s1470 + $0x2c8] sm:$0xff]
  %v1561 = vld [vmem:[%s1470 + $0x2d0] sm:$0xff]
  %v1562 = vld [vmem:[%s1470 + $0x2d8] sm:$0xff]
  %v1563 = vld [vmem:[%s1470 + $0x2e0] sm:$0xff]
  %v1564 = vld [vmem:[%s1470 + $0x2e8] sm:$0xff]
  %v1565 = vld [vmem:[%s1470 + $0x2f0] sm:$0xff]
  %v1566 = vld [vmem:[%s1470 + $0x2f8] sm:$0xff]
  %v1567 = vld [vmem:[%s1470 + $0x300] sm:$0xff]
  %v1568 = vld [vmem:[%s1470 + $0x308] sm:$0xff]
  %v1569 = vld [vmem:[%s1470 + $0x310] sm:$0xff]
  %v1570 = vld [vmem:[%s1470 + $0x318] sm:$0xff]
  %v1571 = vld [vmem:[%s1470 + $0x320] sm:$0xff]
  %v1572 = vld [vmem:[%s1470 + $0x328] sm:$0xff]
  %v1573 = vld [vmem:[%s1470 + $0x330] sm:$0xff]
  %v1574 = vld [vmem:[%s1470 + $0x338] sm:$0xff]
  %v1575 = vld [vmem:[%s1470 + $0x340] sm:$0xff]
  %v1576 = vld [vmem:[%s1470 + $0x348] sm:$0xff]
  %v1577 = vld [vmem:[%s1470 + $0x350] sm:$0xff]
  %v1578 = vld [vmem:[%s1470 + $0x358] sm:$0xff]
  %v1579 = vld [vmem:[%s1470 + $0x360] sm:$0xff]
  %v1580 = vld [vmem:[%s1470 + $0x368] sm:$0xff]
  %v1581 = vld [vmem:[%s1470 + $0x370] sm:$0xff]
  %v1582 = vld [vmem:[%s1470 + $0x378] sm:$0xff]
  %v1583 = vld [vmem:[%s1470 + $0x380] sm:$0xff]
  %v1584 = vld [vmem:[%s1470 + $0x388] sm:$0xff]
  %v1585 = vld [vmem:[%s1470 + $0x390] sm:$0xff]
  %v1586 = vld [vmem:[%s1470 + $0x398] sm:$0xff]
  %v1587 = vld [vmem:[%s1470 + $0x3a0] sm:$0xff]
  %v1588 = vld [vmem:[%s1470 + $0x3a8] sm:$0xff]
  %v1589 = vld [vmem:[%s1470 + $0x3b0] sm:$0xff]
  %v1590 = vld [vmem:[%s1470 + $0x3b8] sm:$0xff]
  %v1591 = vld [vmem:[%s1470 + $0x3c0] sm:$0xff]
  %v1592 = vld [vmem:[%s1470 + $0x3c8] sm:$0xff]
  %v1593 = vld [vmem:[%s1470 + $0x3d0] sm:$0xff]
  %v1594 = vld [vmem:[%s1470 + $0x3d8] sm:$0xff]
  %v1595 = vld [vmem:[%s1470 + $0x3e0] sm:$0xff]
  %v1596 = vld [vmem:[%s1470 + $0x3e8] sm:$0xff]
  %v1597 = vld [vmem:[%s1470 + $0x3f0] sm:$0xff]
  %v1598 = vld [vmem:[%s1470 + $0x3f8] sm:$0xff]
  %v1599 = vunpack.c.l.bf16 %v1471
  %v1600 = vunpack.c.h.bf16 %v1471
  %v1601 = vunpack.c.l.bf16 %v1472
  %v1602 = vunpack.c.h.bf16 %v1472
  %v1603 = vunpack.c.l.bf16 %v1473
  %v1604 = vunpack.c.h.bf16 %v1473
  %v1605 = vunpack.c.l.bf16 %v1474
  %v1606 = vunpack.c.h.bf16 %v1474
  %v1607 = vunpack.c.l.bf16 %v1475
  %v1608 = vunpack.c.h.bf16 %v1475
  %v1609 = vunpack.c.l.bf16 %v1476
  %v1610 = vunpack.c.h.bf16 %v1476
  %v1611 = vunpack.c.l.bf16 %v1477
  %v1612 = vunpack.c.h.bf16 %v1477
  %v1613 = vunpack.c.l.bf16 %v1478
  %v1614 = vunpack.c.h.bf16 %v1478
  %v1615 = vunpack.c.l.bf16 %v1479
  %v1616 = vunpack.c.h.bf16 %v1479
  %v1617 = vunpack.c.l.bf16 %v1480
  %v1618 = vunpack.c.h.bf16 %v1480
  %v1619 = vunpack.c.l.bf16 %v1481
  %v1620 = vunpack.c.h.bf16 %v1481
  %v1621 = vunpack.c.l.bf16 %v1482
  %v1622 = vunpack.c.h.bf16 %v1482
  %v1623 = vunpack.c.l.bf16 %v1483
  %v1624 = vunpack.c.h.bf16 %v1483
  %v1625 = vunpack.c.l.bf16 %v1484
  %v1626 = vunpack.c.h.bf16 %v1484
  %v1627 = vunpack.c.l.bf16 %v1485
  %v1628 = vunpack.c.h.bf16 %v1485
  %v1629 = vunpack.c.l.bf16 %v1486
  %v1630 = vunpack.c.h.bf16 %v1486
  %v1631 = vunpack.c.l.bf16 %v1487
  %v1632 = vunpack.c.h.bf16 %v1487
  %v1633 = vunpack.c.l.bf16 %v1488
  %v1634 = vunpack.c.h.bf16 %v1488
  %v1635 = vunpack.c.l.bf16 %v1489
  %v1636 = vunpack.c.h.bf16 %v1489
  %v1637 = vunpack.c.l.bf16 %v1490
  %v1638 = vunpack.c.h.bf16 %v1490
  %v1639 = vunpack.c.l.bf16 %v1491
  %v1640 = vunpack.c.h.bf16 %v1491
  %v1641 = vunpack.c.l.bf16 %v1492
  %v1642 = vunpack.c.h.bf16 %v1492
  %v1643 = vunpack.c.l.bf16 %v1493
  %v1644 = vunpack.c.h.bf16 %v1493
  %v1645 = vunpack.c.l.bf16 %v1494
  %v1646 = vunpack.c.h.bf16 %v1494
  %v1647 = vunpack.c.l.bf16 %v1495
  %v1648 = vunpack.c.h.bf16 %v1495
  %v1649 = vunpack.c.l.bf16 %v1496
  %v1650 = vunpack.c.h.bf16 %v1496
  %v1651 = vunpack.c.l.bf16 %v1497
  %v1652 = vunpack.c.h.bf16 %v1497
  %v1653 = vunpack.c.l.bf16 %v1498
  %v1654 = vunpack.c.h.bf16 %v1498
  %v1655 = vunpack.c.l.bf16 %v1499
  %v1656 = vunpack.c.h.bf16 %v1499
  %v1657 = vunpack.c.l.bf16 %v1500
  %v1658 = vunpack.c.h.bf16 %v1500
  %v1659 = vunpack.c.l.bf16 %v1501
  %v1660 = vunpack.c.h.bf16 %v1501
  %v1661 = vunpack.c.l.bf16 %v1502
  %v1662 = vunpack.c.h.bf16 %v1502
  %v1663 = vunpack.c.l.bf16 %v1503
  %v1664 = vunpack.c.h.bf16 %v1503
  %v1665 = vunpack.c.l.bf16 %v1504
  %v1666 = vunpack.c.h.bf16 %v1504
  %v1667 = vunpack.c.l.bf16 %v1505
  %v1668 = vunpack.c.h.bf16 %v1505
  %v1669 = vunpack.c.l.bf16 %v1506
  %v1670 = vunpack.c.h.bf16 %v1506
  %v1671 = vunpack.c.l.bf16 %v1507
  %v1672 = vunpack.c.h.bf16 %v1507
  %v1673 = vunpack.c.l.bf16 %v1508
  %v1674 = vunpack.c.h.bf16 %v1508
  %v1675 = vunpack.c.l.bf16 %v1509
  %v1676 = vunpack.c.h.bf16 %v1509
  %v1677 = vunpack.c.l.bf16 %v1510
  %v1678 = vunpack.c.h.bf16 %v1510
  %v1679 = vunpack.c.l.bf16 %v1511
  %v1680 = vunpack.c.h.bf16 %v1511
  %v1681 = vunpack.c.l.bf16 %v1512
  %v1682 = vunpack.c.h.bf16 %v1512
  %v1683 = vunpack.c.l.bf16 %v1513
  %v1684 = vunpack.c.h.bf16 %v1513
  %v1685 = vunpack.c.l.bf16 %v1514
  %v1686 = vunpack.c.h.bf16 %v1514
  %v1687 = vunpack.c.l.bf16 %v1515
  %v1688 = vunpack.c.h.bf16 %v1515
  %v1689 = vunpack.c.l.bf16 %v1516
  %v1690 = vunpack.c.h.bf16 %v1516
  %v1691 = vunpack.c.l.bf16 %v1517
  %v1692 = vunpack.c.h.bf16 %v1517
  %v1693 = vunpack.c.l.bf16 %v1518
  %v1694 = vunpack.c.h.bf16 %v1518
  %v1695 = vunpack.c.l.bf16 %v1519
  %v1696 = vunpack.c.h.bf16 %v1519
  %v1697 = vunpack.c.l.bf16 %v1520
  %v1698 = vunpack.c.h.bf16 %v1520
  %v1699 = vunpack.c.l.bf16 %v1521
  %v1700 = vunpack.c.h.bf16 %v1521
  %v1701 = vunpack.c.l.bf16 %v1522
  %v1702 = vunpack.c.h.bf16 %v1522
  %v1703 = vunpack.c.l.bf16 %v1523
  %v1704 = vunpack.c.h.bf16 %v1523
  %v1705 = vunpack.c.l.bf16 %v1524
  %v1706 = vunpack.c.h.bf16 %v1524
  %v1707 = vunpack.c.l.bf16 %v1525
  %v1708 = vunpack.c.h.bf16 %v1525
  %v1709 = vunpack.c.l.bf16 %v1526
  %v1710 = vunpack.c.h.bf16 %v1526
  %v1711 = vunpack.c.l.bf16 %v1527
  %v1712 = vunpack.c.h.bf16 %v1527
  %v1713 = vunpack.c.l.bf16 %v1528
  %v1714 = vunpack.c.h.bf16 %v1528
  %v1715 = vunpack.c.l.bf16 %v1529
  %v1716 = vunpack.c.h.bf16 %v1529
  %v1717 = vunpack.c.l.bf16 %v1530
  %v1718 = vunpack.c.h.bf16 %v1530
  %v1719 = vunpack.c.l.bf16 %v1531
  %v1720 = vunpack.c.h.bf16 %v1531
  %v1721 = vunpack.c.l.bf16 %v1532
  %v1722 = vunpack.c.h.bf16 %v1532
  %v1723 = vunpack.c.l.bf16 %v1533
  %v1724 = vunpack.c.h.bf16 %v1533
  %v1725 = vunpack.c.l.bf16 %v1534
  %v1726 = vunpack.c.h.bf16 %v1534
  %v1727 = vunpack.c.l.bf16 %v1535
  %v1728 = vunpack.c.h.bf16 %v1535
  %v1729 = vunpack.c.l.bf16 %v1536
  %v1730 = vunpack.c.h.bf16 %v1536
  %v1731 = vunpack.c.l.bf16 %v1537
  %v1732 = vunpack.c.h.bf16 %v1537
  %v1733 = vunpack.c.l.bf16 %v1538
  %v1734 = vunpack.c.h.bf16 %v1538
  %v1735 = vunpack.c.l.bf16 %v1539
  %v1736 = vunpack.c.h.bf16 %v1539
  %v1737 = vunpack.c.l.bf16 %v1540
  %v1738 = vunpack.c.h.bf16 %v1540
  %v1739 = vunpack.c.l.bf16 %v1541
  %v1740 = vunpack.c.h.bf16 %v1541
  %v1741 = vunpack.c.l.bf16 %v1542
  %v1742 = vunpack.c.h.bf16 %v1542
  %v1743 = vunpack.c.l.bf16 %v1543
  %v1744 = vunpack.c.h.bf16 %v1543
  %v1745 = vunpack.c.l.bf16 %v1544
  %v1746 = vunpack.c.h.bf16 %v1544
  %v1747 = vunpack.c.l.bf16 %v1545
  %v1748 = vunpack.c.h.bf16 %v1545
  %v1749 = vunpack.c.l.bf16 %v1546
  %v1750 = vunpack.c.h.bf16 %v1546
  %v1751 = vunpack.c.l.bf16 %v1547
  %v1752 = vunpack.c.h.bf16 %v1547
  %v1753 = vunpack.c.l.bf16 %v1548
  %v1754 = vunpack.c.h.bf16 %v1548
  %v1755 = vunpack.c.l.bf16 %v1549
  %v1756 = vunpack.c.h.bf16 %v1549
  %v1757 = vunpack.c.l.bf16 %v1550
  %v1758 = vunpack.c.h.bf16 %v1550
  %v1759 = vunpack.c.l.bf16 %v1551
  %v1760 = vunpack.c.h.bf16 %v1551
  %v1761 = vunpack.c.l.bf16 %v1552
  %v1762 = vunpack.c.h.bf16 %v1552
  %v1763 = vunpack.c.l.bf16 %v1553
  %v1764 = vunpack.c.h.bf16 %v1553
  %v1765 = vunpack.c.l.bf16 %v1554
  %v1766 = vunpack.c.h.bf16 %v1554
  %v1767 = vunpack.c.l.bf16 %v1555
  %v1768 = vunpack.c.h.bf16 %v1555
  %v1769 = vunpack.c.l.bf16 %v1556
  %v1770 = vunpack.c.h.bf16 %v1556
  %v1771 = vunpack.c.l.bf16 %v1557
  %v1772 = vunpack.c.h.bf16 %v1557
  %v1773 = vunpack.c.l.bf16 %v1558
  %v1774 = vunpack.c.h.bf16 %v1558
  %v1775 = vunpack.c.l.bf16 %v1559
  %v1776 = vunpack.c.h.bf16 %v1559
  %v1777 = vunpack.c.l.bf16 %v1560
  %v1778 = vunpack.c.h.bf16 %v1560
  %v1779 = vunpack.c.l.bf16 %v1561
  %v1780 = vunpack.c.h.bf16 %v1561
  %v1781 = vunpack.c.l.bf16 %v1562
  %v1782 = vunpack.c.h.bf16 %v1562
  %v1783 = vunpack.c.l.bf16 %v1563
  %v1784 = vunpack.c.h.bf16 %v1563
  %v1785 = vunpack.c.l.bf16 %v1564
  %v1786 = vunpack.c.h.bf16 %v1564
  %v1787 = vunpack.c.l.bf16 %v1565
  %v1788 = vunpack.c.h.bf16 %v1565
  %v1789 = vunpack.c.l.bf16 %v1566
  %v1790 = vunpack.c.h.bf16 %v1566
  %v1791 = vunpack.c.l.bf16 %v1567
  %v1792 = vunpack.c.h.bf16 %v1567
  %v1793 = vunpack.c.l.bf16 %v1568
  %v1794 = vunpack.c.h.bf16 %v1568
  %v1795 = vunpack.c.l.bf16 %v1569
  %v1796 = vunpack.c.h.bf16 %v1569
  %v1797 = vunpack.c.l.bf16 %v1570
  %v1798 = vunpack.c.h.bf16 %v1570
  %v1799 = vunpack.c.l.bf16 %v1571
  %v1800 = vunpack.c.h.bf16 %v1571
  %v1801 = vunpack.c.l.bf16 %v1572
  %v1802 = vunpack.c.h.bf16 %v1572
  %v1803 = vunpack.c.l.bf16 %v1573
  %v1804 = vunpack.c.h.bf16 %v1573
  %v1805 = vunpack.c.l.bf16 %v1574
  %v1806 = vunpack.c.h.bf16 %v1574
  %v1807 = vunpack.c.l.bf16 %v1575
  %v1808 = vunpack.c.h.bf16 %v1575
  %v1809 = vunpack.c.l.bf16 %v1576
  %v1810 = vunpack.c.h.bf16 %v1576
  %v1811 = vunpack.c.l.bf16 %v1577
  %v1812 = vunpack.c.h.bf16 %v1577
  %v1813 = vunpack.c.l.bf16 %v1578
  %v1814 = vunpack.c.h.bf16 %v1578
  %v1815 = vunpack.c.l.bf16 %v1579
  %v1816 = vunpack.c.h.bf16 %v1579
  %v1817 = vunpack.c.l.bf16 %v1580
  %v1818 = vunpack.c.h.bf16 %v1580
  %v1819 = vunpack.c.l.bf16 %v1581
  %v1820 = vunpack.c.h.bf16 %v1581
  %v1821 = vunpack.c.l.bf16 %v1582
  %v1822 = vunpack.c.h.bf16 %v1582
  %v1823 = vunpack.c.l.bf16 %v1583
  %v1824 = vunpack.c.h.bf16 %v1583
  %v1825 = vunpack.c.l.bf16 %v1584
  %v1826 = vunpack.c.h.bf16 %v1584
  %v1827 = vunpack.c.l.bf16 %v1585
  %v1828 = vunpack.c.h.bf16 %v1585
  %v1829 = vunpack.c.l.bf16 %v1586
  %v1830 = vunpack.c.h.bf16 %v1586
  %v1831 = vunpack.c.l.bf16 %v1587
  %v1832 = vunpack.c.h.bf16 %v1587
  %v1833 = vunpack.c.l.bf16 %v1588
  %v1834 = vunpack.c.h.bf16 %v1588
  %v1835 = vunpack.c.l.bf16 %v1589
  %v1836 = vunpack.c.h.bf16 %v1589
  %v1837 = vunpack.c.l.bf16 %v1590
  %v1838 = vunpack.c.h.bf16 %v1590
  %v1839 = vunpack.c.l.bf16 %v1591
  %v1840 = vunpack.c.h.bf16 %v1591
  %v1841 = vunpack.c.l.bf16 %v1592
  %v1842 = vunpack.c.h.bf16 %v1592
  %v1843 = vunpack.c.l.bf16 %v1593
  %v1844 = vunpack.c.h.bf16 %v1593
  %v1845 = vunpack.c.l.bf16 %v1594
  %v1846 = vunpack.c.h.bf16 %v1594
  %v1847 = vunpack.c.l.bf16 %v1595
  %v1848 = vunpack.c.h.bf16 %v1595
  %v1849 = vunpack.c.l.bf16 %v1596
  %v1850 = vunpack.c.h.bf16 %v1596
  %v1851 = vunpack.c.l.bf16 %v1597
  %v1852 = vunpack.c.h.bf16 %v1597
  %v1853 = vunpack.c.l.bf16 %v1598
  %v1854 = vunpack.c.h.bf16 %v1598
  %s1855 = scalar_lea.vmem %s7, 4
  %v1856 = vld [vmem:[%s1855] ss:$8 sm:$0xf]
  %v1857 = vld [vmem:[%s1855] ss:$8 sm:$0xf0]
  %v1858 = vor.u32 %v1856, %v1857
  %v1860 = vlaneseq
  %v1861 = vshrl.u32 %v1860, 7
  %v1862 = vsub.s32 0, %v1861
  %v1863 = vrot.slane %v1858, %v1862
  %v1864 = vlaneseq
  %v1865 = vshrl.u32 %v1864, 7
  %v1866 = vsub.s32 1, %v1865
  %v1867 = vrot.slane %v1858, %v1866
  %v1868 = vlaneseq
  %v1869 = vshrl.u32 %v1868, 7
  %v1870 = vsub.s32 2, %v1869
  %v1871 = vrot.slane %v1858, %v1870
  %v1872 = vlaneseq
  %v1873 = vshrl.u32 %v1872, 7
  %v1874 = vsub.s32 3, %v1873
  %v1875 = vrot.slane %v1858, %v1874
  %v1876 = vlaneseq
  %v1877 = vshrl.u32 %v1876, 7
  %v1878 = vsub.s32 4, %v1877
  %v1879 = vrot.slane %v1858, %v1878
  %v1880 = vlaneseq
  %v1881 = vshrl.u32 %v1880, 7
  %v1882 = vsub.s32 5, %v1881
  %v1883 = vrot.slane %v1858, %v1882
  %v1884 = vlaneseq
  %v1885 = vshrl.u32 %v1884, 7
  %v1886 = vsub.s32 6, %v1885
  %v1887 = vrot.slane %v1858, %v1886
  %v1888 = vlaneseq
  %v1889 = vshrl.u32 %v1888, 7
  %v1890 = vsub.s32 7, %v1889
  %v1891 = vrot.slane %v1858, %v1890
  %v1902 = vrot.slane %v747, 2
  %v1903 = vrot.slane %v748, 2
  %1906 = vmatprep.subr.mxu0 %v1600
  %1907 = vmatpush1.msra.mxu0 %v1599
  %1908 = vmatprep.subr.mxu0 %v1608
  %1909 = vmatpush1.msra.mxu0 %v1607
  %1910 = vmatprep.subr.mxu0 %v1616
  %1911 = vmatpush1.msra.mxu0 %v1615
  %1912 = vmatprep.subr.mxu0 %v1624
  %1913 = vmatpush1.msra.mxu0 %v1623
  %1914 = vmatprep.subr.mxu0 %v1632
  %1915 = vmatpush1.msra.mxu0 %v1631
  %1916 = vmatprep.subr.mxu0 %v1640
  %1917 = vmatpush1.msra.mxu0 %v1639
  %1918 = vmatprep.subr.mxu0 %v1648
  %1919 = vmatpush1.msra.mxu0 %v1647
  %1920 = vmatprep.subr.mxu0 %v1656
  %1921 = vmatpush1.msra.mxu0 %v1655
  %1922 = vmatprep.subr.mxu0 %v1664
  %1923 = vmatpush1.msra.mxu0 %v1663
  %1924 = vmatprep.subr.mxu0 %v1672
  %1925 = vmatpush1.msra.mxu0 %v1671
  %1926 = vmatprep.subr.mxu0 %v1680
  %1927 = vmatpush1.msra.mxu0 %v1679
  %1928 = vmatprep.subr.mxu0 %v1688
  %1929 = vmatpush1.msra.mxu0 %v1687
  %1930 = vmatprep.subr.mxu0 %v1696
  %1931 = vmatpush1.msra.mxu0 %v1695
  %1932 = vmatprep.subr.mxu0 %v1704
  %1933 = vmatpush1.msra.mxu0 %v1703
  %1934 = vmatprep.subr.mxu0 %v1712
  %1935 = vmatpush1.msra.mxu0 %v1711
  %1936 = vmatprep.subr.mxu0 %v1720
  %1937 = vmatpush1.msra.mxu0 %v1719
  %1938 = vmatprep.subr.mxu0 %v1728
  %1939 = vmatpush1.msra.mxu0 %v1727
  %1940 = vmatprep.subr.mxu0 %v1736
  %1941 = vmatpush1.msra.mxu0 %v1735
  %1942 = vmatprep.subr.mxu0 %v1744
  %1943 = vmatpush1.msra.mxu0 %v1743
  %1944 = vmatprep.subr.mxu0 %v1752
  %1945 = vmatpush1.msra.mxu0 %v1751
  %1946 = vmatprep.subr.mxu0 %v1760
  %1947 = vmatpush1.msra.mxu0 %v1759
  %1948 = vmatprep.subr.mxu0 %v1768
  %1949 = vmatpush1.msra.mxu0 %v1767
  %1950 = vmatprep.subr.mxu0 %v1776
  %1951 = vmatpush1.msra.mxu0 %v1775
  %1952 = vmatprep.subr.mxu0 %v1784
  %1953 = vmatpush1.msra.mxu0 %v1783
  %1954 = vmatprep.subr.mxu0 %v1792
  %1955 = vmatpush1.msra.mxu0 %v1791
  %1956 = vmatprep.subr.mxu0 %v1800
  %1957 = vmatpush1.msra.mxu0 %v1799
  %1958 = vmatprep.subr.mxu0 %v1808
  %1959 = vmatpush1.msra.mxu0 %v1807
  %1960 = vmatprep.subr.mxu0 %v1816
  %1961 = vmatpush1.msra.mxu0 %v1815
  %1962 = vmatprep.subr.mxu0 %v1824
  %1963 = vmatpush1.msra.mxu0 %v1823
  %1964 = vmatprep.subr.mxu0 %v1832
  %1965 = vmatpush1.msra.mxu0 %v1831
  %1966 = vmatprep.subr.mxu0 %v1840
  %1967 = vmatpush1.msra.mxu0 %v1839
  %1968 = vmatprep.subr.mxu0 %v1848
  %1969 = vmatpush1.msra.mxu0 %v1847
  %1970 = vmatprep.mubr.f32.mxu0 %v1903
  %1971 = vmatmul.mubr.f32.gmra.mrb[0].mxu0 %v1902
  %v1972 = vpop.f32.mrb[0].mxu0
  %v1973 = vadd.f32 %v1863, %v1972
  %v1974 = vpop.f32.mrb[0].mxu0
  %v1975 = vadd.f32 %v1867, %v1974
  %1976 = vdwg.mxu0
  %1977 = vmatprep.subr.mxu0 %v1602
  %1978 = vmatpush1.msra.mxu0 %v1601
  %1979 = vmatprep.subr.mxu0 %v1610
  %1980 = vmatpush1.msra.mxu0 %v1609
  %1981 = vmatprep.subr.mxu0 %v1618
  %1982 = vmatpush1.msra.mxu0 %v1617
  %1983 = vmatprep.subr.mxu0 %v1626
  %1984 = vmatpush1.msra.mxu0 %v1625
  %1985 = vmatprep.subr.mxu0 %v1634
  %1986 = vmatpush1.msra.mxu0 %v1633
  %1987 = vmatprep.subr.mxu0 %v1642
  %1988 = vmatpush1.msra.mxu0 %v1641
  %1989 = vmatprep.subr.mxu0 %v1650
  %1990 = vmatpush1.msra.mxu0 %v1649
  %1991 = vmatprep.subr.mxu0 %v1658
  %1992 = vmatpush1.msra.mxu0 %v1657
  %1993 = vmatprep.subr.mxu0 %v1666
  %1994 = vmatpush1.msra.mxu0 %v1665
  %1995 = vmatprep.subr.mxu0 %v1674
  %1996 = vmatpush1.msra.mxu0 %v1673
  %1997 = vmatprep.subr.mxu0 %v1682
  %1998 = vmatpush1.msra.mxu0 %v1681
  %1999 = vmatprep.subr.mxu0 %v1690
  %2000 = vmatpush1.msra.mxu0 %v1689
  %2001 = vmatprep.subr.mxu0 %v1698
  %2002 = vmatpush1.msra.mxu0 %v1697
  %2003 = vmatprep.subr.mxu0 %v1706
  %2004 = vmatpush1.msra.mxu0 %v1705
  %2005 = vmatprep.subr.mxu0 %v1714
  %2006 = vmatpush1.msra.mxu0 %v1713
  %2007 = vmatprep.subr.mxu0 %v1722
  %2008 = vmatpush1.msra.mxu0 %v1721
  %2009 = vmatprep.subr.mxu0 %v1730
  %2010 = vmatpush1.msra.mxu0 %v1729
  %2011 = vmatprep.subr.mxu0 %v1738
  %2012 = vmatpush1.msra.mxu0 %v1737
  %2013 = vmatprep.subr.mxu0 %v1746
  %2014 = vmatpush1.msra.mxu0 %v1745
  %2015 = vmatprep.subr.mxu0 %v1754
  %2016 = vmatpush1.msra.mxu0 %v1753
  %2017 = vmatprep.subr.mxu0 %v1762
  %2018 = vmatpush1.msra.mxu0 %v1761
  %2019 = vmatprep.subr.mxu0 %v1770
  %2020 = vmatpush1.msra.mxu0 %v1769
  %2021 = vmatprep.subr.mxu0 %v1778
  %2022 = vmatpush1.msra.mxu0 %v1777
  %2023 = vmatprep.subr.mxu0 %v1786
  %2024 = vmatpush1.msra.mxu0 %v1785
  %2025 = vmatprep.subr.mxu0 %v1794
  %2026 = vmatpush1.msra.mxu0 %v1793
  %2027 = vmatprep.subr.mxu0 %v1802
  %2028 = vmatpush1.msra.mxu0 %v1801
  %2029 = vmatprep.subr.mxu0 %v1810
  %2030 = vmatpush1.msra.mxu0 %v1809
  %2031 = vmatprep.subr.mxu0 %v1818
  %2032 = vmatpush1.msra.mxu0 %v1817
  %2033 = vmatprep.subr.mxu0 %v1826
  %2034 = vmatpush1.msra.mxu0 %v1825
  %2035 = vmatprep.subr.mxu0 %v1834
  %2036 = vmatpush1.msra.mxu0 %v1833
  %2037 = vmatprep.subr.mxu0 %v1842
  %2038 = vmatpush1.msra.mxu0 %v1841
  %2039 = vmatprep.subr.mxu0 %v1850
  %2040 = vmatpush1.msra.mxu0 %v1849
  %2041 = vmatprep.mubr.f32.mxu0 %v1903
  %2042 = vmatmul.mubr.f32.gmra.mrb[0].mxu0 %v1902
  %v2043 = vpop.f32.mrb[0].mxu0
  %v2044 = vadd.f32 %v1871, %v2043
  %v2045 = vpop.f32.mrb[0].mxu0
  %v2046 = vadd.f32 %v1875, %v2045
  %2047 = vdwg.mxu0
  %2048 = vmatprep.subr.mxu0 %v1604
  %2049 = vmatpush1.msra.mxu0 %v1603
  %2050 = vmatprep.subr.mxu0 %v1612
  %2051 = vmatpush1.msra.mxu0 %v1611
  %2052 = vmatprep.subr.mxu0 %v1620
  %2053 = vmatpush1.msra.mxu0 %v1619
  %2054 = vmatprep.subr.mxu0 %v1628
  %2055 = vmatpush1.msra.mxu0 %v1627
  %2056 = vmatprep.subr.mxu0 %v1636
  %2057 = vmatpush1.msra.mxu0 %v1635
  %2058 = vmatprep.subr.mxu0 %v1644
  %2059 = vmatpush1.msra.mxu0 %v1643
  %2060 = vmatprep.subr.mxu0 %v1652
  %2061 = vmatpush1.msra.mxu0 %v1651
  %2062 = vmatprep.subr.mxu0 %v1660
  %2063 = vmatpush1.msra.mxu0 %v1659
  %2064 = vmatprep.subr.mxu0 %v1668
  %2065 = vmatpush1.msra.mxu0 %v1667
  %2066 = vmatprep.subr.mxu0 %v1676
  %2067 = vmatpush1.msra.mxu0 %v1675
  %2068 = vmatprep.subr.mxu0 %v1684
  %2069 = vmatpush1.msra.mxu0 %v1683
  %2070 = vmatprep.subr.mxu0 %v1692
  %2071 = vmatpush1.msra.mxu0 %v1691
  %2072 = vmatprep.subr.mxu0 %v1700
  %2073 = vmatpush1.msra.mxu0 %v1699
  %2074 = vmatprep.subr.mxu0 %v1708
  %2075 = vmatpush1.msra.mxu0 %v1707
  %2076 = vmatprep.subr.mxu0 %v1716
  %2077 = vmatpush1.msra.mxu0 %v1715
  %2078 = vmatprep.subr.mxu0 %v1724
  %2079 = vmatpush1.msra.mxu0 %v1723
  %2080 = vmatprep.subr.mxu0 %v1732
  %2081 = vmatpush1.msra.mxu0 %v1731
  %2082 = vmatprep.subr.mxu0 %v1740
  %2083 = vmatpush1.msra.mxu0 %v1739
  %2084 = vmatprep.subr.mxu0 %v1748
  %2085 = vmatpush1.msra.mxu0 %v1747
  %2086 = vmatprep.subr.mxu0 %v1756
  %2087 = vmatpush1.msra.mxu0 %v1755
  %2088 = vmatprep.subr.mxu0 %v1764
  %2089 = vmatpush1.msra.mxu0 %v1763
  %2090 = vmatprep.subr.mxu0 %v1772
  %2091 = vmatpush1.msra.mxu0 %v1771
  %2092 = vmatprep.subr.mxu0 %v1780
  %2093 = vmatpush1.msra.mxu0 %v1779
  %2094 = vmatprep.subr.mxu0 %v1788
  %2095 = vmatpush1.msra.mxu0 %v1787
  %2096 = vmatprep.subr.mxu0 %v1796
  %2097 = vmatpush1.msra.mxu0 %v1795
  %2098 = vmatprep.subr.mxu0 %v1804
  %2099 = vmatpush1.msra.mxu0 %v1803
  %2100 = vmatprep.subr.mxu0 %v1812
  %2101 = vmatpush1.msra.mxu0 %v1811
  %2102 = vmatprep.subr.mxu0 %v1820
  %2103 = vmatpush1.msra.mxu0 %v1819
  %2104 = vmatprep.subr.mxu0 %v1828
  %2105 = vmatpush1.msra.mxu0 %v1827
  %2106 = vmatprep.subr.mxu0 %v1836
  %2107 = vmatpush1.msra.mxu0 %v1835
  %2108 = vmatprep.subr.mxu0 %v1844
  %2109 = vmatpush1.msra.mxu0 %v1843
  %2110 = vmatprep.subr.mxu0 %v1852
  %2111 = vmatpush1.msra.mxu0 %v1851
  %2112 = vmatprep.mubr.f32.mxu0 %v1903
  %2113 = vmatmul.mubr.f32.gmra.mrb[0].mxu0 %v1902
  %v2114 = vpop.f32.mrb[0].mxu0
  %v2115 = vadd.f32 %v1879, %v2114
  %v2116 = vpop.f32.mrb[0].mxu0
  %v2117 = vadd.f32 %v1883, %v2116
  %2118 = vdwg.mxu0
  %2119 = vmatprep.subr.mxu0 %v1606
  %2120 = vmatpush1.msra.mxu0 %v1605
  %2121 = vmatprep.subr.mxu0 %v1614
  %2122 = vmatpush1.msra.mxu0 %v1613
  %2123 = vmatprep.subr.mxu0 %v1622
  %2124 = vmatpush1.msra.mxu0 %v1621
  %2125 = vmatprep.subr.mxu0 %v1630
  %2126 = vmatpush1.msra.mxu0 %v1629
  %2127 = vmatprep.subr.mxu0 %v1638
  %2128 = vmatpush1.msra.mxu0 %v1637
  %2129 = vmatprep.subr.mxu0 %v1646
  %2130 = vmatpush1.msra.mxu0 %v1645
  %2131 = vmatprep.subr.mxu0 %v1654
  %2132 = vmatpush1.msra.mxu0 %v1653
  %2133 = vmatprep.subr.mxu0 %v1662
  %2134 = vmatpush1.msra.mxu0 %v1661
  %2135 = vmatprep.subr.mxu0 %v1670
  %2136 = vmatpush1.msra.mxu0 %v1669
  %2137 = vmatprep.subr.mxu0 %v1678
  %2138 = vmatpush1.msra.mxu0 %v1677
  %2139 = vmatprep.subr.mxu0 %v1686
  %2140 = vmatpush1.msra.mxu0 %v1685
  %2141 = vmatprep.subr.mxu0 %v1694
  %2142 = vmatpush1.msra.mxu0 %v1693
  %2143 = vmatprep.subr.mxu0 %v1702
  %2144 = vmatpush1.msra.mxu0 %v1701
  %2145 = vmatprep.subr.mxu0 %v1710
  %2146 = vmatpush1.msra.mxu0 %v1709
  %2147 = vmatprep.subr.mxu0 %v1718
  %2148 = vmatpush1.msra.mxu0 %v1717
  %2149 = vmatprep.subr.mxu0 %v1726
  %2150 = vmatpush1.msra.mxu0 %v1725
  %2151 = vmatprep.subr.mxu0 %v1734
  %2152 = vmatpush1.msra.mxu0 %v1733
  %2153 = vmatprep.subr.mxu0 %v1742
  %2154 = vmatpush1.msra.mxu0 %v1741
  %2155 = vmatprep.subr.mxu0 %v1750
  %2156 = vmatpush1.msra.mxu0 %v1749
  %2157 = vmatprep.subr.mxu0 %v1758
  %2158 = vmatpush1.msra.mxu0 %v1757
  %2159 = vmatprep.subr.mxu0 %v1766
  %2160 = vmatpush1.msra.mxu0 %v1765
  %2161 = vmatprep.subr.mxu0 %v1774
  %2162 = vmatpush1.msra.mxu0 %v1773
  %2163 = vmatprep.subr.mxu0 %v1782
  %2164 = vmatpush1.msra.mxu0 %v1781
  %2165 = vmatprep.subr.mxu0 %v1790
  %2166 = vmatpush1.msra.mxu0 %v1789
  %2167 = vmatprep.subr.mxu0 %v1798
  %2168 = vmatpush1.msra.mxu0 %v1797
  %2169 = vmatprep.subr.mxu0 %v1806
  %2170 = vmatpush1.msra.mxu0 %v1805
  %2171 = vmatprep.subr.mxu0 %v1814
  %2172 = vmatpush1.msra.mxu0 %v1813
  %2173 = vmatprep.subr.mxu0 %v1822
  %2174 = vmatpush1.msra.mxu0 %v1821
  %2175 = vmatprep.subr.mxu0 %v1830
  %2176 = vmatpush1.msra.mxu0 %v1829
  %2177 = vmatprep.subr.mxu0 %v1838
  %2178 = vmatpush1.msra.mxu0 %v1837
  %2179 = vmatprep.subr.mxu0 %v1846
  %2180 = vmatpush1.msra.mxu0 %v1845
  %2181 = vmatprep.subr.mxu0 %v1854
  %2182 = vmatpush1.msra.mxu0 %v1853
  %2183 = vmatprep.mubr.f32.mxu0 %v1903
  %2184 = vmatmul.mubr.f32.gmra.mrb[0].mxu0 %v1902
  %v2185 = vpop.f32.mrb[0].mxu0
  %v2186 = vadd.f32 %v1887, %v2185
  %v2187 = vpop.f32.mrb[0].mxu0
  %v2188 = vadd.f32 %v1891, %v2187
  %2189 = vdwg.mxu0
  %v2190 = vmax.f32 %v1973, 0.0
  %v2191 = vmax.f32 %v1975, 0.0
  %v2192 = vmax.f32 %v2044, 0.0
  %v2193 = vmax.f32 %v2046, 0.0
  %v2194 = vmax.f32 %v2115, 0.0
  %v2195 = vmax.f32 %v2117, 0.0
  %v2196 = vmax.f32 %v2186, 0.0
  %v2197 = vmax.f32 %v2188, 0.0
  %v2198 = vadd.f32 %v1462, %v2190
  %v2199 = vadd.f32 %v1463, %v2191
  %v2200 = vadd.f32 %v1464, %v2192
  %v2201 = vadd.f32 %v1465, %v2193
  %v2202 = vadd.f32 %v1466, %v2194
  %v2203 = vadd.f32 %v1467, %v2195
  %v2204 = vadd.f32 %v1468, %v2196
  %v2205 = vadd.f32 %v1469, %v2197
  %v2206 = vmul.f32 %v2198, 0.5
  %v2207 = vmul.f32 %v2199, 0.5
  %v2208 = vmul.f32 %v2200, 0.5
  %v2209 = vmul.f32 %v2201, 0.5
  %v2210 = vmul.f32 %v2202, 0.5
  %v2211 = vmul.f32 %v2203, 0.5
  %v2212 = vmul.f32 %v2204, 0.5
  %v2213 = vmul.f32 %v2205, 0.5
  %s2214 = scalar_lea.vmem %s7, 5
  %v2215 = vld [vmem:[%s2214] ss:$8 sm:$0xf]
  %v2216 = vld [vmem:[%s2214] ss:$8 sm:$0xf0]
  %v2217 = vor.u32 %v2215, %v2216
  %v2219 = vlaneseq
  %v2220 = vshrl.u32 %v2219, 7
  %v2221 = vsub.s32 0, %v2220
  %v2222 = vrot.slane %v2217, %v2221
  %v2223 = vlaneseq
  %v2224 = vshrl.u32 %v2223, 7
  %v2225 = vsub.s32 1, %v2224
  %v2226 = vrot.slane %v2217, %v2225
  %v2227 = vlaneseq
  %v2228 = vshrl.u32 %v2227, 7
  %v2229 = vsub.s32 2, %v2228
  %v2230 = vrot.slane %v2217, %v2229
  %v2231 = vlaneseq
  %v2232 = vshrl.u32 %v2231, 7
  %v2233 = vsub.s32 3, %v2232
  %v2234 = vrot.slane %v2217, %v2233
  %v2235 = vlaneseq
  %v2236 = vshrl.u32 %v2235, 7
  %v2237 = vsub.s32 4, %v2236
  %v2238 = vrot.slane %v2217, %v2237
  %v2239 = vlaneseq
  %v2240 = vshrl.u32 %v2239, 7
  %v2241 = vsub.s32 5, %v2240
  %v2242 = vrot.slane %v2217, %v2241
  %v2243 = vlaneseq
  %v2244 = vshrl.u32 %v2243, 7
  %v2245 = vsub.s32 6, %v2244
  %v2246 = vrot.slane %v2217, %v2245
  %v2247 = vlaneseq
  %v2248 = vshrl.u32 %v2247, 7
  %v2249 = vsub.s32 7, %v2248
  %v2250 = vrot.slane %v2217, %v2249
  %v2259 = vmul.f32 %v2206, %v2222
  %v2260 = vmul.f32 %v2207, %v2226
  %v2261 = vmul.f32 %v2208, %v2230
  %v2262 = vmul.f32 %v2209, %v2234
  %v2263 = vmul.f32 %v2210, %v2238
  %v2264 = vmul.f32 %v2211, %v2242
  %v2265 = vmul.f32 %v2212, %v2246
  %v2266 = vmul.f32 %v2213, %v2250
  %s2267 = scalar_lea.vmem %s7, 6
  %v2268 = vld [vmem:[%s2267] ss:$8 sm:$0xf]
  %v2269 = vld [vmem:[%s2267] ss:$8 sm:$0xf0]
  %v2270 = vor.u32 %v2268, %v2269
  %v2272 = vlaneseq
  %v2273 = vshrl.u32 %v2272, 7
  %v2274 = vsub.s32 0, %v2273
  %v2275 = vrot.slane %v2270, %v2274
  %v2276 = vlaneseq
  %v2277 = vshrl.u32 %v2276, 7
  %v2278 = vsub.s32 1, %v2277
  %v2279 = vrot.slane %v2270, %v2278
  %v2280 = vlaneseq
  %v2281 = vshrl.u32 %v2280, 7
  %v2282 = vsub.s32 2, %v2281
  %v2283 = vrot.slane %v2270, %v2282
  %v2284 = vlaneseq
  %v2285 = vshrl.u32 %v2284, 7
  %v2286 = vsub.s32 3, %v2285
  %v2287 = vrot.slane %v2270, %v2286
  %v2288 = vlaneseq
  %v2289 = vshrl.u32 %v2288, 7
  %v2290 = vsub.s32 4, %v2289
  %v2291 = vrot.slane %v2270, %v2290
  %v2292 = vlaneseq
  %v2293 = vshrl.u32 %v2292, 7
  %v2294 = vsub.s32 5, %v2293
  %v2295 = vrot.slane %v2270, %v2294
  %v2296 = vlaneseq
  %v2297 = vshrl.u32 %v2296, 7
  %v2298 = vsub.s32 6, %v2297
  %v2299 = vrot.slane %v2270, %v2298
  %v2300 = vlaneseq
  %v2301 = vshrl.u32 %v2300, 7
  %v2302 = vsub.s32 7, %v2301
  %v2303 = vrot.slane %v2270, %v2302
  %v2312 = vadd.f32 %v2259, %v2275
  %v2313 = vadd.f32 %v2260, %v2279
  %v2314 = vadd.f32 %v2261, %v2283
  %v2315 = vadd.f32 %v2262, %v2287
  %v2316 = vadd.f32 %v2263, %v2291
  %v2317 = vadd.f32 %v2264, %v2295
  %v2318 = vadd.f32 %v2265, %v2299
  %v2319 = vadd.f32 %v2266, %v2303
  %v2320 = vmax.f32 %v2312, 0.0
  %v2321 = vmax.f32 %v2313, 0.0
  %v2322 = vmax.f32 %v2314, 0.0
  %v2323 = vmax.f32 %v2315, 0.0
  %v2324 = vmax.f32 %v2316, 0.0
  %v2325 = vmax.f32 %v2317, 0.0
  %v2326 = vmax.f32 %v2318, 0.0
  %v2327 = vmax.f32 %v2319, 0.0
  %v2328 = vld [vmem:[%s5] sm:$0xff]
  %v2329 = vld [vmem:[%s5 + $0x8] sm:$0xff]
  %v2330 = vld [vmem:[%s5 + $0x10] sm:$0xff]
  %v2331 = vld [vmem:[%s5 + $0x18] sm:$0xff]
  %v2332 = vld [vmem:[%s5 + $0x20] sm:$0xff]
  %v2333 = vld [vmem:[%s5 + $0x28] sm:$0xff]
  %v2334 = vld [vmem:[%s5 + $0x30] sm:$0xff]
  %v2335 = vld [vmem:[%s5 + $0x38] sm:$0xff]
  %v2336 = vld [vmem:[%s5 + $0x40] sm:$0xff]
  %v2337 = vld [vmem:[%s5 + $0x48] sm:$0xff]
  %v2338 = vld [vmem:[%s5 + $0x50] sm:$0xff]
  %v2339 = vld [vmem:[%s5 + $0x58] sm:$0xff]
  %v2340 = vld [vmem:[%s5 + $0x60] sm:$0xff]
  %v2341 = vld [vmem:[%s5 + $0x68] sm:$0xff]
  %v2342 = vld [vmem:[%s5 + $0x70] sm:$0xff]
  %v2343 = vld [vmem:[%s5 + $0x78] sm:$0xff]
  %v2344 = vld [vmem:[%s5 + $0x80] sm:$0xff]
  %v2345 = vld [vmem:[%s5 + $0x88] sm:$0xff]
  %v2346 = vld [vmem:[%s5 + $0x90] sm:$0xff]
  %v2347 = vld [vmem:[%s5 + $0x98] sm:$0xff]
  %v2348 = vld [vmem:[%s5 + $0xa0] sm:$0xff]
  %v2349 = vld [vmem:[%s5 + $0xa8] sm:$0xff]
  %v2350 = vld [vmem:[%s5 + $0xb0] sm:$0xff]
  %v2351 = vld [vmem:[%s5 + $0xb8] sm:$0xff]
  %v2352 = vld [vmem:[%s5 + $0xc0] sm:$0xff]
  %v2353 = vld [vmem:[%s5 + $0xc8] sm:$0xff]
  %v2354 = vld [vmem:[%s5 + $0xd0] sm:$0xff]
  %v2355 = vld [vmem:[%s5 + $0xd8] sm:$0xff]
  %v2356 = vld [vmem:[%s5 + $0xe0] sm:$0xff]
  %v2357 = vld [vmem:[%s5 + $0xe8] sm:$0xff]
  %v2358 = vld [vmem:[%s5 + $0xf0] sm:$0xff]
  %v2359 = vld [vmem:[%s5 + $0xf8] sm:$0xff]
  %v2360 = vunpack.c.l.bf16 %v2328
  %v2361 = vunpack.c.h.bf16 %v2328
  %v2362 = vunpack.c.l.bf16 %v2329
  %v2363 = vunpack.c.h.bf16 %v2329
  %v2364 = vunpack.c.l.bf16 %v2330
  %v2365 = vunpack.c.h.bf16 %v2330
  %v2366 = vunpack.c.l.bf16 %v2331
  %v2367 = vunpack.c.h.bf16 %v2331
  %v2368 = vunpack.c.l.bf16 %v2332
  %v2369 = vunpack.c.h.bf16 %v2332
  %v2370 = vunpack.c.l.bf16 %v2333
  %v2371 = vunpack.c.h.bf16 %v2333
  %v2372 = vunpack.c.l.bf16 %v2334
  %v2373 = vunpack.c.h.bf16 %v2334
  %v2374 = vunpack.c.l.bf16 %v2335
  %v2375 = vunpack.c.h.bf16 %v2335
  %v2376 = vunpack.c.l.bf16 %v2336
  %v2377 = vunpack.c.h.bf16 %v2336
  %v2378 = vunpack.c.l.bf16 %v2337
  %v2379 = vunpack.c.h.bf16 %v2337
  %v2380 = vunpack.c.l.bf16 %v2338
  %v2381 = vunpack.c.h.bf16 %v2338
  %v2382 = vunpack.c.l.bf16 %v2339
  %v2383 = vunpack.c.h.bf16 %v2339
  %v2384 = vunpack.c.l.bf16 %v2340
  %v2385 = vunpack.c.h.bf16 %v2340
  %v2386 = vunpack.c.l.bf16 %v2341
  %v2387 = vunpack.c.h.bf16 %v2341
  %v2388 = vunpack.c.l.bf16 %v2342
  %v2389 = vunpack.c.h.bf16 %v2342
  %v2390 = vunpack.c.l.bf16 %v2343
  %v2391 = vunpack.c.h.bf16 %v2343
  %v2392 = vunpack.c.l.bf16 %v2344
  %v2393 = vunpack.c.h.bf16 %v2344
  %v2394 = vunpack.c.l.bf16 %v2345
  %v2395 = vunpack.c.h.bf16 %v2345
  %v2396 = vunpack.c.l.bf16 %v2346
  %v2397 = vunpack.c.h.bf16 %v2346
  %v2398 = vunpack.c.l.bf16 %v2347
  %v2399 = vunpack.c.h.bf16 %v2347
  %v2400 = vunpack.c.l.bf16 %v2348
  %v2401 = vunpack.c.h.bf16 %v2348
  %v2402 = vunpack.c.l.bf16 %v2349
  %v2403 = vunpack.c.h.bf16 %v2349
  %v2404 = vunpack.c.l.bf16 %v2350
  %v2405 = vunpack.c.h.bf16 %v2350
  %v2406 = vunpack.c.l.bf16 %v2351
  %v2407 = vunpack.c.h.bf16 %v2351
  %v2408 = vunpack.c.l.bf16 %v2352
  %v2409 = vunpack.c.h.bf16 %v2352
  %v2410 = vunpack.c.l.bf16 %v2353
  %v2411 = vunpack.c.h.bf16 %v2353
  %v2412 = vunpack.c.l.bf16 %v2354
  %v2413 = vunpack.c.h.bf16 %v2354
  %v2414 = vunpack.c.l.bf16 %v2355
  %v2415 = vunpack.c.h.bf16 %v2355
  %v2416 = vunpack.c.l.bf16 %v2356
  %v2417 = vunpack.c.h.bf16 %v2356
  %v2418 = vunpack.c.l.bf16 %v2357
  %v2419 = vunpack.c.h.bf16 %v2357
  %v2420 = vunpack.c.l.bf16 %v2358
  %v2421 = vunpack.c.h.bf16 %v2358
  %v2422 = vunpack.c.l.bf16 %v2359
  %v2423 = vunpack.c.h.bf16 %v2359
  %2424 = vmatprep.subr.mxu0 %v2361
  %2425 = vmatpush1.msra.mxu0 %v2360
  %2426 = vmatprep.subr.mxu0 %v2363
  %2427 = vmatpush1.msra.mxu0 %v2362
  %2428 = vmatprep.subr.mxu0 %v2365
  %2429 = vmatpush1.msra.mxu0 %v2364
  %2430 = vmatprep.subr.mxu0 %v2367
  %2431 = vmatpush1.msra.mxu0 %v2366
  %2432 = vmatprep.subr.mxu0 %v2369
  %2433 = vmatpush1.msra.mxu0 %v2368
  %2434 = vmatprep.subr.mxu0 %v2371
  %2435 = vmatpush1.msra.mxu0 %v2370
  %2436 = vmatprep.subr.mxu0 %v2373
  %2437 = vmatpush1.msra.mxu0 %v2372
  %2438 = vmatprep.subr.mxu0 %v2375
  %2439 = vmatpush1.msra.mxu0 %v2374
  %2440 = vmatprep.subr.mxu0 %v2377
  %2441 = vmatpush1.msra.mxu0 %v2376
  %2442 = vmatprep.subr.mxu0 %v2379
  %2443 = vmatpush1.msra.mxu0 %v2378
  %2444 = vmatprep.subr.mxu0 %v2381
  %2445 = vmatpush1.msra.mxu0 %v2380
  %2446 = vmatprep.subr.mxu0 %v2383
  %2447 = vmatpush1.msra.mxu0 %v2382
  %2448 = vmatprep.subr.mxu0 %v2385
  %2449 = vmatpush1.msra.mxu0 %v2384
  %2450 = vmatprep.subr.mxu0 %v2387
  %2451 = vmatpush1.msra.mxu0 %v2386
  %2452 = vmatprep.subr.mxu0 %v2389
  %2453 = vmatpush1.msra.mxu0 %v2388
  %2454 = vmatprep.subr.mxu0 %v2391
  %2455 = vmatpush1.msra.mxu0 %v2390
  %2456 = vmatprep.subr.mxu0 %v2393
  %2457 = vmatpush1.msra.mxu0 %v2392
  %2458 = vmatprep.subr.mxu0 %v2395
  %2459 = vmatpush1.msra.mxu0 %v2394
  %2460 = vmatprep.subr.mxu0 %v2397
  %2461 = vmatpush1.msra.mxu0 %v2396
  %2462 = vmatprep.subr.mxu0 %v2399
  %2463 = vmatpush1.msra.mxu0 %v2398
  %2464 = vmatprep.subr.mxu0 %v2401
  %2465 = vmatpush1.msra.mxu0 %v2400
  %2466 = vmatprep.subr.mxu0 %v2403
  %2467 = vmatpush1.msra.mxu0 %v2402
  %2468 = vmatprep.subr.mxu0 %v2405
  %2469 = vmatpush1.msra.mxu0 %v2404
  %2470 = vmatprep.subr.mxu0 %v2407
  %2471 = vmatpush1.msra.mxu0 %v2406
  %2472 = vmatprep.subr.mxu0 %v2409
  %2473 = vmatpush1.msra.mxu0 %v2408
  %2474 = vmatprep.subr.mxu0 %v2411
  %2475 = vmatpush1.msra.mxu0 %v2410
  %2476 = vmatprep.subr.mxu0 %v2413
  %2477 = vmatpush1.msra.mxu0 %v2412
  %2478 = vmatprep.subr.mxu0 %v2415
  %2479 = vmatpush1.msra.mxu0 %v2414
  %2480 = vmatprep.subr.mxu0 %v2417
  %2481 = vmatpush1.msra.mxu0 %v2416
  %2482 = vmatprep.subr.mxu0 %v2419
  %2483 = vmatpush1.msra.mxu0 %v2418
  %2484 = vmatprep.subr.mxu0 %v2421
  %2485 = vmatpush1.msra.mxu0 %v2420
  %2486 = vmatprep.subr.mxu0 %v2423
  %2487 = vmatpush1.msra.mxu0 %v2422
  %2488 = vmatprep.mubr.f32.mxu0 %v2321
  %2489 = vmatmul.mubr.f32.gmra.mrb[0].mxu0 %v2320
  %v2490 = vpop.f32.mrb[0].mxu0
  %v2491 = vadd.f32 0.0, %v2490
  %v2492 = vpop.f32.mrb[0].mxu0
  %v2493 = vadd.f32 0.0, %v2492
  %2494 = vdwg.mxu0
  %s2495 = scalar_lea.vmem %s5, 256
  %v2496 = vld [vmem:[%s2495] sm:$0xff]
  %v2497 = vld [vmem:[%s2495 + $0x8] sm:$0xff]
  %v2498 = vld [vmem:[%s2495 + $0x10] sm:$0xff]
  %v2499 = vld [vmem:[%s2495 + $0x18] sm:$0xff]
  %v2500 = vld [vmem:[%s2495 + $0x20] sm:$0xff]
  %v2501 = vld [vmem:[%s2495 + $0x28] sm:$0xff]
  %v2502 = vld [vmem:[%s2495 + $0x30] sm:$0xff]
  %v2503 = vld [vmem:[%s2495 + $0x38] sm:$0xff]
  %v2504 = vld [vmem:[%s2495 + $0x40] sm:$0xff]
  %v2505 = vld [vmem:[%s2495 + $0x48] sm:$0xff]
  %v2506 = vld [vmem:[%s2495 + $0x50] sm:$0xff]
  %v2507 = vld [vmem:[%s2495 + $0x58] sm:$0xff]
  %v2508 = vld [vmem:[%s2495 + $0x60] sm:$0xff]
  %v2509 = vld [vmem:[%s2495 + $0x68] sm:$0xff]
  %v2510 = vld [vmem:[%s2495 + $0x70] sm:$0xff]
  %v2511 = vld [vmem:[%s2495 + $0x78] sm:$0xff]
  %v2512 = vld [vmem:[%s2495 + $0x80] sm:$0xff]
  %v2513 = vld [vmem:[%s2495 + $0x88] sm:$0xff]
  %v2514 = vld [vmem:[%s2495 + $0x90] sm:$0xff]
  %v2515 = vld [vmem:[%s2495 + $0x98] sm:$0xff]
  %v2516 = vld [vmem:[%s2495 + $0xa0] sm:$0xff]
  %v2517 = vld [vmem:[%s2495 + $0xa8] sm:$0xff]
  %v2518 = vld [vmem:[%s2495 + $0xb0] sm:$0xff]
  %v2519 = vld [vmem:[%s2495 + $0xb8] sm:$0xff]
  %v2520 = vld [vmem:[%s2495 + $0xc0] sm:$0xff]
  %v2521 = vld [vmem:[%s2495 + $0xc8] sm:$0xff]
  %v2522 = vld [vmem:[%s2495 + $0xd0] sm:$0xff]
  %v2523 = vld [vmem:[%s2495 + $0xd8] sm:$0xff]
  %v2524 = vld [vmem:[%s2495 + $0xe0] sm:$0xff]
  %v2525 = vld [vmem:[%s2495 + $0xe8] sm:$0xff]
  %v2526 = vld [vmem:[%s2495 + $0xf0] sm:$0xff]
  %v2527 = vld [vmem:[%s2495 + $0xf8] sm:$0xff]
  %v2528 = vunpack.c.l.bf16 %v2496
  %v2529 = vunpack.c.h.bf16 %v2496
  %v2530 = vunpack.c.l.bf16 %v2497
  %v2531 = vunpack.c.h.bf16 %v2497
  %v2532 = vunpack.c.l.bf16 %v2498
  %v2533 = vunpack.c.h.bf16 %v2498
  %v2534 = vunpack.c.l.bf16 %v2499
  %v2535 = vunpack.c.h.bf16 %v2499
  %v2536 = vunpack.c.l.bf16 %v2500
  %v2537 = vunpack.c.h.bf16 %v2500
  %v2538 = vunpack.c.l.bf16 %v2501
  %v2539 = vunpack.c.h.bf16 %v2501
  %v2540 = vunpack.c.l.bf16 %v2502
  %v2541 = vunpack.c.h.bf16 %v2502
  %v2542 = vunpack.c.l.bf16 %v2503
  %v2543 = vunpack.c.h.bf16 %v2503
  %v2544 = vunpack.c.l.bf16 %v2504
  %v2545 = vunpack.c.h.bf16 %v2504
  %v2546 = vunpack.c.l.bf16 %v2505
  %v2547 = vunpack.c.h.bf16 %v2505
  %v2548 = vunpack.c.l.bf16 %v2506
  %v2549 = vunpack.c.h.bf16 %v2506
  %v2550 = vunpack.c.l.bf16 %v2507
  %v2551 = vunpack.c.h.bf16 %v2507
  %v2552 = vunpack.c.l.bf16 %v2508
  %v2553 = vunpack.c.h.bf16 %v2508
  %v2554 = vunpack.c.l.bf16 %v2509
  %v2555 = vunpack.c.h.bf16 %v2509
  %v2556 = vunpack.c.l.bf16 %v2510
  %v2557 = vunpack.c.h.bf16 %v2510
  %v2558 = vunpack.c.l.bf16 %v2511
  %v2559 = vunpack.c.h.bf16 %v2511
  %v2560 = vunpack.c.l.bf16 %v2512
  %v2561 = vunpack.c.h.bf16 %v2512
  %v2562 = vunpack.c.l.bf16 %v2513
  %v2563 = vunpack.c.h.bf16 %v2513
  %v2564 = vunpack.c.l.bf16 %v2514
  %v2565 = vunpack.c.h.bf16 %v2514
  %v2566 = vunpack.c.l.bf16 %v2515
  %v2567 = vunpack.c.h.bf16 %v2515
  %v2568 = vunpack.c.l.bf16 %v2516
  %v2569 = vunpack.c.h.bf16 %v2516
  %v2570 = vunpack.c.l.bf16 %v2517
  %v2571 = vunpack.c.h.bf16 %v2517
  %v2572 = vunpack.c.l.bf16 %v2518
  %v2573 = vunpack.c.h.bf16 %v2518
  %v2574 = vunpack.c.l.bf16 %v2519
  %v2575 = vunpack.c.h.bf16 %v2519
  %v2576 = vunpack.c.l.bf16 %v2520
  %v2577 = vunpack.c.h.bf16 %v2520
  %v2578 = vunpack.c.l.bf16 %v2521
  %v2579 = vunpack.c.h.bf16 %v2521
  %v2580 = vunpack.c.l.bf16 %v2522
  %v2581 = vunpack.c.h.bf16 %v2522
  %v2582 = vunpack.c.l.bf16 %v2523
  %v2583 = vunpack.c.h.bf16 %v2523
  %v2584 = vunpack.c.l.bf16 %v2524
  %v2585 = vunpack.c.h.bf16 %v2524
  %v2586 = vunpack.c.l.bf16 %v2525
  %v2587 = vunpack.c.h.bf16 %v2525
  %v2588 = vunpack.c.l.bf16 %v2526
  %v2589 = vunpack.c.h.bf16 %v2526
  %v2590 = vunpack.c.l.bf16 %v2527
  %v2591 = vunpack.c.h.bf16 %v2527
  %2592 = vmatprep.subr.mxu0 %v2529
  %2593 = vmatpush1.msra.mxu0 %v2528
  %2594 = vmatprep.subr.mxu0 %v2531
  %2595 = vmatpush1.msra.mxu0 %v2530
  %2596 = vmatprep.subr.mxu0 %v2533
  %2597 = vmatpush1.msra.mxu0 %v2532
  %2598 = vmatprep.subr.mxu0 %v2535
  %2599 = vmatpush1.msra.mxu0 %v2534
  %2600 = vmatprep.subr.mxu0 %v2537
  %2601 = vmatpush1.msra.mxu0 %v2536
  %2602 = vmatprep.subr.mxu0 %v2539
  %2603 = vmatpush1.msra.mxu0 %v2538
  %2604 = vmatprep.subr.mxu0 %v2541
  %2605 = vmatpush1.msra.mxu0 %v2540
  %2606 = vmatprep.subr.mxu0 %v2543
  %2607 = vmatpush1.msra.mxu0 %v2542
  %2608 = vmatprep.subr.mxu0 %v2545
  %2609 = vmatpush1.msra.mxu0 %v2544
  %2610 = vmatprep.subr.mxu0 %v2547
  %2611 = vmatpush1.msra.mxu0 %v2546
  %2612 = vmatprep.subr.mxu0 %v2549
  %2613 = vmatpush1.msra.mxu0 %v2548
  %2614 = vmatprep.subr.mxu0 %v2551
  %2615 = vmatpush1.msra.mxu0 %v2550
  %2616 = vmatprep.subr.mxu0 %v2553
  %2617 = vmatpush1.msra.mxu0 %v2552
  %2618 = vmatprep.subr.mxu0 %v2555
  %2619 = vmatpush1.msra.mxu0 %v2554
  %2620 = vmatprep.subr.mxu0 %v2557
  %2621 = vmatpush1.msra.mxu0 %v2556
  %2622 = vmatprep.subr.mxu0 %v2559
  %2623 = vmatpush1.msra.mxu0 %v2558
  %2624 = vmatprep.subr.mxu0 %v2561
  %2625 = vmatpush1.msra.mxu0 %v2560
  %2626 = vmatprep.subr.mxu0 %v2563
  %2627 = vmatpush1.msra.mxu0 %v2562
  %2628 = vmatprep.subr.mxu0 %v2565
  %2629 = vmatpush1.msra.mxu0 %v2564
  %2630 = vmatprep.subr.mxu0 %v2567
  %2631 = vmatpush1.msra.mxu0 %v2566
  %2632 = vmatprep.subr.mxu0 %v2569
  %2633 = vmatpush1.msra.mxu0 %v2568
  %2634 = vmatprep.subr.mxu0 %v2571
  %2635 = vmatpush1.msra.mxu0 %v2570
  %2636 = vmatprep.subr.mxu0 %v2573
  %2637 = vmatpush1.msra.mxu0 %v2572
  %2638 = vmatprep.subr.mxu0 %v2575
  %2639 = vmatpush1.msra.mxu0 %v2574
  %2640 = vmatprep.subr.mxu0 %v2577
  %2641 = vmatpush1.msra.mxu0 %v2576
  %2642 = vmatprep.subr.mxu0 %v2579
  %2643 = vmatpush1.msra.mxu0 %v2578
  %2644 = vmatprep.subr.mxu0 %v2581
  %2645 = vmatpush1.msra.mxu0 %v2580
  %2646 = vmatprep.subr.mxu0 %v2583
  %2647 = vmatpush1.msra.mxu0 %v2582
  %2648 = vmatprep.subr.mxu0 %v2585
  %2649 = vmatpush1.msra.mxu0 %v2584
  %2650 = vmatprep.subr.mxu0 %v2587
  %2651 = vmatpush1.msra.mxu0 %v2586
  %2652 = vmatprep.subr.mxu0 %v2589
  %2653 = vmatpush1.msra.mxu0 %v2588
  %2654 = vmatprep.subr.mxu0 %v2591
  %2655 = vmatpush1.msra.mxu0 %v2590
  %2656 = vmatprep.mubr.f32.mxu0 %v2323
  %2657 = vmatmul.mubr.f32.gmra.mrb[0].mxu0 %v2322
  %v2658 = vpop.f32.mrb[0].mxu0
  %v2659 = vadd.f32 0.0, %v2658
  %v2660 = vpop.f32.mrb[0].mxu0
  %v2661 = vadd.f32 0.0, %v2660
  %2662 = vdwg.mxu0
  %s2663 = scalar_lea.vmem %s5, 512
  %v2664 = vld [vmem:[%s2663] sm:$0xff]
  %v2665 = vld [vmem:[%s2663 + $0x8] sm:$0xff]
  %v2666 = vld [vmem:[%s2663 + $0x10] sm:$0xff]
  %v2667 = vld [vmem:[%s2663 + $0x18] sm:$0xff]
  %v2668 = vld [vmem:[%s2663 + $0x20] sm:$0xff]
  %v2669 = vld [vmem:[%s2663 + $0x28] sm:$0xff]
  %v2670 = vld [vmem:[%s2663 + $0x30] sm:$0xff]
  %v2671 = vld [vmem:[%s2663 + $0x38] sm:$0xff]
  %v2672 = vld [vmem:[%s2663 + $0x40] sm:$0xff]
  %v2673 = vld [vmem:[%s2663 + $0x48] sm:$0xff]
  %v2674 = vld [vmem:[%s2663 + $0x50] sm:$0xff]
  %v2675 = vld [vmem:[%s2663 + $0x58] sm:$0xff]
  %v2676 = vld [vmem:[%s2663 + $0x60] sm:$0xff]
  %v2677 = vld [vmem:[%s2663 + $0x68] sm:$0xff]
  %v2678 = vld [vmem:[%s2663 + $0x70] sm:$0xff]
  %v2679 = vld [vmem:[%s2663 + $0x78] sm:$0xff]
  %v2680 = vld [vmem:[%s2663 + $0x80] sm:$0xff]
  %v2681 = vld [vmem:[%s2663 + $0x88] sm:$0xff]
  %v2682 = vld [vmem:[%s2663 + $0x90] sm:$0xff]
  %v2683 = vld [vmem:[%s2663 + $0x98] sm:$0xff]
  %v2684 = vld [vmem:[%s2663 + $0xa0] sm:$0xff]
  %v2685 = vld [vmem:[%s2663 + $0xa8] sm:$0xff]
  %v2686 = vld [vmem:[%s2663 + $0xb0] sm:$0xff]
  %v2687 = vld [vmem:[%s2663 + $0xb8] sm:$0xff]
  %v2688 = vld [vmem:[%s2663 + $0xc0] sm:$0xff]
  %v2689 = vld [vmem:[%s2663 + $0xc8] sm:$0xff]
  %v2690 = vld [vmem:[%s2663 + $0xd0] sm:$0xff]
  %v2691 = vld [vmem:[%s2663 + $0xd8] sm:$0xff]
  %v2692 = vld [vmem:[%s2663 + $0xe0] sm:$0xff]
  %v2693 = vld [vmem:[%s2663 + $0xe8] sm:$0xff]
  %v2694 = vld [vmem:[%s2663 + $0xf0] sm:$0xff]
  %v2695 = vld [vmem:[%s2663 + $0xf8] sm:$0xff]
  %v2696 = vunpack.c.l.bf16 %v2664
  %v2697 = vunpack.c.h.bf16 %v2664
  %v2698 = vunpack.c.l.bf16 %v2665
  %v2699 = vunpack.c.h.bf16 %v2665
  %v2700 = vunpack.c.l.bf16 %v2666
  %v2701 = vunpack.c.h.bf16 %v2666
  %v2702 = vunpack.c.l.bf16 %v2667
  %v2703 = vunpack.c.h.bf16 %v2667
  %v2704 = vunpack.c.l.bf16 %v2668
  %v2705 = vunpack.c.h.bf16 %v2668
  %v2706 = vunpack.c.l.bf16 %v2669
  %v2707 = vunpack.c.h.bf16 %v2669
  %v2708 = vunpack.c.l.bf16 %v2670
  %v2709 = vunpack.c.h.bf16 %v2670
  %v2710 = vunpack.c.l.bf16 %v2671
  %v2711 = vunpack.c.h.bf16 %v2671
  %v2712 = vunpack.c.l.bf16 %v2672
  %v2713 = vunpack.c.h.bf16 %v2672
  %v2714 = vunpack.c.l.bf16 %v2673
  %v2715 = vunpack.c.h.bf16 %v2673
  %v2716 = vunpack.c.l.bf16 %v2674
  %v2717 = vunpack.c.h.bf16 %v2674
  %v2718 = vunpack.c.l.bf16 %v2675
  %v2719 = vunpack.c.h.bf16 %v2675
  %v2720 = vunpack.c.l.bf16 %v2676
  %v2721 = vunpack.c.h.bf16 %v2676
  %v2722 = vunpack.c.l.bf16 %v2677
  %v2723 = vunpack.c.h.bf16 %v2677
  %v2724 = vunpack.c.l.bf16 %v2678
  %v2725 = vunpack.c.h.bf16 %v2678
  %v2726 = vunpack.c.l.bf16 %v2679
  %v2727 = vunpack.c.h.bf16 %v2679
  %v2728 = vunpack.c.l.bf16 %v2680
  %v2729 = vunpack.c.h.bf16 %v2680
  %v2730 = vunpack.c.l.bf16 %v2681
  %v2731 = vunpack.c.h.bf16 %v2681
  %v2732 = vunpack.c.l.bf16 %v2682
  %v2733 = vunpack.c.h.bf16 %v2682
  %v2734 = vunpack.c.l.bf16 %v2683
  %v2735 = vunpack.c.h.bf16 %v2683
  %v2736 = vunpack.c.l.bf16 %v2684
  %v2737 = vunpack.c.h.bf16 %v2684
  %v2738 = vunpack.c.l.bf16 %v2685
  %v2739 = vunpack.c.h.bf16 %v2685
  %v2740 = vunpack.c.l.bf16 %v2686
  %v2741 = vunpack.c.h.bf16 %v2686
  %v2742 = vunpack.c.l.bf16 %v2687
  %v2743 = vunpack.c.h.bf16 %v2687
  %v2744 = vunpack.c.l.bf16 %v2688
  %v2745 = vunpack.c.h.bf16 %v2688
  %v2746 = vunpack.c.l.bf16 %v2689
  %v2747 = vunpack.c.h.bf16 %v2689
  %v2748 = vunpack.c.l.bf16 %v2690
  %v2749 = vunpack.c.h.bf16 %v2690
  %v2750 = vunpack.c.l.bf16 %v2691
  %v2751 = vunpack.c.h.bf16 %v2691
  %v2752 = vunpack.c.l.bf16 %v2692
  %v2753 = vunpack.c.h.bf16 %v2692
  %v2754 = vunpack.c.l.bf16 %v2693
  %v2755 = vunpack.c.h.bf16 %v2693
  %v2756 = vunpack.c.l.bf16 %v2694
  %v2757 = vunpack.c.h.bf16 %v2694
  %v2758 = vunpack.c.l.bf16 %v2695
  %v2759 = vunpack.c.h.bf16 %v2695
  %2760 = vmatprep.subr.mxu0 %v2697
  %2761 = vmatpush1.msra.mxu0 %v2696
  %2762 = vmatprep.subr.mxu0 %v2699
  %2763 = vmatpush1.msra.mxu0 %v2698
  %2764 = vmatprep.subr.mxu0 %v2701
  %2765 = vmatpush1.msra.mxu0 %v2700
  %2766 = vmatprep.subr.mxu0 %v2703
  %2767 = vmatpush1.msra.mxu0 %v2702
  %2768 = vmatprep.subr.mxu0 %v2705
  %2769 = vmatpush1.msra.mxu0 %v2704
  %2770 = vmatprep.subr.mxu0 %v2707
  %2771 = vmatpush1.msra.mxu0 %v2706
  %2772 = vmatprep.subr.mxu0 %v2709
  %2773 = vmatpush1.msra.mxu0 %v2708
  %2774 = vmatprep.subr.mxu0 %v2711
  %2775 = vmatpush1.msra.mxu0 %v2710
  %2776 = vmatprep.subr.mxu0 %v2713
  %2777 = vmatpush1.msra.mxu0 %v2712
  %2778 = vmatprep.subr.mxu0 %v2715
  %2779 = vmatpush1.msra.mxu0 %v2714
  %2780 = vmatprep.subr.mxu0 %v2717
  %2781 = vmatpush1.msra.mxu0 %v2716
  %2782 = vmatprep.subr.mxu0 %v2719
  %2783 = vmatpush1.msra.mxu0 %v2718
  %2784 = vmatprep.subr.mxu0 %v2721
  %2785 = vmatpush1.msra.mxu0 %v2720
  %2786 = vmatprep.subr.mxu0 %v2723
  %2787 = vmatpush1.msra.mxu0 %v2722
  %2788 = vmatprep.subr.mxu0 %v2725
  %2789 = vmatpush1.msra.mxu0 %v2724
  %2790 = vmatprep.subr.mxu0 %v2727
  %2791 = vmatpush1.msra.mxu0 %v2726
  %2792 = vmatprep.subr.mxu0 %v2729
  %2793 = vmatpush1.msra.mxu0 %v2728
  %2794 = vmatprep.subr.mxu0 %v2731
  %2795 = vmatpush1.msra.mxu0 %v2730
  %2796 = vmatprep.subr.mxu0 %v2733
  %2797 = vmatpush1.msra.mxu0 %v2732
  %2798 = vmatprep.subr.mxu0 %v2735
  %2799 = vmatpush1.msra.mxu0 %v2734
  %2800 = vmatprep.subr.mxu0 %v2737
  %2801 = vmatpush1.msra.mxu0 %v2736
  %2802 = vmatprep.subr.mxu0 %v2739
  %2803 = vmatpush1.msra.mxu0 %v2738
  %2804 = vmatprep.subr.mxu0 %v2741
  %2805 = vmatpush1.msra.mxu0 %v2740
  %2806 = vmatprep.subr.mxu0 %v2743
  %2807 = vmatpush1.msra.mxu0 %v2742
  %2808 = vmatprep.subr.mxu0 %v2745
  %2809 = vmatpush1.msra.mxu0 %v2744
  %2810 = vmatprep.subr.mxu0 %v2747
  %2811 = vmatpush1.msra.mxu0 %v2746
  %2812 = vmatprep.subr.mxu0 %v2749
  %2813 = vmatpush1.msra.mxu0 %v2748
  %2814 = vmatprep.subr.mxu0 %v2751
  %2815 = vmatpush1.msra.mxu0 %v2750
  %2816 = vmatprep.subr.mxu0 %v2753
  %2817 = vmatpush1.msra.mxu0 %v2752
  %2818 = vmatprep.subr.mxu0 %v2755
  %2819 = vmatpush1.msra.mxu0 %v2754
  %2820 = vmatprep.subr.mxu0 %v2757
  %2821 = vmatpush1.msra.mxu0 %v2756
  %2822 = vmatprep.subr.mxu0 %v2759
  %2823 = vmatpush1.msra.mxu0 %v2758
  %2824 = vmatprep.mubr.f32.mxu0 %v2325
  %2825 = vmatmul.mubr.f32.gmra.mrb[0].mxu0 %v2324
  %v2826 = vpop.f32.mrb[0].mxu0
  %v2827 = vadd.f32 0.0, %v2826
  %v2828 = vpop.f32.mrb[0].mxu0
  %v2829 = vadd.f32 0.0, %v2828
  %2830 = vdwg.mxu0
  %s2831 = scalar_lea.vmem %s5, 768
  %v2832 = vld [vmem:[%s2831] sm:$0xff]
  %v2833 = vld [vmem:[%s2831 + $0x8] sm:$0xff]
  %v2834 = vld [vmem:[%s2831 + $0x10] sm:$0xff]
  %v2835 = vld [vmem:[%s2831 + $0x18] sm:$0xff]
  %v2836 = vld [vmem:[%s2831 + $0x20] sm:$0xff]
  %v2837 = vld [vmem:[%s2831 + $0x28] sm:$0xff]
  %v2838 = vld [vmem:[%s2831 + $0x30] sm:$0xff]
  %v2839 = vld [vmem:[%s2831 + $0x38] sm:$0xff]
  %v2840 = vld [vmem:[%s2831 + $0x40] sm:$0xff]
  %v2841 = vld [vmem:[%s2831 + $0x48] sm:$0xff]
  %v2842 = vld [vmem:[%s2831 + $0x50] sm:$0xff]
  %v2843 = vld [vmem:[%s2831 + $0x58] sm:$0xff]
  %v2844 = vld [vmem:[%s2831 + $0x60] sm:$0xff]
  %v2845 = vld [vmem:[%s2831 + $0x68] sm:$0xff]
  %v2846 = vld [vmem:[%s2831 + $0x70] sm:$0xff]
  %v2847 = vld [vmem:[%s2831 + $0x78] sm:$0xff]
  %v2848 = vld [vmem:[%s2831 + $0x80] sm:$0xff]
  %v2849 = vld [vmem:[%s2831 + $0x88] sm:$0xff]
  %v2850 = vld [vmem:[%s2831 + $0x90] sm:$0xff]
  %v2851 = vld [vmem:[%s2831 + $0x98] sm:$0xff]
  %v2852 = vld [vmem:[%s2831 + $0xa0] sm:$0xff]
  %v2853 = vld [vmem:[%s2831 + $0xa8] sm:$0xff]
  %v2854 = vld [vmem:[%s2831 + $0xb0] sm:$0xff]
  %v2855 = vld [vmem:[%s2831 + $0xb8] sm:$0xff]
  %v2856 = vld [vmem:[%s2831 + $0xc0] sm:$0xff]
  %v2857 = vld [vmem:[%s2831 + $0xc8] sm:$0xff]
  %v2858 = vld [vmem:[%s2831 + $0xd0] sm:$0xff]
  %v2859 = vld [vmem:[%s2831 + $0xd8] sm:$0xff]
  %v2860 = vld [vmem:[%s2831 + $0xe0] sm:$0xff]
  %v2861 = vld [vmem:[%s2831 + $0xe8] sm:$0xff]
  %v2862 = vld [vmem:[%s2831 + $0xf0] sm:$0xff]
  %v2863 = vld [vmem:[%s2831 + $0xf8] sm:$0xff]
  %v2864 = vunpack.c.l.bf16 %v2832
  %v2865 = vunpack.c.h.bf16 %v2832
  %v2866 = vunpack.c.l.bf16 %v2833
  %v2867 = vunpack.c.h.bf16 %v2833
  %v2868 = vunpack.c.l.bf16 %v2834
  %v2869 = vunpack.c.h.bf16 %v2834
  %v2870 = vunpack.c.l.bf16 %v2835
  %v2871 = vunpack.c.h.bf16 %v2835
  %v2872 = vunpack.c.l.bf16 %v2836
  %v2873 = vunpack.c.h.bf16 %v2836
  %v2874 = vunpack.c.l.bf16 %v2837
  %v2875 = vunpack.c.h.bf16 %v2837
  %v2876 = vunpack.c.l.bf16 %v2838
  %v2877 = vunpack.c.h.bf16 %v2838
  %v2878 = vunpack.c.l.bf16 %v2839
  %v2879 = vunpack.c.h.bf16 %v2839
  %v2880 = vunpack.c.l.bf16 %v2840
  %v2881 = vunpack.c.h.bf16 %v2840
  %v2882 = vunpack.c.l.bf16 %v2841
  %v2883 = vunpack.c.h.bf16 %v2841
  %v2884 = vunpack.c.l.bf16 %v2842
  %v2885 = vunpack.c.h.bf16 %v2842
  %v2886 = vunpack.c.l.bf16 %v2843
  %v2887 = vunpack.c.h.bf16 %v2843
  %v2888 = vunpack.c.l.bf16 %v2844
  %v2889 = vunpack.c.h.bf16 %v2844
  %v2890 = vunpack.c.l.bf16 %v2845
  %v2891 = vunpack.c.h.bf16 %v2845
  %v2892 = vunpack.c.l.bf16 %v2846
  %v2893 = vunpack.c.h.bf16 %v2846
  %v2894 = vunpack.c.l.bf16 %v2847
  %v2895 = vunpack.c.h.bf16 %v2847
  %v2896 = vunpack.c.l.bf16 %v2848
  %v2897 = vunpack.c.h.bf16 %v2848
  %v2898 = vunpack.c.l.bf16 %v2849
  %v2899 = vunpack.c.h.bf16 %v2849
  %v2900 = vunpack.c.l.bf16 %v2850
  %v2901 = vunpack.c.h.bf16 %v2850
  %v2902 = vunpack.c.l.bf16 %v2851
  %v2903 = vunpack.c.h.bf16 %v2851
  %v2904 = vunpack.c.l.bf16 %v2852
  %v2905 = vunpack.c.h.bf16 %v2852
  %v2906 = vunpack.c.l.bf16 %v2853
  %v2907 = vunpack.c.h.bf16 %v2853
  %v2908 = vunpack.c.l.bf16 %v2854
  %v2909 = vunpack.c.h.bf16 %v2854
  %v2910 = vunpack.c.l.bf16 %v2855
  %v2911 = vunpack.c.h.bf16 %v2855
  %v2912 = vunpack.c.l.bf16 %v2856
  %v2913 = vunpack.c.h.bf16 %v2856
  %v2914 = vunpack.c.l.bf16 %v2857
  %v2915 = vunpack.c.h.bf16 %v2857
  %v2916 = vunpack.c.l.bf16 %v2858
  %v2917 = vunpack.c.h.bf16 %v2858
  %v2918 = vunpack.c.l.bf16 %v2859
  %v2919 = vunpack.c.h.bf16 %v2859
  %v2920 = vunpack.c.l.bf16 %v2860
  %v2921 = vunpack.c.h.bf16 %v2860
  %v2922 = vunpack.c.l.bf16 %v2861
  %v2923 = vunpack.c.h.bf16 %v2861
  %v2924 = vunpack.c.l.bf16 %v2862
  %v2925 = vunpack.c.h.bf16 %v2862
  %v2926 = vunpack.c.l.bf16 %v2863
  %v2927 = vunpack.c.h.bf16 %v2863
  %2928 = vmatprep.subr.mxu0 %v2865
  %2929 = vmatpush1.msra.mxu0 %v2864
  %2930 = vmatprep.subr.mxu0 %v2867
  %2931 = vmatpush1.msra.mxu0 %v2866
  %2932 = vmatprep.subr.mxu0 %v2869
  %2933 = vmatpush1.msra.mxu0 %v2868
  %2934 = vmatprep.subr.mxu0 %v2871
  %2935 = vmatpush1.msra.mxu0 %v2870
  %2936 = vmatprep.subr.mxu0 %v2873
  %2937 = vmatpush1.msra.mxu0 %v2872
  %2938 = vmatprep.subr.mxu0 %v2875
  %2939 = vmatpush1.msra.mxu0 %v2874
  %2940 = vmatprep.subr.mxu0 %v2877
  %2941 = vmatpush1.msra.mxu0 %v2876
  %2942 = vmatprep.subr.mxu0 %v2879
  %2943 = vmatpush1.msra.mxu0 %v2878
  %2944 = vmatprep.subr.mxu0 %v2881
  %2945 = vmatpush1.msra.mxu0 %v2880
  %2946 = vmatprep.subr.mxu0 %v2883
  %2947 = vmatpush1.msra.mxu0 %v2882
  %2948 = vmatprep.subr.mxu0 %v2885
  %2949 = vmatpush1.msra.mxu0 %v2884
  %2950 = vmatprep.subr.mxu0 %v2887
  %2951 = vmatpush1.msra.mxu0 %v2886
  %2952 = vmatprep.subr.mxu0 %v2889
  %2953 = vmatpush1.msra.mxu0 %v2888
  %2954 = vmatprep.subr.mxu0 %v2891
  %2955 = vmatpush1.msra.mxu0 %v2890
  %2956 = vmatprep.subr.mxu0 %v2893
  %2957 = vmatpush1.msra.mxu0 %v2892
  %2958 = vmatprep.subr.mxu0 %v2895
  %2959 = vmatpush1.msra.mxu0 %v2894
  %2960 = vmatprep.subr.mxu0 %v2897
  %2961 = vmatpush1.msra.mxu0 %v2896
  %2962 = vmatprep.subr.mxu0 %v2899
  %2963 = vmatpush1.msra.mxu0 %v2898
  %2964 = vmatprep.subr.mxu0 %v2901
  %2965 = vmatpush1.msra.mxu0 %v2900
  %2966 = vmatprep.subr.mxu0 %v2903
  %2967 = vmatpush1.msra.mxu0 %v2902
  %2968 = vmatprep.subr.mxu0 %v2905
  %2969 = vmatpush1.msra.mxu0 %v2904
  %2970 = vmatprep.subr.mxu0 %v2907
  %2971 = vmatpush1.msra.mxu0 %v2906
  %2972 = vmatprep.subr.mxu0 %v2909
  %2973 = vmatpush1.msra.mxu0 %v2908
  %2974 = vmatprep.subr.mxu0 %v2911
  %2975 = vmatpush1.msra.mxu0 %v2910
  %2976 = vmatprep.subr.mxu0 %v2913
  %2977 = vmatpush1.msra.mxu0 %v2912
  %2978 = vmatprep.subr.mxu0 %v2915
  %2979 = vmatpush1.msra.mxu0 %v2914
  %2980 = vmatprep.subr.mxu0 %v2917
  %2981 = vmatpush1.msra.mxu0 %v2916
  %2982 = vmatprep.subr.mxu0 %v2919
  %2983 = vmatpush1.msra.mxu0 %v2918
  %2984 = vmatprep.subr.mxu0 %v2921
  %2985 = vmatpush1.msra.mxu0 %v2920
  %2986 = vmatprep.subr.mxu0 %v2923
  %2987 = vmatpush1.msra.mxu0 %v2922
  %2988 = vmatprep.subr.mxu0 %v2925
  %2989 = vmatpush1.msra.mxu0 %v2924
  %2990 = vmatprep.subr.mxu0 %v2927
  %2991 = vmatpush1.msra.mxu0 %v2926
  %2992 = vmatprep.mubr.f32.mxu0 %v2327
  %2993 = vmatmul.mubr.f32.gmra.mrb[0].mxu0 %v2326
  %v2994 = vpop.f32.mrb[0].mxu0
  %v2995 = vadd.f32 0.0, %v2994
  %v2996 = vpop.f32.mrb[0].mxu0
  %v2997 = vadd.f32 0.0, %v2996
  %2998 = vdwg.mxu0
  %s2999 = scalar_lea.vmem %s7, 7
  %v3000 = vld [vmem:[%s2999] ss:$8 sm:$0xf]
  %v3001 = vld [vmem:[%s2999] ss:$8 sm:$0xf0]
  %v3002 = vor.u32 %v3000, %v3001
  %v3004 = vlaneseq
  %v3005 = vshrl.u32 %v3004, 7
  %v3006 = vsub.s32 0, %v3005
  %v3007 = vrot.slane %v3002, %v3006
  %v3008 = vlaneseq
  %v3009 = vshrl.u32 %v3008, 7
  %v3010 = vsub.s32 1, %v3009
  %v3011 = vrot.slane %v3002, %v3010
  %v3012 = vlaneseq
  %v3013 = vshrl.u32 %v3012, 7
  %v3014 = vsub.s32 2, %v3013
  %v3015 = vrot.slane %v3002, %v3014
  %v3016 = vlaneseq
  %v3017 = vshrl.u32 %v3016, 7
  %v3018 = vsub.s32 3, %v3017
  %v3019 = vrot.slane %v3002, %v3018
  %v3020 = vlaneseq
  %v3021 = vshrl.u32 %v3020, 7
  %v3022 = vsub.s32 4, %v3021
  %v3023 = vrot.slane %v3002, %v3022
  %v3024 = vlaneseq
  %v3025 = vshrl.u32 %v3024, 7
  %v3026 = vsub.s32 5, %v3025
  %v3027 = vrot.slane %v3002, %v3026
  %v3028 = vlaneseq
  %v3029 = vshrl.u32 %v3028, 7
  %v3030 = vsub.s32 6, %v3029
  %v3031 = vrot.slane %v3002, %v3030
  %v3032 = vlaneseq
  %v3033 = vshrl.u32 %v3032, 7
  %v3034 = vsub.s32 7, %v3033
  %v3035 = vrot.slane %v3002, %v3034
  %v3044 = vadd.f32 %v2491, %v3007
  %v3045 = vadd.f32 %v2493, %v3011
  %v3046 = vadd.f32 %v2659, %v3015
  %v3047 = vadd.f32 %v2661, %v3019
  %v3048 = vadd.f32 %v2827, %v3023
  %v3049 = vadd.f32 %v2829, %v3027
  %v3050 = vadd.f32 %v2995, %v3031
  %v3051 = vadd.f32 %v2997, %v3035
  %v3052 = vmax.f32 %v3044, 0.0
  %v3053 = vmax.f32 %v3045, 0.0
  %v3054 = vmax.f32 %v3046, 0.0
  %v3055 = vmax.f32 %v3047, 0.0
  %v3056 = vmax.f32 %v3048, 0.0
  %v3057 = vmax.f32 %v3049, 0.0
  %v3058 = vmax.f32 %v3050, 0.0
  %v3059 = vmax.f32 %v3051, 0.0
  %v3060 = vld [vmem:[%s6] sm:$0xf]
  %v3061 = vld [vmem:[%s6 + $0x4] sm:$0xf]
  %v3062 = vld [vmem:[%s6 + $0x8] sm:$0xf]
  %v3063 = vld [vmem:[%s6 + $0xc] sm:$0xf]
  %v3064 = vld [vmem:[%s6 + $0x10] sm:$0xf]
  %v3065 = vld [vmem:[%s6 + $0x14] sm:$0xf]
  %v3066 = vld [vmem:[%s6 + $0x18] sm:$0xf]
  %v3067 = vld [vmem:[%s6 + $0x1c] sm:$0xf]
  %v3068 = vld [vmem:[%s6 + $0x20] sm:$0xf]
  %v3069 = vld [vmem:[%s6 + $0x24] sm:$0xf]
  %v3070 = vld [vmem:[%s6 + $0x28] sm:$0xf]
  %v3071 = vld [vmem:[%s6 + $0x2c] sm:$0xf]
  %v3072 = vld [vmem:[%s6 + $0x30] sm:$0xf]
  %v3073 = vld [vmem:[%s6 + $0x34] sm:$0xf]
  %v3074 = vld [vmem:[%s6 + $0x38] sm:$0xf]
  %v3075 = vld [vmem:[%s6 + $0x3c] sm:$0xf]
  %v3076 = vld [vmem:[%s6 + $0x40] sm:$0xf]
  %v3077 = vld [vmem:[%s6 + $0x44] sm:$0xf]
  %v3078 = vld [vmem:[%s6 + $0x48] sm:$0xf]
  %v3079 = vld [vmem:[%s6 + $0x4c] sm:$0xf]
  %v3080 = vld [vmem:[%s6 + $0x50] sm:$0xf]
  %v3081 = vld [vmem:[%s6 + $0x54] sm:$0xf]
  %v3082 = vld [vmem:[%s6 + $0x58] sm:$0xf]
  %v3083 = vld [vmem:[%s6 + $0x5c] sm:$0xf]
  %v3084 = vld [vmem:[%s6 + $0x60] sm:$0xf]
  %v3085 = vld [vmem:[%s6 + $0x64] sm:$0xf]
  %v3086 = vld [vmem:[%s6 + $0x68] sm:$0xf]
  %v3087 = vld [vmem:[%s6 + $0x6c] sm:$0xf]
  %v3088 = vld [vmem:[%s6 + $0x70] sm:$0xf]
  %v3089 = vld [vmem:[%s6 + $0x74] sm:$0xf]
  %v3090 = vld [vmem:[%s6 + $0x78] sm:$0xf]
  %v3091 = vld [vmem:[%s6 + $0x7c] sm:$0xf]
  %v3092 = vld [vmem:[%s6 + $0x80] sm:$0xf]
  %v3093 = vld [vmem:[%s6 + $0x84] sm:$0xf]
  %v3094 = vld [vmem:[%s6 + $0x88] sm:$0xf]
  %v3095 = vld [vmem:[%s6 + $0x8c] sm:$0xf]
  %v3096 = vld [vmem:[%s6 + $0x90] sm:$0xf]
  %v3097 = vld [vmem:[%s6 + $0x94] sm:$0xf]
  %v3098 = vld [vmem:[%s6 + $0x98] sm:$0xf]
  %v3099 = vld [vmem:[%s6 + $0x9c] sm:$0xf]
  %v3100 = vld [vmem:[%s6 + $0xa0] sm:$0xf]
  %v3101 = vld [vmem:[%s6 + $0xa4] sm:$0xf]
  %v3102 = vld [vmem:[%s6 + $0xa8] sm:$0xf]
  %v3103 = vld [vmem:[%s6 + $0xac] sm:$0xf]
  %v3104 = vld [vmem:[%s6 + $0xb0] sm:$0xf]
  %v3105 = vld [vmem:[%s6 + $0xb4] sm:$0xf]
  %v3106 = vld [vmem:[%s6 + $0xb8] sm:$0xf]
  %v3107 = vld [vmem:[%s6 + $0xbc] sm:$0xf]
  %v3108 = vld [vmem:[%s6 + $0xc0] sm:$0xf]
  %v3109 = vld [vmem:[%s6 + $0xc4] sm:$0xf]
  %v3110 = vld [vmem:[%s6 + $0xc8] sm:$0xf]
  %v3111 = vld [vmem:[%s6 + $0xcc] sm:$0xf]
  %v3112 = vld [vmem:[%s6 + $0xd0] sm:$0xf]
  %v3113 = vld [vmem:[%s6 + $0xd4] sm:$0xf]
  %v3114 = vld [vmem:[%s6 + $0xd8] sm:$0xf]
  %v3115 = vld [vmem:[%s6 + $0xdc] sm:$0xf]
  %v3116 = vld [vmem:[%s6 + $0xe0] sm:$0xf]
  %v3117 = vld [vmem:[%s6 + $0xe4] sm:$0xf]
  %v3118 = vld [vmem:[%s6 + $0xe8] sm:$0xf]
  %v3119 = vld [vmem:[%s6 + $0xec] sm:$0xf]
  %v3120 = vld [vmem:[%s6 + $0xf0] sm:$0xf]
  %v3121 = vld [vmem:[%s6 + $0xf4] sm:$0xf]
  %v3122 = vld [vmem:[%s6 + $0xf8] sm:$0xf]
  %v3123 = vld [vmem:[%s6 + $0xfc] sm:$0xf]
  %v3124 = vld [vmem:[%s6 + $0x100] sm:$0xf]
  %v3125 = vld [vmem:[%s6 + $0x104] sm:$0xf]
  %v3126 = vld [vmem:[%s6 + $0x108] sm:$0xf]
  %v3127 = vld [vmem:[%s6 + $0x10c] sm:$0xf]
  %v3128 = vld [vmem:[%s6 + $0x110] sm:$0xf]
  %v3129 = vld [vmem:[%s6 + $0x114] sm:$0xf]
  %v3130 = vld [vmem:[%s6 + $0x118] sm:$0xf]
  %v3131 = vld [vmem:[%s6 + $0x11c] sm:$0xf]
  %v3132 = vld [vmem:[%s6 + $0x120] sm:$0xf]
  %v3133 = vld [vmem:[%s6 + $0x124] sm:$0xf]
  %v3134 = vld [vmem:[%s6 + $0x128] sm:$0xf]
  %v3135 = vld [vmem:[%s6 + $0x12c] sm:$0xf]
  %v3136 = vld [vmem:[%s6 + $0x130] sm:$0xf]
  %v3137 = vld [vmem:[%s6 + $0x134] sm:$0xf]
  %v3138 = vld [vmem:[%s6 + $0x138] sm:$0xf]
  %v3139 = vld [vmem:[%s6 + $0x13c] sm:$0xf]
  %v3140 = vld [vmem:[%s6 + $0x140] sm:$0xf]
  %v3141 = vld [vmem:[%s6 + $0x144] sm:$0xf]
  %v3142 = vld [vmem:[%s6 + $0x148] sm:$0xf]
  %v3143 = vld [vmem:[%s6 + $0x14c] sm:$0xf]
  %v3144 = vld [vmem:[%s6 + $0x150] sm:$0xf]
  %v3145 = vld [vmem:[%s6 + $0x154] sm:$0xf]
  %v3146 = vld [vmem:[%s6 + $0x158] sm:$0xf]
  %v3147 = vld [vmem:[%s6 + $0x15c] sm:$0xf]
  %v3148 = vld [vmem:[%s6 + $0x160] sm:$0xf]
  %v3149 = vld [vmem:[%s6 + $0x164] sm:$0xf]
  %v3150 = vld [vmem:[%s6 + $0x168] sm:$0xf]
  %v3151 = vld [vmem:[%s6 + $0x16c] sm:$0xf]
  %v3152 = vld [vmem:[%s6 + $0x170] sm:$0xf]
  %v3153 = vld [vmem:[%s6 + $0x174] sm:$0xf]
  %v3154 = vld [vmem:[%s6 + $0x178] sm:$0xf]
  %v3155 = vld [vmem:[%s6 + $0x17c] sm:$0xf]
  %v3156 = vld [vmem:[%s6 + $0x180] sm:$0xf]
  %v3157 = vld [vmem:[%s6 + $0x184] sm:$0xf]
  %v3158 = vld [vmem:[%s6 + $0x188] sm:$0xf]
  %v3159 = vld [vmem:[%s6 + $0x18c] sm:$0xf]
  %v3160 = vld [vmem:[%s6 + $0x190] sm:$0xf]
  %v3161 = vld [vmem:[%s6 + $0x194] sm:$0xf]
  %v3162 = vld [vmem:[%s6 + $0x198] sm:$0xf]
  %v3163 = vld [vmem:[%s6 + $0x19c] sm:$0xf]
  %v3164 = vld [vmem:[%s6 + $0x1a0] sm:$0xf]
  %v3165 = vld [vmem:[%s6 + $0x1a4] sm:$0xf]
  %v3166 = vld [vmem:[%s6 + $0x1a8] sm:$0xf]
  %v3167 = vld [vmem:[%s6 + $0x1ac] sm:$0xf]
  %v3168 = vld [vmem:[%s6 + $0x1b0] sm:$0xf]
  %v3169 = vld [vmem:[%s6 + $0x1b4] sm:$0xf]
  %v3170 = vld [vmem:[%s6 + $0x1b8] sm:$0xf]
  %v3171 = vld [vmem:[%s6 + $0x1bc] sm:$0xf]
  %v3172 = vld [vmem:[%s6 + $0x1c0] sm:$0xf]
  %v3173 = vld [vmem:[%s6 + $0x1c4] sm:$0xf]
  %v3174 = vld [vmem:[%s6 + $0x1c8] sm:$0xf]
  %v3175 = vld [vmem:[%s6 + $0x1cc] sm:$0xf]
  %v3176 = vld [vmem:[%s6 + $0x1d0] sm:$0xf]
  %v3177 = vld [vmem:[%s6 + $0x1d4] sm:$0xf]
  %v3178 = vld [vmem:[%s6 + $0x1d8] sm:$0xf]
  %v3179 = vld [vmem:[%s6 + $0x1dc] sm:$0xf]
  %v3180 = vld [vmem:[%s6 + $0x1e0] sm:$0xf]
  %v3181 = vld [vmem:[%s6 + $0x1e4] sm:$0xf]
  %v3182 = vld [vmem:[%s6 + $0x1e8] sm:$0xf]
  %v3183 = vld [vmem:[%s6 + $0x1ec] sm:$0xf]
  %v3184 = vld [vmem:[%s6 + $0x1f0] sm:$0xf]
  %v3185 = vld [vmem:[%s6 + $0x1f4] sm:$0xf]
  %v3186 = vld [vmem:[%s6 + $0x1f8] sm:$0xf]
  %v3187 = vld [vmem:[%s6 + $0x1fc] sm:$0xf]
  %v3188 = vunpack.c.l.bf16 %v3060
  %v3189 = vunpack.c.l.bf16 %v3061
  %v3190 = vunpack.c.l.bf16 %v3062
  %v3191 = vunpack.c.l.bf16 %v3063
  %v3192 = vunpack.c.l.bf16 %v3064
  %v3193 = vunpack.c.l.bf16 %v3065
  %v3194 = vunpack.c.l.bf16 %v3066
  %v3195 = vunpack.c.l.bf16 %v3067
  %v3196 = vunpack.c.l.bf16 %v3068
  %v3197 = vunpack.c.l.bf16 %v3069
  %v3198 = vunpack.c.l.bf16 %v3070
  %v3199 = vunpack.c.l.bf16 %v3071
  %v3200 = vunpack.c.l.bf16 %v3072
  %v3201 = vunpack.c.l.bf16 %v3073
  %v3202 = vunpack.c.l.bf16 %v3074
  %v3203 = vunpack.c.l.bf16 %v3075
  %v3204 = vunpack.c.l.bf16 %v3076
  %v3205 = vunpack.c.l.bf16 %v3077
  %v3206 = vunpack.c.l.bf16 %v3078
  %v3207 = vunpack.c.l.bf16 %v3079
  %v3208 = vunpack.c.l.bf16 %v3080
  %v3209 = vunpack.c.l.bf16 %v3081
  %v3210 = vunpack.c.l.bf16 %v3082
  %v3211 = vunpack.c.l.bf16 %v3083
  %v3212 = vunpack.c.l.bf16 %v3084
  %v3213 = vunpack.c.l.bf16 %v3085
  %v3214 = vunpack.c.l.bf16 %v3086
  %v3215 = vunpack.c.l.bf16 %v3087
  %v3216 = vunpack.c.l.bf16 %v3088
  %v3217 = vunpack.c.l.bf16 %v3089
  %v3218 = vunpack.c.l.bf16 %v3090
  %v3219 = vunpack.c.l.bf16 %v3091
  %v3220 = vunpack.c.l.bf16 %v3092
  %v3221 = vunpack.c.l.bf16 %v3093
  %v3222 = vunpack.c.l.bf16 %v3094
  %v3223 = vunpack.c.l.bf16 %v3095
  %v3224 = vunpack.c.l.bf16 %v3096
  %v3225 = vunpack.c.l.bf16 %v3097
  %v3226 = vunpack.c.l.bf16 %v3098
  %v3227 = vunpack.c.l.bf16 %v3099
  %v3228 = vunpack.c.l.bf16 %v3100
  %v3229 = vunpack.c.l.bf16 %v3101
  %v3230 = vunpack.c.l.bf16 %v3102
  %v3231 = vunpack.c.l.bf16 %v3103
  %v3232 = vunpack.c.l.bf16 %v3104
  %v3233 = vunpack.c.l.bf16 %v3105
  %v3234 = vunpack.c.l.bf16 %v3106
  %v3235 = vunpack.c.l.bf16 %v3107
  %v3236 = vunpack.c.l.bf16 %v3108
  %v3237 = vunpack.c.l.bf16 %v3109
  %v3238 = vunpack.c.l.bf16 %v3110
  %v3239 = vunpack.c.l.bf16 %v3111
  %v3240 = vunpack.c.l.bf16 %v3112
  %v3241 = vunpack.c.l.bf16 %v3113
  %v3242 = vunpack.c.l.bf16 %v3114
  %v3243 = vunpack.c.l.bf16 %v3115
  %v3244 = vunpack.c.l.bf16 %v3116
  %v3245 = vunpack.c.l.bf16 %v3117
  %v3246 = vunpack.c.l.bf16 %v3118
  %v3247 = vunpack.c.l.bf16 %v3119
  %v3248 = vunpack.c.l.bf16 %v3120
  %v3249 = vunpack.c.l.bf16 %v3121
  %v3250 = vunpack.c.l.bf16 %v3122
  %v3251 = vunpack.c.l.bf16 %v3123
  %v3252 = vunpack.c.l.bf16 %v3124
  %v3253 = vunpack.c.l.bf16 %v3125
  %v3254 = vunpack.c.l.bf16 %v3126
  %v3255 = vunpack.c.l.bf16 %v3127
  %v3256 = vunpack.c.l.bf16 %v3128
  %v3257 = vunpack.c.l.bf16 %v3129
  %v3258 = vunpack.c.l.bf16 %v3130
  %v3259 = vunpack.c.l.bf16 %v3131
  %v3260 = vunpack.c.l.bf16 %v3132
  %v3261 = vunpack.c.l.bf16 %v3133
  %v3262 = vunpack.c.l.bf16 %v3134
  %v3263 = vunpack.c.l.bf16 %v3135
  %v3264 = vunpack.c.l.bf16 %v3136
  %v3265 = vunpack.c.l.bf16 %v3137
  %v3266 = vunpack.c.l.bf16 %v3138
  %v3267 = vunpack.c.l.bf16 %v3139
  %v3268 = vunpack.c.l.bf16 %v3140
  %v3269 = vunpack.c.l.bf16 %v3141
  %v3270 = vunpack.c.l.bf16 %v3142
  %v3271 = vunpack.c.l.bf16 %v3143
  %v3272 = vunpack.c.l.bf16 %v3144
  %v3273 = vunpack.c.l.bf16 %v3145
  %v3274 = vunpack.c.l.bf16 %v3146
  %v3275 = vunpack.c.l.bf16 %v3147
  %v3276 = vunpack.c.l.bf16 %v3148
  %v3277 = vunpack.c.l.bf16 %v3149
  %v3278 = vunpack.c.l.bf16 %v3150
  %v3279 = vunpack.c.l.bf16 %v3151
  %v3280 = vunpack.c.l.bf16 %v3152
  %v3281 = vunpack.c.l.bf16 %v3153
  %v3282 = vunpack.c.l.bf16 %v3154
  %v3283 = vunpack.c.l.bf16 %v3155
  %v3284 = vunpack.c.l.bf16 %v3156
  %v3285 = vunpack.c.l.bf16 %v3157
  %v3286 = vunpack.c.l.bf16 %v3158
  %v3287 = vunpack.c.l.bf16 %v3159
  %v3288 = vunpack.c.l.bf16 %v3160
  %v3289 = vunpack.c.l.bf16 %v3161
  %v3290 = vunpack.c.l.bf16 %v3162
  %v3291 = vunpack.c.l.bf16 %v3163
  %v3292 = vunpack.c.l.bf16 %v3164
  %v3293 = vunpack.c.l.bf16 %v3165
  %v3294 = vunpack.c.l.bf16 %v3166
  %v3295 = vunpack.c.l.bf16 %v3167
  %v3296 = vunpack.c.l.bf16 %v3168
  %v3297 = vunpack.c.l.bf16 %v3169
  %v3298 = vunpack.c.l.bf16 %v3170
  %v3299 = vunpack.c.l.bf16 %v3171
  %v3300 = vunpack.c.l.bf16 %v3172
  %v3301 = vunpack.c.l.bf16 %v3173
  %v3302 = vunpack.c.l.bf16 %v3174
  %v3303 = vunpack.c.l.bf16 %v3175
  %v3304 = vunpack.c.l.bf16 %v3176
  %v3305 = vunpack.c.l.bf16 %v3177
  %v3306 = vunpack.c.l.bf16 %v3178
  %v3307 = vunpack.c.l.bf16 %v3179
  %v3308 = vunpack.c.l.bf16 %v3180
  %v3309 = vunpack.c.l.bf16 %v3181
  %v3310 = vunpack.c.l.bf16 %v3182
  %v3311 = vunpack.c.l.bf16 %v3183
  %v3312 = vunpack.c.l.bf16 %v3184
  %v3313 = vunpack.c.l.bf16 %v3185
  %v3314 = vunpack.c.l.bf16 %v3186
  %v3315 = vunpack.c.l.bf16 %v3187
  %v3316 = vld [vmem:[%s7 + $0x40] ss:$0 sm:$0xff]
  %3317 = vmatprep.subr.mxu0 0.0
  %3318 = vmatpush1.msra.mxu0 %v3188
  %3319 = vmatprep.subr.mxu0 0.0
  %3320 = vmatpush1.msra.mxu0 %v3189
  %3321 = vmatprep.subr.mxu0 0.0
  %3322 = vmatpush1.msra.mxu0 %v3190
  %3323 = vmatprep.subr.mxu0 0.0
  %3324 = vmatpush1.msra.mxu0 %v3191
  %3325 = vmatprep.subr.mxu0 0.0
  %3326 = vmatpush1.msra.mxu0 %v3192
  %3327 = vmatprep.subr.mxu0 0.0
  %3328 = vmatpush1.msra.mxu0 %v3193
  %3329 = vmatprep.subr.mxu0 0.0
  %3330 = vmatpush1.msra.mxu0 %v3194
  %3331 = vmatprep.subr.mxu0 0.0
  %3332 = vmatpush1.msra.mxu0 %v3195
  %3333 = vmatprep.subr.mxu0 0.0
  %3334 = vmatpush1.msra.mxu0 %v3196
  %3335 = vmatprep.subr.mxu0 0.0
  %3336 = vmatpush1.msra.mxu0 %v3197
  %3337 = vmatprep.subr.mxu0 0.0
  %3338 = vmatpush1.msra.mxu0 %v3198
  %3339 = vmatprep.subr.mxu0 0.0
  %3340 = vmatpush1.msra.mxu0 %v3199
  %3341 = vmatprep.subr.mxu0 0.0
  %3342 = vmatpush1.msra.mxu0 %v3200
  %3343 = vmatprep.subr.mxu0 0.0
  %3344 = vmatpush1.msra.mxu0 %v3201
  %3345 = vmatprep.subr.mxu0 0.0
  %3346 = vmatpush1.msra.mxu0 %v3202
  %3347 = vmatprep.subr.mxu0 0.0
  %3348 = vmatpush1.msra.mxu0 %v3203
  %3349 = vmatprep.subr.mxu0 0.0
  %3350 = vmatpush1.msra.mxu0 %v3204
  %3351 = vmatprep.subr.mxu0 0.0
  %3352 = vmatpush1.msra.mxu0 %v3205
  %3353 = vmatprep.subr.mxu0 0.0
  %3354 = vmatpush1.msra.mxu0 %v3206
  %3355 = vmatprep.subr.mxu0 0.0
  %3356 = vmatpush1.msra.mxu0 %v3207
  %3357 = vmatprep.subr.mxu0 0.0
  %3358 = vmatpush1.msra.mxu0 %v3208
  %3359 = vmatprep.subr.mxu0 0.0
  %3360 = vmatpush1.msra.mxu0 %v3209
  %3361 = vmatprep.subr.mxu0 0.0
  %3362 = vmatpush1.msra.mxu0 %v3210
  %3363 = vmatprep.subr.mxu0 0.0
  %3364 = vmatpush1.msra.mxu0 %v3211
  %3365 = vmatprep.subr.mxu0 0.0
  %3366 = vmatpush1.msra.mxu0 %v3212
  %3367 = vmatprep.subr.mxu0 0.0
  %3368 = vmatpush1.msra.mxu0 %v3213
  %3369 = vmatprep.subr.mxu0 0.0
  %3370 = vmatpush1.msra.mxu0 %v3214
  %3371 = vmatprep.subr.mxu0 0.0
  %3372 = vmatpush1.msra.mxu0 %v3215
  %3373 = vmatprep.subr.mxu0 0.0
  %3374 = vmatpush1.msra.mxu0 %v3216
  %3375 = vmatprep.subr.mxu0 0.0
  %3376 = vmatpush1.msra.mxu0 %v3217
  %3377 = vmatprep.subr.mxu0 0.0
  %3378 = vmatpush1.msra.mxu0 %v3218
  %3379 = vmatprep.subr.mxu0 0.0
  %3380 = vmatpush1.msra.mxu0 %v3219
  %3381 = vmatprep.mubr.f32.mxu0 %v3053
  %3382 = vmatmul.mubr.f32.gmra.mrb[0].mxu0 %v3052
  %v3383 = vpop.f32.mrb[0].mxu0
  %v3384 = vadd.f32 %v3316, %v3383
  %v3385 = vpop.f32.mrb[0].mxu0
  %3386 = vdwg.mxu0
  %3387 = vmatprep.subr.mxu0 0.0
  %3388 = vmatpush1.msra.mxu0 %v3220
  %3389 = vmatprep.subr.mxu0 0.0
  %3390 = vmatpush1.msra.mxu0 %v3221
  %3391 = vmatprep.subr.mxu0 0.0
  %3392 = vmatpush1.msra.mxu0 %v3222
  %3393 = vmatprep.subr.mxu0 0.0
  %3394 = vmatpush1.msra.mxu0 %v3223
  %3395 = vmatprep.subr.mxu0 0.0
  %3396 = vmatpush1.msra.mxu0 %v3224
  %3397 = vmatprep.subr.mxu0 0.0
  %3398 = vmatpush1.msra.mxu0 %v3225
  %3399 = vmatprep.subr.mxu0 0.0
  %3400 = vmatpush1.msra.mxu0 %v3226
  %3401 = vmatprep.subr.mxu0 0.0
  %3402 = vmatpush1.msra.mxu0 %v3227
  %3403 = vmatprep.subr.mxu0 0.0
  %3404 = vmatpush1.msra.mxu0 %v3228
  %3405 = vmatprep.subr.mxu0 0.0
  %3406 = vmatpush1.msra.mxu0 %v3229
  %3407 = vmatprep.subr.mxu0 0.0
  %3408 = vmatpush1.msra.mxu0 %v3230
  %3409 = vmatprep.subr.mxu0 0.0
  %3410 = vmatpush1.msra.mxu0 %v3231
  %3411 = vmatprep.subr.mxu0 0.0
  %3412 = vmatpush1.msra.mxu0 %v3232
  %3413 = vmatprep.subr.mxu0 0.0
  %3414 = vmatpush1.msra.mxu0 %v3233
  %3415 = vmatprep.subr.mxu0 0.0
  %3416 = vmatpush1.msra.mxu0 %v3234
  %3417 = vmatprep.subr.mxu0 0.0
  %3418 = vmatpush1.msra.mxu0 %v3235
  %3419 = vmatprep.subr.mxu0 0.0
  %3420 = vmatpush1.msra.mxu0 %v3236
  %3421 = vmatprep.subr.mxu0 0.0
  %3422 = vmatpush1.msra.mxu0 %v3237
  %3423 = vmatprep.subr.mxu0 0.0
  %3424 = vmatpush1.msra.mxu0 %v3238
  %3425 = vmatprep.subr.mxu0 0.0
  %3426 = vmatpush1.msra.mxu0 %v3239
  %3427 = vmatprep.subr.mxu0 0.0
  %3428 = vmatpush1.msra.mxu0 %v3240
  %3429 = vmatprep.subr.mxu0 0.0
  %3430 = vmatpush1.msra.mxu0 %v3241
  %3431 = vmatprep.subr.mxu0 0.0
  %3432 = vmatpush1.msra.mxu0 %v3242
  %3433 = vmatprep.subr.mxu0 0.0
  %3434 = vmatpush1.msra.mxu0 %v3243
  %3435 = vmatprep.subr.mxu0 0.0
  %3436 = vmatpush1.msra.mxu0 %v3244
  %3437 = vmatprep.subr.mxu0 0.0
  %3438 = vmatpush1.msra.mxu0 %v3245
  %3439 = vmatprep.subr.mxu0 0.0
  %3440 = vmatpush1.msra.mxu0 %v3246
  %3441 = vmatprep.subr.mxu0 0.0
  %3442 = vmatpush1.msra.mxu0 %v3247
  %3443 = vmatprep.subr.mxu0 0.0
  %3444 = vmatpush1.msra.mxu0 %v3248
  %3445 = vmatprep.subr.mxu0 0.0
  %3446 = vmatpush1.msra.mxu0 %v3249
  %3447 = vmatprep.subr.mxu0 0.0
  %3448 = vmatpush1.msra.mxu0 %v3250
  %3449 = vmatprep.subr.mxu0 0.0
  %3450 = vmatpush1.msra.mxu0 %v3251
  %3451 = vmatprep.mubr.f32.mxu0 %v3055
  %3452 = vmatmul.mubr.f32.gmra.mrb[0].mxu0 %v3054
  %v3453 = vpop.f32.mrb[0].mxu0
  %v3454 = vadd.f32 %v3384, %v3453
  %v3455 = vpop.f32.mrb[0].mxu0
  %3456 = vdwg.mxu0
  %3457 = vmatprep.subr.mxu0 0.0
  %3458 = vmatpush1.msra.mxu0 %v3252
  %3459 = vmatprep.subr.mxu0 0.0
  %3460 = vmatpush1.msra.mxu0 %v3253
  %3461 = vmatprep.subr.mxu0 0.0
  %3462 = vmatpush1.msra.mxu0 %v3254
  %3463 = vmatprep.subr.mxu0 0.0
  %3464 = vmatpush1.msra.mxu0 %v3255
  %3465 = vmatprep.subr.mxu0 0.0
  %3466 = vmatpush1.msra.mxu0 %v3256
  %3467 = vmatprep.subr.mxu0 0.0
  %3468 = vmatpush1.msra.mxu0 %v3257
  %3469 = vmatprep.subr.mxu0 0.0
  %3470 = vmatpush1.msra.mxu0 %v3258
  %3471 = vmatprep.subr.mxu0 0.0
  %3472 = vmatpush1.msra.mxu0 %v3259
  %3473 = vmatprep.subr.mxu0 0.0
  %3474 = vmatpush1.msra.mxu0 %v3260
  %3475 = vmatprep.subr.mxu0 0.0
  %3476 = vmatpush1.msra.mxu0 %v3261
  %3477 = vmatprep.subr.mxu0 0.0
  %3478 = vmatpush1.msra.mxu0 %v3262
  %3479 = vmatprep.subr.mxu0 0.0
  %3480 = vmatpush1.msra.mxu0 %v3263
  %3481 = vmatprep.subr.mxu0 0.0
  %3482 = vmatpush1.msra.mxu0 %v3264
  %3483 = vmatprep.subr.mxu0 0.0
  %3484 = vmatpush1.msra.mxu0 %v3265
  %3485 = vmatprep.subr.mxu0 0.0
  %3486 = vmatpush1.msra.mxu0 %v3266
  %3487 = vmatprep.subr.mxu0 0.0
  %3488 = vmatpush1.msra.mxu0 %v3267
  %3489 = vmatprep.subr.mxu0 0.0
  %3490 = vmatpush1.msra.mxu0 %v3268
  %3491 = vmatprep.subr.mxu0 0.0
  %3492 = vmatpush1.msra.mxu0 %v3269
  %3493 = vmatprep.subr.mxu0 0.0
  %3494 = vmatpush1.msra.mxu0 %v3270
  %3495 = vmatprep.subr.mxu0 0.0
  %3496 = vmatpush1.msra.mxu0 %v3271
  %3497 = vmatprep.subr.mxu0 0.0
  %3498 = vmatpush1.msra.mxu0 %v3272
  %3499 = vmatprep.subr.mxu0 0.0
  %3500 = vmatpush1.msra.mxu0 %v3273
  %3501 = vmatprep.subr.mxu0 0.0
  %3502 = vmatpush1.msra.mxu0 %v3274
  %3503 = vmatprep.subr.mxu0 0.0
  %3504 = vmatpush1.msra.mxu0 %v3275
  %3505 = vmatprep.subr.mxu0 0.0
  %3506 = vmatpush1.msra.mxu0 %v3276
  %3507 = vmatprep.subr.mxu0 0.0
  %3508 = vmatpush1.msra.mxu0 %v3277
  %3509 = vmatprep.subr.mxu0 0.0
  %3510 = vmatpush1.msra.mxu0 %v3278
  %3511 = vmatprep.subr.mxu0 0.0
  %3512 = vmatpush1.msra.mxu0 %v3279
  %3513 = vmatprep.subr.mxu0 0.0
  %3514 = vmatpush1.msra.mxu0 %v3280
  %3515 = vmatprep.subr.mxu0 0.0
  %3516 = vmatpush1.msra.mxu0 %v3281
  %3517 = vmatprep.subr.mxu0 0.0
  %3518 = vmatpush1.msra.mxu0 %v3282
  %3519 = vmatprep.subr.mxu0 0.0
  %3520 = vmatpush1.msra.mxu0 %v3283
  %3521 = vmatprep.mubr.f32.mxu0 %v3057
  %3522 = vmatmul.mubr.f32.gmra.mrb[0].mxu0 %v3056
  %v3523 = vpop.f32.mrb[0].mxu0
  %v3524 = vadd.f32 %v3454, %v3523
  %v3525 = vpop.f32.mrb[0].mxu0
  %3526 = vdwg.mxu0
  %3527 = vmatprep.subr.mxu0 0.0
  %3528 = vmatpush1.msra.mxu0 %v3284
  %3529 = vmatprep.subr.mxu0 0.0
  %3530 = vmatpush1.msra.mxu0 %v3285
  %3531 = vmatprep.subr.mxu0 0.0
  %3532 = vmatpush1.msra.mxu0 %v3286
  %3533 = vmatprep.subr.mxu0 0.0
  %3534 = vmatpush1.msra.mxu0 %v3287
  %3535 = vmatprep.subr.mxu0 0.0
  %3536 = vmatpush1.msra.mxu0 %v3288
  %3537 = vmatprep.subr.mxu0 0.0
  %3538 = vmatpush1.msra.mxu0 %v3289
  %3539 = vmatprep.subr.mxu0 0.0
  %3540 = vmatpush1.msra.mxu0 %v3290
  %3541 = vmatprep.subr.mxu0 0.0
  %3542 = vmatpush1.msra.mxu0 %v3291
  %3543 = vmatprep.subr.mxu0 0.0
  %3544 = vmatpush1.msra.mxu0 %v3292
  %3545 = vmatprep.subr.mxu0 0.0
  %3546 = vmatpush1.msra.mxu0 %v3293
  %3547 = vmatprep.subr.mxu0 0.0
  %3548 = vmatpush1.msra.mxu0 %v3294
  %3549 = vmatprep.subr.mxu0 0.0
  %3550 = vmatpush1.msra.mxu0 %v3295
  %3551 = vmatprep.subr.mxu0 0.0
  %3552 = vmatpush1.msra.mxu0 %v3296
  %3553 = vmatprep.subr.mxu0 0.0
  %3554 = vmatpush1.msra.mxu0 %v3297
  %3555 = vmatprep.subr.mxu0 0.0
  %3556 = vmatpush1.msra.mxu0 %v3298
  %3557 = vmatprep.subr.mxu0 0.0
  %3558 = vmatpush1.msra.mxu0 %v3299
  %3559 = vmatprep.subr.mxu0 0.0
  %3560 = vmatpush1.msra.mxu0 %v3300
  %3561 = vmatprep.subr.mxu0 0.0
  %3562 = vmatpush1.msra.mxu0 %v3301
  %3563 = vmatprep.subr.mxu0 0.0
  %3564 = vmatpush1.msra.mxu0 %v3302
  %3565 = vmatprep.subr.mxu0 0.0
  %3566 = vmatpush1.msra.mxu0 %v3303
  %3567 = vmatprep.subr.mxu0 0.0
  %3568 = vmatpush1.msra.mxu0 %v3304
  %3569 = vmatprep.subr.mxu0 0.0
  %3570 = vmatpush1.msra.mxu0 %v3305
  %3571 = vmatprep.subr.mxu0 0.0
  %3572 = vmatpush1.msra.mxu0 %v3306
  %3573 = vmatprep.subr.mxu0 0.0
  %3574 = vmatpush1.msra.mxu0 %v3307
  %3575 = vmatprep.subr.mxu0 0.0
  %3576 = vmatpush1.msra.mxu0 %v3308
  %3577 = vmatprep.subr.mxu0 0.0
  %3578 = vmatpush1.msra.mxu0 %v3309
  %3579 = vmatprep.subr.mxu0 0.0
  %3580 = vmatpush1.msra.mxu0 %v3310
  %3581 = vmatprep.subr.mxu0 0.0
  %3582 = vmatpush1.msra.mxu0 %v3311
  %3583 = vmatprep.subr.mxu0 0.0
  %3584 = vmatpush1.msra.mxu0 %v3312
  %3585 = vmatprep.subr.mxu0 0.0
  %3586 = vmatpush1.msra.mxu0 %v3313
  %3587 = vmatprep.subr.mxu0 0.0
  %3588 = vmatpush1.msra.mxu0 %v3314
  %3589 = vmatprep.subr.mxu0 0.0
  %3590 = vmatpush1.msra.mxu0 %v3315
  %3591 = vmatprep.mubr.f32.mxu0 %v3059
  %3592 = vmatmul.mubr.f32.gmra.mrb[0].mxu0 %v3058
  %v3593 = vpop.f32.mrb[0].mxu0
  %v3594 = vadd.f32 %v3524, %v3593
  %v3595 = vpop.f32.mrb[0].mxu0
  %3596 = vdwg.mxu0
  %vm3597 = vcmask 17408
  %v3598 = vsel %vm3597, %v3594, -inf
  %3599 = vmax.xlane.f32.xlu0 %v3598
  %v3600 = vpop.xlane.xlu0 %3599
  %v3601 = vsub.f32 %v3594, %v3600
  %v3602 = vmul.f32 %v3601, 1.442695
  %v3603 = vpow.pop %v3602
  %v3604 = vsel %vm3597, %v3603, 0.0
  %3605 = vadd.xlane.f32.xlu0 %v3604
  %v3606 = vpop.xlane.xlu0 %3605
  %v3607 = vrcp.pop %v3606
  %v3608 = vmul.f32 %v3603, %v3607
  %vm3609 = vcmask 42008
  %v3610 = vsel %vm3609, %v3594, -inf
  %3611 = vmax.xlane.f32.xlu0 %v3610
  %v3612 = vpop.xlane.xlu0 %3611
  %v3613 = vsub.f32 %v3594, %v3612
  %v3614 = vmul.f32 %v3613, 1.442695
  %v3615 = vpow.pop %v3614
  %3617 = vrot.lane.b32.xlu0 %v3615, 125
  %v3618 = vpop.permute.xlu0 %3617
  %v3620 = vsel %vm3597, %v3618, 0.0
  %3621 = vadd.xlane.f32.xlu0 %v3620
  %v3622 = vpop.xlane.xlu0 %3621
  %v3623 = vrcp.pop %v3622
  %v3624 = vmul.f32 %v3615, %v3623
  %vm3625 = vcmask 91184
  %v3626 = vsel %vm3625, %v3594, -inf
  %3627 = vmax.xlane.f32.xlu0 %v3626
  %v3628 = vpop.xlane.xlu0 %3627
  %v3629 = vsub.f32 %v3594, %v3628
  %v3630 = vmul.f32 %v3629, 1.442695
  %v3631 = vpow.pop %v3630
  %3633 = vrot.lane.b32.xlu0 %v3631, 122
  %v3634 = vpop.permute.xlu0 %3633
  %vm3636 = vcmask 41984
  %v3637 = vsel %vm3636, %v3634, 0.0
  %3638 = vadd.xlane.f32.xlu0 %v3637
  %v3639 = vpop.xlane.xlu0 %3638
  %v3640 = vrcp.pop %v3639
  %v3641 = vmul.f32 %v3631, %v3640
  %vm3642 = vcmask 124000
  %v3643 = vsel %vm3642, %v3594, -inf
  %3644 = vmax.xlane.f32.xlu0 %v3643
  %v3645 = vpop.xlane.xlu0 %3644
  %v3646 = vsub.f32 %v3594, %v3645
  %v3647 = vmul.f32 %v3646, 1.442695
  %v3648 = vpow.pop %v3647
  %3650 = vrot.lane.b32.xlu0 %v3648, 116
  %v3651 = vpop.permute.xlu0 %3650
  %vm3653 = vcmask 25600
  %v3654 = vsel %vm3653, %v3651, 0.0
  %3655 = vadd.xlane.f32.xlu0 %v3654
  %v3656 = vpop.xlane.xlu0 %3655
  %v3657 = vrcp.pop %v3656
  %v3658 = vmul.f32 %v3648, %v3657
  %vm3659 = vcmask 23552
  %v3660 = vsel %vm3659, %v3608, %v3624
  %vm3661 = vcmask 48128
  %v3662 = vsel %vm3661, %v3660, %v3641
  %vm3663 = vcmask 97280
  %v3664 = vsel %vm3663, %v3662, %v3658
  %vm3665 = vcmask 123904
  %3666 = vst.msk [vmem:[%s8] sm:$0x3] %vm3665, %v3664
  // Predicated region
  $region34: #{combine_forward.1} parent=0 // pred_check
    _
  $region35: #{combine_forward.1} parent=0 // pred_check_branch
    %3668 = sbr.rel (0) target = $region37
  $region36: #{combine_forward.1} parent=0 // pred_region
    _
  $region37: #{combine_forward.1} parent=0 // pred_fallthru
    _
  // Predicated region
  $region38: #{combine_forward.1} parent=0 // pred_check
    _
  $region39: #{combine_forward.1} parent=0 // pred_check_branch
    %3670 = sbr.rel (0) target = $region41
  $region40: #{combine_forward.1} parent=0 // pred_region
    _
  $region41: #{combine_forward.1} parent=0 // pred_fallthru
    _

</llo_original>
